<compile_context>
chip_gen: v7x
topology: tpu7x:2x2x1
jax: 0.10.0
libtpu: 0.0.40
codegen_flags: <defaults>
</compile_context>

<pallas_src>
import functools

import jax
import jax.numpy as jnp
from jax.experimental import pallas as pl
from jax.experimental.pallas import tpu as pltpu

LN_EPS = 1e-5


def _layernorm(x, gamma, beta):
    mean = jnp.mean(x, axis=-1, keepdims=True)
    var = jnp.mean((x - mean) ** 2, axis=-1, keepdims=True)
    return (x - mean) * jax.lax.rsqrt(var + LN_EPS) * gamma + beta


def accelerator_kernel(res_ref, x_ref,
                       w1_ref, b1_ref, w2_ref, b2_ref,
                       wqkv_ref, bqkv_ref, wo_ref, bo_ref,
                       g1_ref, be1_ref,
                       wf1_ref, bf1_ref, wf2_ref, bf2_ref,
                       g2_ref, be2_ref,
                       o_ref, *, num_heads):
    _, S, D = x_ref.shape                       # block is (1, S, D): one batch element
    E = bo_ref.shape[-1]
    hd = E // num_heads

    res = res_ref[0]                            # residual_scale scalar (SMEM)

    x = x_ref[0]                                # (S, D) bf16

    # fc1 + ReLU + fc2  (token-wise, MXU, f32 accumulate)
    h = jnp.dot(x, w1_ref[...], preferred_element_type=jnp.float32) + b1_ref[...]
    h = jnp.maximum(h, 0.0)
    y = jnp.dot(h.astype(jnp.bfloat16), w2_ref[...],
                preferred_element_type=jnp.float32) + b2_ref[...]        # (S, E) f32

    # Fused QKV projection (the 1/sqrt(hd) q-scale is folded into Wq/bq).
    qkv = jnp.dot(y.astype(jnp.bfloat16), wqkv_ref[...],
                  preferred_element_type=jnp.float32) + bqkv_ref[...]    # (S, 3E)
    q = qkv[:, :E]
    k = qkv[:, E:2 * E]
    v = qkv[:, 2 * E:]

    # Head split (small per-batch relayouts; heads become the batch axis).
    qh = jnp.transpose(q.reshape(S, num_heads, hd), (1, 0, 2)).astype(jnp.bfloat16)
    kh = jnp.transpose(k.reshape(S, num_heads, hd), (1, 0, 2)).astype(jnp.bfloat16)
    vh = jnp.transpose(v.reshape(S, num_heads, hd), (1, 0, 2)).astype(jnp.bfloat16)

    # Per-batch, per-head attention -- no cross-batch mask needed.
    s = jnp.einsum('hqd,hkd->hqk', qh, kh,
                   preferred_element_type=jnp.float32)                   # (nh, S, S)
    s = s - jnp.max(s, axis=-1, keepdims=True)
    p = jnp.exp(s)
    p = p / jnp.sum(p, axis=-1, keepdims=True)                           # exact softmax

    ah = jnp.einsum('hqk,hkd->hqd', p.astype(jnp.bfloat16), vh,
                    preferred_element_type=jnp.float32)                  # (nh, S, hd)

    # Out-projection with the head merge folded in: per-head matmul against the
    # (nh, hd, E)-reshaped W_o, then sum over heads (no merge transpose).
    outh = jnp.einsum('hqd,hde->hqe', ah.astype(jnp.bfloat16), wo_ref[...],
                      preferred_element_type=jnp.float32)                # (nh, S, E)
    attn = jnp.sum(outh, axis=0) + bo_ref[...]                           # (S, E)

    # Residual + LayerNorm1 (dropout = identity, eval mode).
    x1 = _layernorm(y + res * attn, g1_ref[...], be1_ref[...])

    # Feedforward: Linear -> (Dropout=id) -> ReLU -> Linear
    ff = jnp.dot(x1.astype(jnp.bfloat16), wf1_ref[...],
                 preferred_element_type=jnp.float32) + bf1_ref[...]
    ff = jnp.maximum(ff, 0.0)
    ff = jnp.dot(ff.astype(jnp.bfloat16), wf2_ref[...],
                 preferred_element_type=jnp.float32) + bf2_ref[...]

    # Residual + LayerNorm2
    x2 = _layernorm(x1 + res * ff, g2_ref[...], be2_ref[...])
    o_ref[0] = x2.astype(o_ref.dtype)


def make_params(key, input_size, output_size, hidden_size):
    """PyTorch-convention parameters of AdvancedAccelerator."""
    ks = jax.random.split(key, 12)
    E, H, D = output_size, hidden_size, input_size
    n = lambda k, shape, s=0.1: s * jax.random.normal(k, shape, jnp.float32)
    return dict(
        w1=n(ks[0], (H, D)), b1=n(ks[1], (H,), 0.01),
        w2=n(ks[2], (E, H)), b2=n(ks[3], (E,), 0.01),
        in_proj_w=n(ks[4], (3 * E, E)), in_proj_b=n(ks[5], (3 * E,), 0.01),
        wo=n(ks[6], (E, E)), bo=n(ks[7], (E,), 0.01),
        g1=jnp.ones((E,), jnp.float32), be1=jnp.zeros((E,), jnp.float32),
        wf1=n(ks[8], (H, E)), bf1=n(ks[9], (H,), 0.01),
        wf2=n(ks[10], (E, H)), bf2=n(ks[11], (E,), 0.01),
        g2=jnp.ones((E,), jnp.float32), be2=jnp.zeros((E,), jnp.float32),
        residual_scale=jnp.ones((1,), jnp.float32),
    )


def prepare_weights(params, num_heads=8):
    """One-time preprocessing of parameters into the kernel layout.

    Transposes, bf16 casts, q-scale folding into the fused QKV weight and the
    (nh, hd, E) reshape of W_o are done here ONCE and reused on every call.
    """
    E = params["w2"].shape[0]
    hd = E // num_heads
    scale = 1.0 / (hd ** 0.5)
    wdt = jnp.bfloat16
    row = lambda v: v.reshape(1, -1).astype(jnp.float32)     # biases / LN params stay f32

    # Fused QKV weight (E, 3E); PyTorch computes qkv = y @ in_proj_w.T + in_proj_b.
    scale_vec = jnp.concatenate([jnp.full((E,), scale, jnp.float32),
                                 jnp.ones((2 * E,), jnp.float32)])
    wqkv = params["in_proj_w"].T * scale_vec[None, :]
    bqkv = params["in_proj_b"] * scale_vec

    # Out-proj weight with the head-merge folded in:  out = sum_h ah[h] @ wo_r[h].
    wo_r = params["wo"].T.reshape(num_heads, hd, E)

    weights = (
        params["w1"].T.astype(wdt), row(params["b1"]),
        params["w2"].T.astype(wdt), row(params["b2"]),
        wqkv.astype(wdt), row(bqkv),
        wo_r.astype(wdt), row(params["bo"]),
        row(params["g1"]), row(params["be1"]),
        params["wf1"].T.astype(wdt), row(params["bf1"]),
        params["wf2"].T.astype(wdt), row(params["bf2"]),
        row(params["g2"]), row(params["be2"]),
    )
    res = params["residual_scale"].astype(jnp.float32)       # shape (1,)
    return res, weights


@functools.partial(jax.jit, static_argnames=("num_heads",))
def advanced_accelerator(x, res, weights, num_heads=8):
    """x: (S, B, input_size) -> (S, B, output_size). One batch element per grid step."""
    S, B, D = x.shape
    E = weights[7].shape[-1]                                  # bo row is (1, E)

    # Batch-major + bf16 for the kernel input (half the DMA bytes; attention is
    # per batch element so no cross-batch mask is required).
    xb = jnp.transpose(x, (1, 0, 2)).astype(jnp.bfloat16)     # (B, S, D)

    def full_spec(a):
        nd = a.ndim
        return pl.BlockSpec(a.shape, lambda b, _n=nd: (0,) * _n)

    in_specs = (
        [pl.BlockSpec((1,), lambda b: (0,),
                      memory_space=pltpu.MemorySpace.SMEM)]   # residual_scale scalar
        + [pl.BlockSpec((1, S, D), lambda b: (b, 0, 0))]      # x: one batch element/step
        + [full_spec(w) for w in weights]                     # weights resident in VMEM
    )

    out = pl.pallas_call(
        functools.partial(accelerator_kernel, num_heads=num_heads),
        grid=(B,),
        in_specs=in_specs,
        out_specs=pl.BlockSpec((1, S, E), lambda b: (b, 0, 0)),
        out_shape=jax.ShapeDtypeStruct((B, S, E), jnp.float32),
        compiler_params=pltpu.CompilerParams(
            dimension_semantics=("parallel",)),               # megacore-shardable axis
    )(res, xb, *weights)

    return jnp.transpose(out, (1, 0, 2))                      # back to (S, B, E)


def reference_forward(x, params, num_heads=8):
    """Pure-JAX f32 reference matching the PyTorch module in eval mode."""
    S, B, _ = x.shape
    E = params["w2"].shape[0]
    hd = E // num_heads
    h = jax.nn.relu(x @ params["w1"].T + params["b1"])
    y = h @ params["w2"].T + params["b2"]                                 # (S, B, E)
    qkv = y @ params["in_proj_w"].T + params["in_proj_b"]
    q, k, v = jnp.split(qkv, 3, axis=-1)
    q = q / jnp.sqrt(jnp.float32(hd))
    split = lambda t: jnp.transpose(t.reshape(S, B, num_heads, hd), (1, 2, 0, 3))
    qh, kh, vh = split(q), split(k), split(v)
    s = jnp.einsum('bhqd,bhkd->bhqk', qh, kh)
    p = jax.nn.softmax(s, axis=-1)
    a = jnp.einsum('bhqk,bhkd->bhqd', p, vh)
    a = jnp.transpose(a, (2, 0, 1, 3)).reshape(S, B, E)
    attn = a @ params["wo"].T + params["bo"]

    def ln(t, g, b):
        m = t.mean(-1, keepdims=True)
        var = ((t - m) ** 2).mean(-1, keepdims=True)
        return (t - m) / jnp.sqrt(var + LN_EPS) * g + b

    rs = params["residual_scale"][0]
    x1 = ln(y + rs * attn, params["g1"], params["be1"])
    ff = jax.nn.relu(x1 @ params["wf1"].T + params["bf1"])
    ff = ff @ params["wf2"].T + params["bf2"]
    return ln(x1 + rs * ff, params["g2"], params["be2"])


if __name__ == "__main__":
    SEQ, BATCH = 8, 2
    INPUT_SIZE, HIDDEN_SIZE, OUTPUT_SIZE = 32, 32, 64         # OUTPUT_SIZE % 8 heads == 0
    NUM_HEADS = 8

    key = jax.random.PRNGKey(0)
    kx, kp = jax.random.split(key)
    x = jax.random.normal(kx, (SEQ, BATCH, INPUT_SIZE), jnp.float32)
    params = make_params(kp, INPUT_SIZE, OUTPUT_SIZE, HIDDEN_SIZE)

    res, weights = prepare_weights(params, num_heads=NUM_HEADS)   # one-time weight prep

    y = advanced_accelerator(x, res, weights, num_heads=NUM_HEADS)
    jax.block_until_ready(y)

    assert y.shape == (SEQ, BATCH, OUTPUT_SIZE)
    assert bool(jnp.all(jnp.isfinite(y)))

    # Loose-tolerance check against an f32 reference (kernel uses bf16 MXU operands).
    y_ref = reference_forward(x, params, num_heads=NUM_HEADS)
    max_err = float(jnp.max(jnp.abs(y - y_ref)))
    assert max_err < 0.2, f"max abs error vs reference too large: {max_err}"

    print("KERNEL_OK")
</pallas_src>

<mosaic_0001>
module attributes {stable_mosaic.version = 11 : i64} {
  func.func @accelerator_kernel(%arg0: i32, %arg1: memref<1xf32, #tpu.memory_space<smem>>, %arg2: memref<1x8x32xbf16, #tpu.memory_space<vmem>>, %arg3: memref<32x32xbf16, #tpu.memory_space<vmem>>, %arg4: memref<1x32xf32, #tpu.memory_space<vmem>>, %arg5: memref<32x64xbf16, #tpu.memory_space<vmem>>, %arg6: memref<1x64xf32, #tpu.memory_space<vmem>>, %arg7: memref<64x192xbf16, #tpu.memory_space<vmem>>, %arg8: memref<1x192xf32, #tpu.memory_space<vmem>>, %arg9: memref<8x8x64xbf16, #tpu.memory_space<vmem>>, %arg10: memref<1x64xf32, #tpu.memory_space<vmem>>, %arg11: memref<1x64xf32, #tpu.memory_space<vmem>>, %arg12: memref<1x64xf32, #tpu.memory_space<vmem>>, %arg13: memref<64x32xbf16, #tpu.memory_space<vmem>>, %arg14: memref<1x32xf32, #tpu.memory_space<vmem>>, %arg15: memref<32x64xbf16, #tpu.memory_space<vmem>>, %arg16: memref<1x64xf32, #tpu.memory_space<vmem>>, %arg17: memref<1x64xf32, #tpu.memory_space<vmem>>, %arg18: memref<1x64xf32, #tpu.memory_space<vmem>>, %arg19: memref<1x8x64xf32, #tpu.memory_space<vmem>>) attributes {dimension_semantics = [#tpu.dimension_semantics<parallel>], iteration_bounds = array<i64: 2>, scalar_prefetch = 0 : i64, scratch_operands = 0 : i64, tpu.core_type = #tpu.core_type<tc>, window_params = [{transform_indices = @transform_0, window_bounds = array<i64: 1>}, {transform_indices = @transform_1, window_bounds = array<i64: 1, 8, 32>}, {pipeline_mode = #tpu.pipeline_mode<synchronous>, transform_indices = @transform_2, window_bounds = array<i64: 32, 32>}, {pipeline_mode = #tpu.pipeline_mode<synchronous>, transform_indices = @transform_3, window_bounds = array<i64: 1, 32>}, {pipeline_mode = #tpu.pipeline_mode<synchronous>, transform_indices = @transform_4, window_bounds = array<i64: 32, 64>}, {pipeline_mode = #tpu.pipeline_mode<synchronous>, transform_indices = @transform_5, window_bounds = array<i64: 1, 64>}, {pipeline_mode = #tpu.pipeline_mode<synchronous>, transform_indices = @transform_6, window_bounds = array<i64: 64, 192>}, {pipeline_mode = #tpu.pipeline_mode<synchronous>, transform_indices = @transform_7, window_bounds = array<i64: 1, 192>}, {pipeline_mode = #tpu.pipeline_mode<synchronous>, transform_indices = @transform_8, window_bounds = array<i64: 8, 8, 64>}, {pipeline_mode = #tpu.pipeline_mode<synchronous>, transform_indices = @transform_9, window_bounds = array<i64: 1, 64>}, {pipeline_mode = #tpu.pipeline_mode<synchronous>, transform_indices = @transform_10, window_bounds = array<i64: 1, 64>}, {pipeline_mode = #tpu.pipeline_mode<synchronous>, transform_indices = @transform_11, window_bounds = array<i64: 1, 64>}, {pipeline_mode = #tpu.pipeline_mode<synchronous>, transform_indices = @transform_12, window_bounds = array<i64: 64, 32>}, {pipeline_mode = #tpu.pipeline_mode<synchronous>, transform_indices = @transform_13, window_bounds = array<i64: 1, 32>}, {pipeline_mode = #tpu.pipeline_mode<synchronous>, transform_indices = @transform_14, window_bounds = array<i64: 32, 64>}, {pipeline_mode = #tpu.pipeline_mode<synchronous>, transform_indices = @transform_15, window_bounds = array<i64: 1, 64>}, {pipeline_mode = #tpu.pipeline_mode<synchronous>, transform_indices = @transform_16, window_bounds = array<i64: 1, 64>}, {pipeline_mode = #tpu.pipeline_mode<synchronous>, transform_indices = @transform_17, window_bounds = array<i64: 1, 64>}, {transform_indices = @transform_18, window_bounds = array<i64: 1, 8, 64>}]} {
    %c0 = arith.constant 0 : index
    %0 = memref.load %arg1[%c0] : memref<1xf32, #tpu.memory_space<smem>>
    %c0_0 = arith.constant 0 : index
    %c0_1 = arith.constant 0 : index
    %c0_2 = arith.constant 0 : index
    %1 = vector.load %arg2[%c0_0, %c0_1, %c0_2] : memref<1x8x32xbf16, #tpu.memory_space<vmem>>, vector<1x8x32xbf16>
    %2 = vector.shape_cast %1 : vector<1x8x32xbf16> to vector<8x32xbf16>
    %c0_3 = arith.constant 0 : index
    %c0_4 = arith.constant 0 : index
    %3 = vector.load %arg3[%c0_3, %c0_4] : memref<32x32xbf16, #tpu.memory_space<vmem>>, vector<32x32xbf16>
    %cst = arith.constant dense<0.000000e+00> : vector<8x32xf32>
    %4 = tpu.matmul %2, %3, %cst {dimension_numbers = #tpu.dot_dimension_numbers<[1], [0], [0], [1], [0, 0, 1, 1], [], []>} : vector<8x32xbf16>, vector<32x32xbf16>, vector<8x32xf32> -> vector<8x32xf32>
    %c0_5 = arith.constant 0 : index
    %c0_6 = arith.constant 0 : index
    %5 = vector.load %arg4[%c0_5, %c0_6] : memref<1x32xf32, #tpu.memory_space<vmem>>, vector<1x32xf32>
    %6 = vector.broadcast %5 : vector<1x32xf32> to vector<8x32xf32>
    %7 = arith.addf %4, %6 : vector<8x32xf32>
    %cst_7 = arith.constant 0.000000e+00 : f32
    %8 = vector.broadcast %cst_7 : f32 to vector<8x32xf32>
    %9 = arith.maximumf %7, %8 : vector<8x32xf32>
    %10 = arith.truncf %9 : vector<8x32xf32> to vector<8x32xbf16>
    %c0_8 = arith.constant 0 : index
    %c0_9 = arith.constant 0 : index
    %11 = vector.load %arg5[%c0_8, %c0_9] : memref<32x64xbf16, #tpu.memory_space<vmem>>, vector<32x64xbf16>
    %cst_10 = arith.constant dense<0.000000e+00> : vector<8x64xf32>
    %12 = tpu.matmul %10, %11, %cst_10 {dimension_numbers = #tpu.dot_dimension_numbers<[1], [0], [0], [1], [0, 0, 1, 1], [], []>} : vector<8x32xbf16>, vector<32x64xbf16>, vector<8x64xf32> -> vector<8x64xf32>
    %c0_11 = arith.constant 0 : index
    %c0_12 = arith.constant 0 : index
    %13 = vector.load %arg6[%c0_11, %c0_12] : memref<1x64xf32, #tpu.memory_space<vmem>>, vector<1x64xf32>
    %14 = vector.broadcast %13 : vector<1x64xf32> to vector<8x64xf32>
    %15 = arith.addf %12, %14 : vector<8x64xf32>
    %16 = arith.truncf %15 : vector<8x64xf32> to vector<8x64xbf16>
    %c0_13 = arith.constant 0 : index
    %c0_14 = arith.constant 0 : index
    %17 = vector.load %arg7[%c0_13, %c0_14] : memref<64x192xbf16, #tpu.memory_space<vmem>>, vector<64x192xbf16>
    %cst_15 = arith.constant dense<0.000000e+00> : vector<8x192xf32>
    %18 = tpu.matmul %16, %17, %cst_15 {dimension_numbers = #tpu.dot_dimension_numbers<[1], [0], [0], [1], [0, 0, 1, 1], [], []>} : vector<8x64xbf16>, vector<64x192xbf16>, vector<8x192xf32> -> vector<8x192xf32>
    %c0_16 = arith.constant 0 : index
    %c0_17 = arith.constant 0 : index
    %19 = vector.load %arg8[%c0_16, %c0_17] : memref<1x192xf32, #tpu.memory_space<vmem>>, vector<1x192xf32>
    %20 = vector.broadcast %19 : vector<1x192xf32> to vector<8x192xf32>
    %21 = arith.addf %18, %20 : vector<8x192xf32>
    %22 = vector.extract_strided_slice %21 {offsets = [0, 0], sizes = [8, 64], strides = [1, 1]} : vector<8x192xf32> to vector<8x64xf32>
    %23 = vector.extract_strided_slice %21 {offsets = [0, 64], sizes = [8, 64], strides = [1, 1]} : vector<8x192xf32> to vector<8x64xf32>
    %24 = vector.extract_strided_slice %21 {offsets = [0, 128], sizes = [8, 64], strides = [1, 1]} : vector<8x192xf32> to vector<8x64xf32>
    %25 = vector.shape_cast %22 : vector<8x64xf32> to vector<8x8x8xf32>
    %26 = tpu.transpose %25, [1, 0, 2] : vector<8x8x8xf32> -> vector<8x8x8xf32>
    %27 = arith.truncf %26 : vector<8x8x8xf32> to vector<8x8x8xbf16>
    %28 = vector.shape_cast %23 : vector<8x64xf32> to vector<8x8x8xf32>
    %29 = tpu.transpose %28, [1, 0, 2] : vector<8x8x8xf32> -> vector<8x8x8xf32>
    %30 = arith.truncf %29 : vector<8x8x8xf32> to vector<8x8x8xbf16>
    %31 = vector.shape_cast %24 : vector<8x64xf32> to vector<8x8x8xf32>
    %32 = tpu.transpose %31, [1, 0, 2] : vector<8x8x8xf32> -> vector<8x8x8xf32>
    %33 = arith.truncf %32 : vector<8x8x8xf32> to vector<8x8x8xbf16>
    "tpu.trace_start"() <{level = 10 : i32, message = "hqd,hkd->hqk"}> : () -> ()
    %cst_18 = arith.constant dense<0.000000e+00> : vector<8x8x8xf32>
    %34 = tpu.matmul %27, %30, %cst_18 {dimension_numbers = #tpu.dot_dimension_numbers<[2], [2], [1], [1], [0, 0, 0, 1, 1, 1], [0], [0]>} : vector<8x8x8xbf16>, vector<8x8x8xbf16>, vector<8x8x8xf32> -> vector<8x8x8xf32>
    "tpu.trace_stop"() : () -> ()
    %cst_19 = arith.constant dense<0xFF800000> : vector<8x8xf32>
    %35 = vector.multi_reduction <maximumf>, %34, %cst_19 [2] : vector<8x8x8xf32> to vector<8x8xf32>
    %36 = vector.shape_cast %35 : vector<8x8xf32> to vector<8x8x1xf32>
    %37 = vector.broadcast %36 : vector<8x8x1xf32> to vector<8x8x8xf32>
    %38 = arith.subf %34, %37 : vector<8x8x8xf32>
    %39 = math.exp %38 : vector<8x8x8xf32>
    %cst_20 = arith.constant dense<0.000000e+00> : vector<8x8xf32>
    %40 = vector.multi_reduction <add>, %39, %cst_20 [2] : vector<8x8x8xf32> to vector<8x8xf32>
    %41 = vector.shape_cast %40 : vector<8x8xf32> to vector<8x8x1xf32>
    %42 = vector.broadcast %41 : vector<8x8x1xf32> to vector<8x8x8xf32>
    %43 = arith.divf %39, %42 : vector<8x8x8xf32>
    %44 = arith.truncf %43 : vector<8x8x8xf32> to vector<8x8x8xbf16>
    "tpu.trace_start"() <{level = 10 : i32, message = "hqk,hkd->hqd"}> : () -> ()
    %cst_21 = arith.constant dense<0.000000e+00> : vector<8x8x8xf32>
    %45 = tpu.matmul %44, %33, %cst_21 {dimension_numbers = #tpu.dot_dimension_numbers<[2], [1], [1], [2], [0, 0, 0, 1, 1, 2], [0], [0]>} : vector<8x8x8xbf16>, vector<8x8x8xbf16>, vector<8x8x8xf32> -> vector<8x8x8xf32>
    "tpu.trace_stop"() : () -> ()
    %46 = arith.truncf %45 : vector<8x8x8xf32> to vector<8x8x8xbf16>
    %c0_22 = arith.constant 0 : index
    %c0_23 = arith.constant 0 : index
    %c0_24 = arith.constant 0 : index
    %47 = vector.load %arg9[%c0_22, %c0_23, %c0_24] : memref<8x8x64xbf16, #tpu.memory_space<vmem>>, vector<8x8x64xbf16>
    "tpu.trace_start"() <{level = 10 : i32, message = "hqd,hde->hqe"}> : () -> ()
    %cst_25 = arith.constant dense<0.000000e+00> : vector<8x8x64xf32>
    %48 = tpu.matmul %46, %47, %cst_25 {dimension_numbers = #tpu.dot_dimension_numbers<[2], [1], [1], [2], [0, 0, 0, 1, 1, 2], [0], [0]>} : vector<8x8x8xbf16>, vector<8x8x64xbf16>, vector<8x8x64xf32> -> vector<8x8x64xf32>
    "tpu.trace_stop"() : () -> ()
    %cst_26 = arith.constant dense<0.000000e+00> : vector<8x64xf32>
    %49 = vector.multi_reduction <add>, %48, %cst_26 [0] : vector<8x8x64xf32> to vector<8x64xf32>
    %c0_27 = arith.constant 0 : index
    %c0_28 = arith.constant 0 : index
    %50 = vector.load %arg10[%c0_27, %c0_28] : memref<1x64xf32, #tpu.memory_space<vmem>>, vector<1x64xf32>
    %51 = vector.broadcast %50 : vector<1x64xf32> to vector<8x64xf32>
    %52 = arith.addf %49, %51 : vector<8x64xf32>
    %53 = vector.broadcast %0 : f32 to vector<8x64xf32>
    %54 = arith.mulf %53, %52 : vector<8x64xf32>
    %55 = arith.addf %15, %54 : vector<8x64xf32>
    %c0_29 = arith.constant 0 : index
    %c0_30 = arith.constant 0 : index
    %56 = vector.load %arg11[%c0_29, %c0_30] : memref<1x64xf32, #tpu.memory_space<vmem>>, vector<1x64xf32>
    %c0_31 = arith.constant 0 : index
    %c0_32 = arith.constant 0 : index
    %57 = vector.load %arg12[%c0_31, %c0_32] : memref<1x64xf32, #tpu.memory_space<vmem>>, vector<1x64xf32>
    %cst_33 = arith.constant dense<0.000000e+00> : vector<8xf32>
    %58 = vector.multi_reduction <add>, %55, %cst_33 [1] : vector<8x64xf32> to vector<8xf32>
    %59 = vector.shape_cast %58 : vector<8xf32> to vector<8x1xf32>
    %cst_34 = arith.constant 6.400000e+01 : f32
    %60 = vector.broadcast %cst_34 : f32 to vector<8x1xf32>
    %61 = arith.divf %59, %60 : vector<8x1xf32>
    %62 = vector.broadcast %61 : vector<8x1xf32> to vector<8x64xf32>
    %63 = arith.subf %55, %62 : vector<8x64xf32>
    %64 = arith.mulf %63, %63 : vector<8x64xf32>
    %cst_35 = arith.constant dense<0.000000e+00> : vector<8xf32>
    %65 = vector.multi_reduction <add>, %64, %cst_35 [1] : vector<8x64xf32> to vector<8xf32>
    %66 = vector.shape_cast %65 : vector<8xf32> to vector<8x1xf32>
    %cst_36 = arith.constant 6.400000e+01 : f32
    %67 = vector.broadcast %cst_36 : f32 to vector<8x1xf32>
    %68 = arith.divf %66, %67 : vector<8x1xf32>
    %69 = vector.broadcast %61 : vector<8x1xf32> to vector<8x64xf32>
    %70 = arith.subf %55, %69 : vector<8x64xf32>
    %cst_37 = arith.constant 9.99999974E-6 : f32
    %71 = vector.broadcast %cst_37 : f32 to vector<8x1xf32>
    %72 = arith.addf %68, %71 : vector<8x1xf32>
    %73 = math.rsqrt %72 : vector<8x1xf32>
    %74 = vector.broadcast %73 : vector<8x1xf32> to vector<8x64xf32>
    %75 = arith.mulf %70, %74 : vector<8x64xf32>
    %76 = vector.broadcast %56 : vector<1x64xf32> to vector<8x64xf32>
    %77 = arith.mulf %75, %76 : vector<8x64xf32>
    %78 = vector.broadcast %57 : vector<1x64xf32> to vector<8x64xf32>
    %79 = arith.addf %77, %78 : vector<8x64xf32>
    %80 = arith.truncf %79 : vector<8x64xf32> to vector<8x64xbf16>
    %c0_38 = arith.constant 0 : index
    %c0_39 = arith.constant 0 : index
    %81 = vector.load %arg13[%c0_38, %c0_39] : memref<64x32xbf16, #tpu.memory_space<vmem>>, vector<64x32xbf16>
    %cst_40 = arith.constant dense<0.000000e+00> : vector<8x32xf32>
    %82 = tpu.matmul %80, %81, %cst_40 {dimension_numbers = #tpu.dot_dimension_numbers<[1], [0], [0], [1], [0, 0, 1, 1], [], []>} : vector<8x64xbf16>, vector<64x32xbf16>, vector<8x32xf32> -> vector<8x32xf32>
    %c0_41 = arith.constant 0 : index
    %c0_42 = arith.constant 0 : index
    %83 = vector.load %arg14[%c0_41, %c0_42] : memref<1x32xf32, #tpu.memory_space<vmem>>, vector<1x32xf32>
    %84 = vector.broadcast %83 : vector<1x32xf32> to vector<8x32xf32>
    %85 = arith.addf %82, %84 : vector<8x32xf32>
    %cst_43 = arith.constant 0.000000e+00 : f32
    %86 = vector.broadcast %cst_43 : f32 to vector<8x32xf32>
    %87 = arith.maximumf %85, %86 : vector<8x32xf32>
    %88 = arith.truncf %87 : vector<8x32xf32> to vector<8x32xbf16>
    %c0_44 = arith.constant 0 : index
    %c0_45 = arith.constant 0 : index
    %89 = vector.load %arg15[%c0_44, %c0_45] : memref<32x64xbf16, #tpu.memory_space<vmem>>, vector<32x64xbf16>
    %cst_46 = arith.constant dense<0.000000e+00> : vector<8x64xf32>
    %90 = tpu.matmul %88, %89, %cst_46 {dimension_numbers = #tpu.dot_dimension_numbers<[1], [0], [0], [1], [0, 0, 1, 1], [], []>} : vector<8x32xbf16>, vector<32x64xbf16>, vector<8x64xf32> -> vector<8x64xf32>
    %c0_47 = arith.constant 0 : index
    %c0_48 = arith.constant 0 : index
    %91 = vector.load %arg16[%c0_47, %c0_48] : memref<1x64xf32, #tpu.memory_space<vmem>>, vector<1x64xf32>
    %92 = vector.broadcast %91 : vector<1x64xf32> to vector<8x64xf32>
    %93 = arith.addf %90, %92 : vector<8x64xf32>
    %94 = vector.broadcast %0 : f32 to vector<8x64xf32>
    %95 = arith.mulf %94, %93 : vector<8x64xf32>
    %96 = arith.addf %79, %95 : vector<8x64xf32>
    %c0_49 = arith.constant 0 : index
    %c0_50 = arith.constant 0 : index
    %97 = vector.load %arg17[%c0_49, %c0_50] : memref<1x64xf32, #tpu.memory_space<vmem>>, vector<1x64xf32>
    %c0_51 = arith.constant 0 : index
    %c0_52 = arith.constant 0 : index
    %98 = vector.load %arg18[%c0_51, %c0_52] : memref<1x64xf32, #tpu.memory_space<vmem>>, vector<1x64xf32>
    %cst_53 = arith.constant dense<0.000000e+00> : vector<8xf32>
    %99 = vector.multi_reduction <add>, %96, %cst_53 [1] : vector<8x64xf32> to vector<8xf32>
    %100 = vector.shape_cast %99 : vector<8xf32> to vector<8x1xf32>
    %cst_54 = arith.constant 6.400000e+01 : f32
    %101 = vector.broadcast %cst_54 : f32 to vector<8x1xf32>
    %102 = arith.divf %100, %101 : vector<8x1xf32>
    %103 = vector.broadcast %102 : vector<8x1xf32> to vector<8x64xf32>
    %104 = arith.subf %96, %103 : vector<8x64xf32>
    %105 = arith.mulf %104, %104 : vector<8x64xf32>
    %cst_55 = arith.constant dense<0.000000e+00> : vector<8xf32>
    %106 = vector.multi_reduction <add>, %105, %cst_55 [1] : vector<8x64xf32> to vector<8xf32>
    %107 = vector.shape_cast %106 : vector<8xf32> to vector<8x1xf32>
    %cst_56 = arith.constant 6.400000e+01 : f32
    %108 = vector.broadcast %cst_56 : f32 to vector<8x1xf32>
    %109 = arith.divf %107, %108 : vector<8x1xf32>
    %110 = vector.broadcast %102 : vector<8x1xf32> to vector<8x64xf32>
    %111 = arith.subf %96, %110 : vector<8x64xf32>
    %cst_57 = arith.constant 9.99999974E-6 : f32
    %112 = vector.broadcast %cst_57 : f32 to vector<8x1xf32>
    %113 = arith.addf %109, %112 : vector<8x1xf32>
    %114 = math.rsqrt %113 : vector<8x1xf32>
    %115 = vector.broadcast %114 : vector<8x1xf32> to vector<8x64xf32>
    %116 = arith.mulf %111, %115 : vector<8x64xf32>
    %117 = vector.broadcast %97 : vector<1x64xf32> to vector<8x64xf32>
    %118 = arith.mulf %116, %117 : vector<8x64xf32>
    %119 = vector.broadcast %98 : vector<1x64xf32> to vector<8x64xf32>
    %120 = arith.addf %118, %119 : vector<8x64xf32>
    %c0_58 = arith.constant 0 : index
    %c0_59 = arith.constant 0 : index
    %c0_60 = arith.constant 0 : index
    %121 = vector.load %arg19[%c0_58, %c0_59, %c0_60] : memref<1x8x64xf32, #tpu.memory_space<vmem>>, vector<1x8x64xf32>
    %122 = vector.shape_cast %121 : vector<1x8x64xf32> to vector<8x64xf32>
    %123 = vector.shape_cast %120 : vector<8x64xf32> to vector<1x8x64xf32>
    tpu.vector_store %arg19[%c0_58, %c0_59, %c0_60], %123 {strides = array<i32>} : memref<1x8x64xf32, #tpu.memory_space<vmem>>, vector<1x8x64xf32>,
    return
  }
  func.func @transform_0(%arg0: i32) -> i32 {
    %c0_i32 = arith.constant 0 : i32
    %c0_i32_0 = arith.constant 0 : i32
    return %c0_i32 : i32
  }
  func.func @transform_1(%arg0: i32) -> (i32, i32, i32) {
    %c0_i32 = arith.constant 0 : i32
    %c0_i32_0 = arith.constant 0 : i32
    %c0_i32_1 = arith.constant 0 : i32
    return %arg0, %c0_i32, %c0_i32_0 : i32, i32, i32
  }
  func.func @transform_2(%arg0: i32) -> (i32, i32) {
    %c0_i32 = arith.constant 0 : i32
    %c0_i32_0 = arith.constant 0 : i32
    %c0_i32_1 = arith.constant 0 : i32
    return %c0_i32, %c0_i32_0 : i32, i32
  }
  func.func @transform_3(%arg0: i32) -> (i32, i32) {
    %c0_i32 = arith.constant 0 : i32
    %c0_i32_0 = arith.constant 0 : i32
    %c0_i32_1 = arith.constant 0 : i32
    return %c0_i32, %c0_i32_0 : i32, i32
  }
  func.func @transform_4(%arg0: i32) -> (i32, i32) {
    %c0_i32 = arith.constant 0 : i32
    %c0_i32_0 = arith.constant 0 : i32
    %c0_i32_1 = arith.constant 0 : i32
    return %c0_i32, %c0_i32_0 : i32, i32
  }
  func.func @transform_5(%arg0: i32) -> (i32, i32) {
    %c0_i32 = arith.constant 0 : i32
    %c0_i32_0 = arith.constant 0 : i32
    %c0_i32_1 = arith.constant 0 : i32
    return %c0_i32, %c0_i32_0 : i32, i32
  }
  func.func @transform_6(%arg0: i32) -> (i32, i32) {
    %c0_i32 = arith.constant 0 : i32
    %c0_i32_0 = arith.constant 0 : i32
    %c0_i32_1 = arith.constant 0 : i32
    return %c0_i32, %c0_i32_0 : i32, i32
  }
  func.func @transform_7(%arg0: i32) -> (i32, i32) {
    %c0_i32 = arith.constant 0 : i32
    %c0_i32_0 = arith.constant 0 : i32
    %c0_i32_1 = arith.constant 0 : i32
    return %c0_i32, %c0_i32_0 : i32, i32
  }
  func.func @transform_8(%arg0: i32) -> (i32, i32, i32) {
    %c0_i32 = arith.constant 0 : i32
    %c0_i32_0 = arith.constant 0 : i32
    %c0_i32_1 = arith.constant 0 : i32
    %c0_i32_2 = arith.constant 0 : i32
    return %c0_i32, %c0_i32_0, %c0_i32_1 : i32, i32, i32
  }
  func.func @transform_9(%arg0: i32) -> (i32, i32) {
    %c0_i32 = arith.constant 0 : i32
    %c0_i32_0 = arith.constant 0 : i32
    %c0_i32_1 = arith.constant 0 : i32
    return %c0_i32, %c0_i32_0 : i32, i32
  }
  func.func @transform_10(%arg0: i32) -> (i32, i32) {
    %c0_i32 = arith.constant 0 : i32
    %c0_i32_0 = arith.constant 0 : i32
    %c0_i32_1 = arith.constant 0 : i32
    return %c0_i32, %c0_i32_0 : i32, i32
  }
  func.func @transform_11(%arg0: i32) -> (i32, i32) {
    %c0_i32 = arith.constant 0 : i32
    %c0_i32_0 = arith.constant 0 : i32
    %c0_i32_1 = arith.constant 0 : i32
    return %c0_i32, %c0_i32_0 : i32, i32
  }
  func.func @transform_12(%arg0: i32) -> (i32, i32) {
    %c0_i32 = arith.constant 0 : i32
    %c0_i32_0 = arith.constant 0 : i32
    %c0_i32_1 = arith.constant 0 : i32
    return %c0_i32, %c0_i32_0 : i32, i32
  }
  func.func @transform_13(%arg0: i32) -> (i32, i32) {
    %c0_i32 = arith.constant 0 : i32
    %c0_i32_0 = arith.constant 0 : i32
    %c0_i32_1 = arith.constant 0 : i32
    return %c0_i32, %c0_i32_0 : i32, i32
  }
  func.func @transform_14(%arg0: i32) -> (i32, i32) {
    %c0_i32 = arith.constant 0 : i32
    %c0_i32_0 = arith.constant 0 : i32
    %c0_i32_1 = arith.constant 0 : i32
    return %c0_i32, %c0_i32_0 : i32, i32
  }
  func.func @transform_15(%arg0: i32) -> (i32, i32) {
    %c0_i32 = arith.constant 0 : i32
    %c0_i32_0 = arith.constant 0 : i32
    %c0_i32_1 = arith.constant 0 : i32
    return %c0_i32, %c0_i32_0 : i32, i32
  }
  func.func @transform_16(%arg0: i32) -> (i32, i32) {
    %c0_i32 = arith.constant 0 : i32
    %c0_i32_0 = arith.constant 0 : i32
    %c0_i32_1 = arith.constant 0 : i32
    return %c0_i32, %c0_i32_0 : i32, i32
  }
  func.func @transform_17(%arg0: i32) -> (i32, i32) {
    %c0_i32 = arith.constant 0 : i32
    %c0_i32_0 = arith.constant 0 : i32
    %c0_i32_1 = arith.constant 0 : i32
    return %c0_i32, %c0_i32_0 : i32, i32
  }
  func.func @transform_18(%arg0: i32) -> (i32, i32, i32) {
    %c0_i32 = arith.constant 0 : i32
    %c0_i32_0 = arith.constant 0 : i32
    %c0_i32_1 = arith.constant 0 : i32
    return %arg0, %c0_i32, %c0_i32_0 : i32, i32, i32
  }
}

</mosaic_0001>

<llo_original>
// kernel: advanced_accelerator.1
$region0: #{advanced_accelerator.1}
  #allocation0 [shape = 'u32[]', space=smem, size = 0x4, offset = 0x4, fixed_abs, tag = 'smem constant byte address 0x4 - core index']
  #allocation1 [shape = 'u32[144,128]{1,0:T(1,128)}', space=vmem, size = 0x12000, scoped, tag = 'internal scratch']
  #allocation2 [shape = 'f32[1]{0:T(128)S(6)}', space=smem, size = 0x200, scoped, tag = 'scoped memory for advanced_accelerator.1']
  %s0 = inlined_call_operand.<no memory space> [shape: f32[1], index: 0, kind: input, shape index: {}]
  %s1 = inlined_call_operand.vmem [shape: bf16[2,8,32], index: 1, kind: input, shape index: {}]
  %s2 = inlined_call_operand.hbm [shape: bf16[32,32], index: 2, kind: input, shape index: {}]
  %s3 = inlined_call_operand.vmem [shape: f32[1,32], index: 3, kind: input, shape index: {}]
  %s4 = inlined_call_operand.hbm [shape: bf16[32,64], index: 4, kind: input, shape index: {}]
  %s5 = inlined_call_operand.hbm [shape: f32[1,64], index: 5, kind: input, shape index: {}]
  %s6 = inlined_call_operand.vmem [shape: bf16[64,192], index: 6, kind: input, shape index: {}]
  %s7 = inlined_call_operand.hbm [shape: f32[1,192], index: 7, kind: input, shape index: {}]
  %s8 = inlined_call_operand.vmem [shape: bf16[8,8,64], index: 8, kind: input, shape index: {}]
  %s9 = inlined_call_operand.hbm [shape: f32[1,64], index: 9, kind: input, shape index: {}]
  %s10 = inlined_call_operand.hbm [shape: f32[1,64], index: 10, kind: input, shape index: {}]
  %s11 = inlined_call_operand.hbm [shape: f32[1,64], index: 11, kind: input, shape index: {}]
  %s12 = inlined_call_operand.vmem [shape: bf16[64,32], index: 12, kind: input, shape index: {}]
  %s13 = inlined_call_operand.vmem [shape: f32[1,32], index: 13, kind: input, shape index: {}]
  %s14 = inlined_call_operand.hbm [shape: bf16[32,64], index: 14, kind: input, shape index: {}]
  %s15 = inlined_call_operand.vmem [shape: f32[1,64], index: 15, kind: input, shape index: {}]
  %s16 = inlined_call_operand.vmem [shape: f32[1,64], index: 16, kind: input, shape index: {}]
  %s17 = inlined_call_operand.vmem [shape: f32[1,64], index: 17, kind: input, shape index: {}]
  %s18 = inlined_call_operand.vmem [shape: f32[2,8,64], index: 18, kind: output, shape index: {}]
  %s19 = sld [smem:[#allocation0]]
  $region137: #{advanced_accelerator.1} parent=0
    _
  %s21 = ssub.s32 1, %s19
  %s22 = scalar_select 0, %s21, %s19
  %23 = sst [smem:[#allocation2]] %s0
  $region1: #{advanced_accelerator.1} parent=0
    #allocation3 [shape = 'u8[8192]{0}', space=vmem, size = 0x2000, scoped, tag = 'input window, operand 2, single buffered']
    #allocation4 [shape = 's32[2]{0}', space=sflag, size = 0x8, scoped, tag = 'scoped memory for advanced_accelerator.1']
    #allocation5 [shape = 'u8[8192]{0}', space=vmem, size = 0x2000, scoped, tag = 'input window, operand 4, single buffered']
    #allocation6 [shape = 's32[1]{0}', space=sflag, size = 0x4, scoped, tag = 'scoped memory for advanced_accelerator.1']
    #allocation7 [shape = 'u8[512]{0}', space=vmem, size = 0x400, scoped, tag = 'input window, operand 5, single buffered']
    #allocation8 [shape = 'u8[1024]{0}', space=vmem, size = 0x400, scoped, tag = 'input window, operand 7, single buffered']
    #allocation9 [shape = 's32[1]{0}', space=sflag, size = 0x4, scoped, tag = 'scoped memory for advanced_accelerator.1']
    #allocation10 [shape = 'u8[512]{0}', space=vmem, size = 0x400, scoped, tag = 'input window, operand 9, single buffered']
    #allocation11 [shape = 'u8[512]{0}', space=vmem, size = 0x400, scoped, tag = 'input window, operand 10, single buffered']
    #allocation12 [shape = 's32[1]{0}', space=sflag, size = 0x4, scoped, tag = 'scoped memory for advanced_accelerator.1']
    #allocation13 [shape = 'u8[512]{0}', space=vmem, size = 0x400, scoped, tag = 'input window, operand 11, single buffered']
    #allocation14 [shape = 'u8[8192]{0}', space=vmem, size = 0x2000, scoped, tag = 'input window, operand 14, single buffered']
    #allocation15 [shape = 's32[1]{0}', space=sflag, size = 0x4, scoped, tag = 'scoped memory for advanced_accelerator.1']
    %24 = vsyncpa [#allocation4], 0
    %25 = vsyncpa [#allocation6], 0
    %26 = vsyncpa [#allocation9], 0
    %27 = vsyncpa [#allocation12], 0
    %28 = vsyncpa [#allocation15], 0
    loop: start=0, step=1, limit=4
    $region2: #{advanced_accelerator.1} parent=1 // loop_pre_header
      _
    $region3: #{advanced_accelerator.1} parent=1 // loop_header
      %s30 = sphi 0, %s34
      %p31 = scmp.ge.s32.totalorder %s30, 4
      %s38 = sphi 0, %s38
      %s40 = sphi 0, %s38
      %s41 = sphi 0, %s40
      %s55 = sphi 0, %s41
      %s61 = sphi 0, %s63
      %s64 = sphi 0, %s61
      %s65 = sphi 0, %s64
      %s81 = sphi 0, %s65
      %s85 = sphi 0, %s85
      %s87 = sphi 0, %s85
      %s88 = sphi 0, %s87
      %s102 = sphi 0, %s88
      %s106 = sphi 0, %s106
      %s108 = sphi 0, %s106
      %s109 = sphi 0, %s108
      %s123 = sphi 0, %s109
      %s127 = sphi 0, %s127
      %s129 = sphi 0, %s127
      %s130 = sphi 0, %s129
      %s144 = sphi 0, %s130
      %s148 = sphi 0, %s148
      %s150 = sphi 0, %s148
      %s151 = sphi 0, %s150
      %s165 = sphi 0, %s151
      %s169 = sphi 0, %s169
      %s171 = sphi 0, %s169
      %s172 = sphi 0, %s171
      %s186 = sphi 0, %s172
      %s190 = sphi 0, %s190
      %s192 = sphi 0, %s190
      %s193 = sphi 0, %s192
      %s207 = sphi 0, %s193
      %s211 = sphi 0, %s211
      %s213 = sphi 0, %s211
      %s214 = sphi 0, %s213
      %s228 = sphi 0, %s214
      %s232 = sphi 0, %s232
      %s234 = sphi 0, %s232
      %s235 = sphi 0, %s234
      %s249 = sphi 0, %s235
      %s253 = sphi 0, %s253
      %s255 = sphi 0, %s253
      %s256 = sphi 0, %s255
      %s270 = sphi 0, %s256
      %s274 = sphi 0, %s274
      %s276 = sphi 0, %s274
      %s277 = sphi 0, %s276
      %s291 = sphi 0, %s277
      %s295 = sphi 0, %s295
      %s297 = sphi 0, %s295
      %s298 = sphi 0, %s297
      %s312 = sphi 0, %s298
      %s316 = sphi 0, %s316
      %s318 = sphi 0, %s316
      %s319 = sphi 0, %s318
      %s333 = sphi 0, %s319
      %s337 = sphi 0, %s337
      %s339 = sphi 0, %s337
      %s340 = sphi 0, %s339
      %s354 = sphi 0, %s340
      %s358 = sphi 0, %s358
      %s360 = sphi 0, %s358
      %s361 = sphi 0, %s360
      %s375 = sphi 0, %s361
      %s379 = sphi 0, %s379
      %s381 = sphi 0, %s379
      %s382 = sphi 0, %s381
      %s396 = sphi 0, %s382
      %s400 = sphi 0, %s400
      %s402 = sphi 0, %s400
      %s403 = sphi 0, %s402
      %s417 = sphi 0, %s403
      %s423 = sphi 0, %s425
      %s426 = sphi 0, %s423
      %s427 = sphi 0, %s426
      %s443 = sphi 0, %s427
    $region4: #{advanced_accelerator.1} parent=1 // loop_header_branch
      %33 = sbr.rel (%p31) target = $region8
    $region5: #{advanced_accelerator.1} parent=1 // loop_body
      %s35 = ssub.s32 %s30, 1
      %s36 = ssub.s32 %s30, 2
      %s37 = sadd.s32 %s30, 1
      %s39 = sadd.s32 %s38, 1
      %p42 = scmp.eq.s32.totalorder %s30, 1
      %p43 = scmp.ne.s32.totalorder %s38, %s40
      %p44 = scmp.eq.s32.totalorder %s30, 0
      %p45 = por %p43, %p44
      %p46 = scmp.ne.s32.totalorder %s38, %s40
      %p47 = scmp.eq.s32.totalorder %s35, 1
      %p48 = por %p46, %p47
      %p49 = scmp.ne.s32.totalorder %s40, %s41
      %p50 = scmp.eq.s32.totalorder %s35, 0
      %p51 = por %p49, %p50
      %p52 = scmp.ne.s32.totalorder %s40, %s41
      %p53 = scmp.eq.s32.totalorder %s36, 1
      %p54 = por %p52, %p53
      %p56 = scmp.ne.s32.totalorder %s41, %s55
      %p57 = scmp.eq.s32.totalorder %s36, 0
      %p58 = por %p56, %p57
      %s59 = ssub.s32 %s30, %s37
      %p60 = scmp.eq.s32.totalorder %s59, 0
      %s62 = sadd.s32 %s61, 1
      %s63 = scalar_select %p60, %s61, %s62
      %p66 = pneg %p60
      %p67 = scmp.eq.s32.totalorder %s30, 1
      %p68 = por %p66, %p67
      %p69 = scmp.ne.s32.totalorder %s61, %s64
      %p70 = scmp.eq.s32.totalorder %s30, 0
      %p71 = por %p69, %p70
      %p72 = scmp.ne.s32.totalorder %s61, %s64
      %p73 = scmp.eq.s32.totalorder %s35, 1
      %p74 = por %p72, %p73
      %p75 = scmp.ne.s32.totalorder %s64, %s65
      %p76 = scmp.eq.s32.totalorder %s35, 0
      %p77 = por %p75, %p76
      %p78 = scmp.ne.s32.totalorder %s64, %s65
      %p79 = scmp.eq.s32.totalorder %s36, 1
      %p80 = por %p78, %p79
      %p82 = scmp.ne.s32.totalorder %s65, %s81
      %p83 = scmp.eq.s32.totalorder %s36, 0
      %p84 = por %p82, %p83
      %s86 = sadd.s32 %s85, 1
      %p89 = scmp.eq.s32.totalorder %s30, 1
      %p90 = scmp.ne.s32.totalorder %s85, %s87
      %p91 = scmp.eq.s32.totalorder %s30, 0
      %p92 = por %p90, %p91
      %p93 = scmp.ne.s32.totalorder %s85, %s87
      %p94 = scmp.eq.s32.totalorder %s35, 1
      %p95 = por %p93, %p94
      %p96 = scmp.ne.s32.totalorder %s87, %s88
      %p97 = scmp.eq.s32.totalorder %s35, 0
      %p98 = por %p96, %p97
      %p99 = scmp.ne.s32.totalorder %s87, %s88
      %p100 = scmp.eq.s32.totalorder %s36, 1
      %p101 = por %p99, %p100
      %p103 = scmp.ne.s32.totalorder %s88, %s102
      %p104 = scmp.eq.s32.totalorder %s36, 0
      %p105 = por %p103, %p104
      %s107 = sadd.s32 %s106, 1
      %p110 = scmp.eq.s32.totalorder %s30, 1
      %p111 = scmp.ne.s32.totalorder %s106, %s108
      %p112 = scmp.eq.s32.totalorder %s30, 0
      %p113 = por %p111, %p112
      %p114 = scmp.ne.s32.totalorder %s106, %s108
      %p115 = scmp.eq.s32.totalorder %s35, 1
      %p116 = por %p114, %p115
      %p117 = scmp.ne.s32.totalorder %s108, %s109
      %p118 = scmp.eq.s32.totalorder %s35, 0
      %p119 = por %p117, %p118
      %p120 = scmp.ne.s32.totalorder %s108, %s109
      %p121 = scmp.eq.s32.totalorder %s36, 1
      %p122 = por %p120, %p121
      %p124 = scmp.ne.s32.totalorder %s109, %s123
      %p125 = scmp.eq.s32.totalorder %s36, 0
      %p126 = por %p124, %p125
      %s128 = sadd.s32 %s127, 1
      %p131 = scmp.eq.s32.totalorder %s30, 1
      %p132 = scmp.ne.s32.totalorder %s127, %s129
      %p133 = scmp.eq.s32.totalorder %s30, 0
      %p134 = por %p132, %p133
      %p135 = scmp.ne.s32.totalorder %s127, %s129
      %p136 = scmp.eq.s32.totalorder %s35, 1
      %p137 = por %p135, %p136
      %p138 = scmp.ne.s32.totalorder %s129, %s130
      %p139 = scmp.eq.s32.totalorder %s35, 0
      %p140 = por %p138, %p139
      %p141 = scmp.ne.s32.totalorder %s129, %s130
      %p142 = scmp.eq.s32.totalorder %s36, 1
      %p143 = por %p141, %p142
      %p145 = scmp.ne.s32.totalorder %s130, %s144
      %p146 = scmp.eq.s32.totalorder %s36, 0
      %p147 = por %p145, %p146
      %s149 = sadd.s32 %s148, 1
      %p152 = scmp.eq.s32.totalorder %s30, 1
      %p153 = scmp.ne.s32.totalorder %s148, %s150
      %p154 = scmp.eq.s32.totalorder %s30, 0
      %p155 = por %p153, %p154
      %p156 = scmp.ne.s32.totalorder %s148, %s150
      %p157 = scmp.eq.s32.totalorder %s35, 1
      %p158 = por %p156, %p157
      %p159 = scmp.ne.s32.totalorder %s150, %s151
      %p160 = scmp.eq.s32.totalorder %s35, 0
      %p161 = por %p159, %p160
      %p162 = scmp.ne.s32.totalorder %s150, %s151
      %p163 = scmp.eq.s32.totalorder %s36, 1
      %p164 = por %p162, %p163
      %p166 = scmp.ne.s32.totalorder %s151, %s165
      %p167 = scmp.eq.s32.totalorder %s36, 0
      %p168 = por %p166, %p167
      %s170 = sadd.s32 %s169, 1
      %p173 = scmp.eq.s32.totalorder %s30, 1
      %p174 = scmp.ne.s32.totalorder %s169, %s171
      %p175 = scmp.eq.s32.totalorder %s30, 0
      %p176 = por %p174, %p175
      %p177 = scmp.ne.s32.totalorder %s169, %s171
      %p178 = scmp.eq.s32.totalorder %s35, 1
      %p179 = por %p177, %p178
      %p180 = scmp.ne.s32.totalorder %s171, %s172
      %p181 = scmp.eq.s32.totalorder %s35, 0
      %p182 = por %p180, %p181
      %p183 = scmp.ne.s32.totalorder %s171, %s172
      %p184 = scmp.eq.s32.totalorder %s36, 1
      %p185 = por %p183, %p184
      %p187 = scmp.ne.s32.totalorder %s172, %s186
      %p188 = scmp.eq.s32.totalorder %s36, 0
      %p189 = por %p187, %p188
      %s191 = sadd.s32 %s190, 1
      %p194 = scmp.eq.s32.totalorder %s30, 1
      %p195 = scmp.ne.s32.totalorder %s190, %s192
      %p196 = scmp.eq.s32.totalorder %s30, 0
      %p197 = por %p195, %p196
      %p198 = scmp.ne.s32.totalorder %s190, %s192
      %p199 = scmp.eq.s32.totalorder %s35, 1
      %p200 = por %p198, %p199
      %p201 = scmp.ne.s32.totalorder %s192, %s193
      %p202 = scmp.eq.s32.totalorder %s35, 0
      %p203 = por %p201, %p202
      %p204 = scmp.ne.s32.totalorder %s192, %s193
      %p205 = scmp.eq.s32.totalorder %s36, 1
      %p206 = por %p204, %p205
      %p208 = scmp.ne.s32.totalorder %s193, %s207
      %p209 = scmp.eq.s32.totalorder %s36, 0
      %p210 = por %p208, %p209
      %s212 = sadd.s32 %s211, 1
      %p215 = scmp.eq.s32.totalorder %s30, 1
      %p216 = scmp.ne.s32.totalorder %s211, %s213
      %p217 = scmp.eq.s32.totalorder %s30, 0
      %p218 = por %p216, %p217
      %p219 = scmp.ne.s32.totalorder %s211, %s213
      %p220 = scmp.eq.s32.totalorder %s35, 1
      %p221 = por %p219, %p220
      %p222 = scmp.ne.s32.totalorder %s213, %s214
      %p223 = scmp.eq.s32.totalorder %s35, 0
      %p224 = por %p222, %p223
      %p225 = scmp.ne.s32.totalorder %s213, %s214
      %p226 = scmp.eq.s32.totalorder %s36, 1
      %p227 = por %p225, %p226
      %p229 = scmp.ne.s32.totalorder %s214, %s228
      %p230 = scmp.eq.s32.totalorder %s36, 0
      %p231 = por %p229, %p230
      %s233 = sadd.s32 %s232, 1
      %p236 = scmp.eq.s32.totalorder %s30, 1
      %p237 = scmp.ne.s32.totalorder %s232, %s234
      %p238 = scmp.eq.s32.totalorder %s30, 0
      %p239 = por %p237, %p238
      %p240 = scmp.ne.s32.totalorder %s232, %s234
      %p241 = scmp.eq.s32.totalorder %s35, 1
      %p242 = por %p240, %p241
      %p243 = scmp.ne.s32.totalorder %s234, %s235
      %p244 = scmp.eq.s32.totalorder %s35, 0
      %p245 = por %p243, %p244
      %p246 = scmp.ne.s32.totalorder %s234, %s235
      %p247 = scmp.eq.s32.totalorder %s36, 1
      %p248 = por %p246, %p247
      %p250 = scmp.ne.s32.totalorder %s235, %s249
      %p251 = scmp.eq.s32.totalorder %s36, 0
      %p252 = por %p250, %p251
      %s254 = sadd.s32 %s253, 1
      %p257 = scmp.eq.s32.totalorder %s30, 1
      %p258 = scmp.ne.s32.totalorder %s253, %s255
      %p259 = scmp.eq.s32.totalorder %s30, 0
      %p260 = por %p258, %p259
      %p261 = scmp.ne.s32.totalorder %s253, %s255
      %p262 = scmp.eq.s32.totalorder %s35, 1
      %p263 = por %p261, %p262
      %p264 = scmp.ne.s32.totalorder %s255, %s256
      %p265 = scmp.eq.s32.totalorder %s35, 0
      %p266 = por %p264, %p265
      %p267 = scmp.ne.s32.totalorder %s255, %s256
      %p268 = scmp.eq.s32.totalorder %s36, 1
      %p269 = por %p267, %p268
      %p271 = scmp.ne.s32.totalorder %s256, %s270
      %p272 = scmp.eq.s32.totalorder %s36, 0
      %p273 = por %p271, %p272
      %s275 = sadd.s32 %s274, 1
      %p278 = scmp.eq.s32.totalorder %s30, 1
      %p279 = scmp.ne.s32.totalorder %s274, %s276
      %p280 = scmp.eq.s32.totalorder %s30, 0
      %p281 = por %p279, %p280
      %p282 = scmp.ne.s32.totalorder %s274, %s276
      %p283 = scmp.eq.s32.totalorder %s35, 1
      %p284 = por %p282, %p283
      %p285 = scmp.ne.s32.totalorder %s276, %s277
      %p286 = scmp.eq.s32.totalorder %s35, 0
      %p287 = por %p285, %p286
      %p288 = scmp.ne.s32.totalorder %s276, %s277
      %p289 = scmp.eq.s32.totalorder %s36, 1
      %p290 = por %p288, %p289
      %p292 = scmp.ne.s32.totalorder %s277, %s291
      %p293 = scmp.eq.s32.totalorder %s36, 0
      %p294 = por %p292, %p293
      %s296 = sadd.s32 %s295, 1
      %p299 = scmp.eq.s32.totalorder %s30, 1
      %p300 = scmp.ne.s32.totalorder %s295, %s297
      %p301 = scmp.eq.s32.totalorder %s30, 0
      %p302 = por %p300, %p301
      %p303 = scmp.ne.s32.totalorder %s295, %s297
      %p304 = scmp.eq.s32.totalorder %s35, 1
      %p305 = por %p303, %p304
      %p306 = scmp.ne.s32.totalorder %s297, %s298
      %p307 = scmp.eq.s32.totalorder %s35, 0
      %p308 = por %p306, %p307
      %p309 = scmp.ne.s32.totalorder %s297, %s298
      %p310 = scmp.eq.s32.totalorder %s36, 1
      %p311 = por %p309, %p310
      %p313 = scmp.ne.s32.totalorder %s298, %s312
      %p314 = scmp.eq.s32.totalorder %s36, 0
      %p315 = por %p313, %p314
      %s317 = sadd.s32 %s316, 1
      %p320 = scmp.eq.s32.totalorder %s30, 1
      %p321 = scmp.ne.s32.totalorder %s316, %s318
      %p322 = scmp.eq.s32.totalorder %s30, 0
      %p323 = por %p321, %p322
      %p324 = scmp.ne.s32.totalorder %s316, %s318
      %p325 = scmp.eq.s32.totalorder %s35, 1
      %p326 = por %p324, %p325
      %p327 = scmp.ne.s32.totalorder %s318, %s319
      %p328 = scmp.eq.s32.totalorder %s35, 0
      %p329 = por %p327, %p328
      %p330 = scmp.ne.s32.totalorder %s318, %s319
      %p331 = scmp.eq.s32.totalorder %s36, 1
      %p332 = por %p330, %p331
      %p334 = scmp.ne.s32.totalorder %s319, %s333
      %p335 = scmp.eq.s32.totalorder %s36, 0
      %p336 = por %p334, %p335
      %s338 = sadd.s32 %s337, 1
      %p341 = scmp.eq.s32.totalorder %s30, 1
      %p342 = scmp.ne.s32.totalorder %s337, %s339
      %p343 = scmp.eq.s32.totalorder %s30, 0
      %p344 = por %p342, %p343
      %p345 = scmp.ne.s32.totalorder %s337, %s339
      %p346 = scmp.eq.s32.totalorder %s35, 1
      %p347 = por %p345, %p346
      %p348 = scmp.ne.s32.totalorder %s339, %s340
      %p349 = scmp.eq.s32.totalorder %s35, 0
      %p350 = por %p348, %p349
      %p351 = scmp.ne.s32.totalorder %s339, %s340
      %p352 = scmp.eq.s32.totalorder %s36, 1
      %p353 = por %p351, %p352
      %p355 = scmp.ne.s32.totalorder %s340, %s354
      %p356 = scmp.eq.s32.totalorder %s36, 0
      %p357 = por %p355, %p356
      %s359 = sadd.s32 %s358, 1
      %p362 = scmp.eq.s32.totalorder %s30, 1
      %p363 = scmp.ne.s32.totalorder %s358, %s360
      %p364 = scmp.eq.s32.totalorder %s30, 0
      %p365 = por %p363, %p364
      %p366 = scmp.ne.s32.totalorder %s358, %s360
      %p367 = scmp.eq.s32.totalorder %s35, 1
      %p368 = por %p366, %p367
      %p369 = scmp.ne.s32.totalorder %s360, %s361
      %p370 = scmp.eq.s32.totalorder %s35, 0
      %p371 = por %p369, %p370
      %p372 = scmp.ne.s32.totalorder %s360, %s361
      %p373 = scmp.eq.s32.totalorder %s36, 1
      %p374 = por %p372, %p373
      %p376 = scmp.ne.s32.totalorder %s361, %s375
      %p377 = scmp.eq.s32.totalorder %s36, 0
      %p378 = por %p376, %p377
      %s380 = sadd.s32 %s379, 1
      %p383 = scmp.eq.s32.totalorder %s30, 1
      %p384 = scmp.ne.s32.totalorder %s379, %s381
      %p385 = scmp.eq.s32.totalorder %s30, 0
      %p386 = por %p384, %p385
      %p387 = scmp.ne.s32.totalorder %s379, %s381
      %p388 = scmp.eq.s32.totalorder %s35, 1
      %p389 = por %p387, %p388
      %p390 = scmp.ne.s32.totalorder %s381, %s382
      %p391 = scmp.eq.s32.totalorder %s35, 0
      %p392 = por %p390, %p391
      %p393 = scmp.ne.s32.totalorder %s381, %s382
      %p394 = scmp.eq.s32.totalorder %s36, 1
      %p395 = por %p393, %p394
      %p397 = scmp.ne.s32.totalorder %s382, %s396
      %p398 = scmp.eq.s32.totalorder %s36, 0
      %p399 = por %p397, %p398
      %s401 = sadd.s32 %s400, 1
      %p404 = scmp.eq.s32.totalorder %s30, 1
      %p405 = scmp.ne.s32.totalorder %s400, %s402
      %p406 = scmp.eq.s32.totalorder %s30, 0
      %p407 = por %p405, %p406
      %p408 = scmp.ne.s32.totalorder %s400, %s402
      %p409 = scmp.eq.s32.totalorder %s35, 1
      %p410 = por %p408, %p409
      %p411 = scmp.ne.s32.totalorder %s402, %s403
      %p412 = scmp.eq.s32.totalorder %s35, 0
      %p413 = por %p411, %p412
      %p414 = scmp.ne.s32.totalorder %s402, %s403
      %p415 = scmp.eq.s32.totalorder %s36, 1
      %p416 = por %p414, %p415
      %p418 = scmp.ne.s32.totalorder %s403, %s417
      %p419 = scmp.eq.s32.totalorder %s36, 0
      %p420 = por %p418, %p419
      %s421 = ssub.s32 %s30, %s37
      %p422 = scmp.eq.s32.totalorder %s421, 0
      %s424 = sadd.s32 %s423, 1
      %s425 = scalar_select %p422, %s423, %s424
      %p428 = pneg %p422
      %p429 = scmp.eq.s32.totalorder %s30, 1
      %p430 = por %p428, %p429
      %p431 = scmp.ne.s32.totalorder %s423, %s426
      %p432 = scmp.eq.s32.totalorder %s30, 0
      %p433 = por %p431, %p432
      %p434 = scmp.ne.s32.totalorder %s423, %s426
      %p435 = scmp.eq.s32.totalorder %s35, 1
      %p436 = por %p434, %p435
      %p437 = scmp.ne.s32.totalorder %s426, %s427
      %p438 = scmp.eq.s32.totalorder %s35, 0
      %p439 = por %p437, %p438
      %p440 = scmp.ne.s32.totalorder %s426, %s427
      %p441 = scmp.eq.s32.totalorder %s36, 1
      %p442 = por %p440, %p441
      %p444 = scmp.ne.s32.totalorder %s427, %s443
      %p445 = scmp.eq.s32.totalorder %s36, 0
      %p446 = por %p444, %p445
      %p447 = scmp.le.s32.totalorder 1, %s30
      %p448 = scmp.lt.s32.totalorder %s30, 3
      %p449 = pnand %p447, %p448
      %p450 = pneg %p449
      // Predicated region
      $region9: #{advanced_accelerator.1} parent=5 // pred_check
        _
      $region10: #{advanced_accelerator.1} parent=5 // pred_check_branch
        %452 = sbr.rel (%p449) target = $region12
      $region11: #{advanced_accelerator.1} parent=5 // pred_region
        %s453 = ssub.s32 %s30, 1
        // Predicated region
        $region13: #{advanced_accelerator.1} parent=11 // pred_check
          %p454 = pneg %p51
        $region14: #{advanced_accelerator.1} parent=11 // pred_check_branch
          %456 = sbr.rel (%p454) target = $region16
        $region15: #{advanced_accelerator.1} parent=11 // pred_region
          _
        $region16: #{advanced_accelerator.1} parent=11 // pred_fallthru
          _
        // Predicated region
        $region17: #{advanced_accelerator.1} parent=11 // pred_check
          %p457 = pneg %p98
        $region18: #{advanced_accelerator.1} parent=11 // pred_check_branch
          %459 = sbr.rel (%p457) target = $region20
        $region19: #{advanced_accelerator.1} parent=11 // pred_region
          %s461 = ssub.s32 256, 256
          %462 = vsyncadd [#allocation4], %s461
          %s463 = sshll.u32 [#allocation3], 4
          %s464 = int_to_ptr.vmem [resolvable:$true] %s463
          %469 = dma.hbm_to_vmem [thread:$0]  %s2, 256, %s464, [#allocation4], 64, 64, 4
        $region20: #{advanced_accelerator.1} parent=11 // pred_fallthru
          _
        // Predicated region
        $region21: #{advanced_accelerator.1} parent=11 // pred_check
          %p470 = pneg %p119
        $region22: #{advanced_accelerator.1} parent=11 // pred_check_branch
          %472 = sbr.rel (%p470) target = $region24
        $region23: #{advanced_accelerator.1} parent=11 // pred_region
          _
        $region24: #{advanced_accelerator.1} parent=11 // pred_fallthru
          _
        // Predicated region
        $region25: #{advanced_accelerator.1} parent=11 // pred_check
          %p473 = pneg %p140
        $region26: #{advanced_accelerator.1} parent=11 // pred_check_branch
          %475 = sbr.rel (%p473) target = $region28
        $region27: #{advanced_accelerator.1} parent=11 // pred_region
          %s477 = ssub.s32 256, 256
          %478 = vsyncadd [#allocation6], %s477
          %s479 = sshll.u32 [#allocation5], 4
          %s480 = int_to_ptr.vmem [resolvable:$true] %s479
          %485 = dma.hbm_to_vmem [thread:$0]  %s4, 256, %s480, [#allocation6], 64, 64, 4
        $region28: #{advanced_accelerator.1} parent=11 // pred_fallthru
          _
        // Predicated region
        $region29: #{advanced_accelerator.1} parent=11 // pred_check
          %p486 = pneg %p161
        $region30: #{advanced_accelerator.1} parent=11 // pred_check_branch
          %488 = sbr.rel (%p486) target = $region32
        $region31: #{advanced_accelerator.1} parent=11 // pred_region
          %s490 = ssub.s32 16, 16
          %491 = vsyncadd [#allocation6], %s490
          %s493 = sshll.u32 [#allocation7], 4
          %s494 = int_to_ptr.vmem [resolvable:$true] %s493
          %496 = dma.hbm_to_vmem [thread:$0]  %s5, 16, %s494, [#allocation6]
        $region32: #{advanced_accelerator.1} parent=11 // pred_fallthru
          _
        // Predicated region
        $region33: #{advanced_accelerator.1} parent=11 // pred_check
          %p497 = pneg %p182
        $region34: #{advanced_accelerator.1} parent=11 // pred_check_branch
          %499 = sbr.rel (%p497) target = $region36
        $region35: #{advanced_accelerator.1} parent=11 // pred_region
          _
        $region36: #{advanced_accelerator.1} parent=11 // pred_fallthru
          _
        // Predicated region
        $region37: #{advanced_accelerator.1} parent=11 // pred_check
          %p500 = pneg %p203
        $region38: #{advanced_accelerator.1} parent=11 // pred_check_branch
          %502 = sbr.rel (%p500) target = $region40
        $region39: #{advanced_accelerator.1} parent=11 // pred_region
          %s504 = ssub.s32 32, 32
          %505 = vsyncadd [#allocation9], %s504
          %s507 = sshll.u32 [#allocation8], 4
          %s508 = int_to_ptr.vmem [resolvable:$true] %s507
          %510 = dma.hbm_to_vmem [thread:$0]  %s7, 32, %s508, [#allocation9]
        $region40: #{advanced_accelerator.1} parent=11 // pred_fallthru
          _
        // Predicated region
        $region41: #{advanced_accelerator.1} parent=11 // pred_check
          %p511 = pneg %p224
        $region42: #{advanced_accelerator.1} parent=11 // pred_check_branch
          %513 = sbr.rel (%p511) target = $region44
        $region43: #{advanced_accelerator.1} parent=11 // pred_region
          _
        $region44: #{advanced_accelerator.1} parent=11 // pred_fallthru
          _
        // Predicated region
        $region45: #{advanced_accelerator.1} parent=11 // pred_check
          %p514 = pneg %p245
        $region46: #{advanced_accelerator.1} parent=11 // pred_check_branch
          %516 = sbr.rel (%p514) target = $region48
        $region47: #{advanced_accelerator.1} parent=11 // pred_region
          %s518 = ssub.s32 16, 16
          %519 = vsyncadd [#allocation9], %s518
          %s521 = sshll.u32 [#allocation10], 4
          %s522 = int_to_ptr.vmem [resolvable:$true] %s521
          %524 = dma.hbm_to_vmem [thread:$0]  %s9, 16, %s522, [#allocation9]
        $region48: #{advanced_accelerator.1} parent=11 // pred_fallthru
          _
        // Predicated region
        $region49: #{advanced_accelerator.1} parent=11 // pred_check
          %p525 = pneg %p266
        $region50: #{advanced_accelerator.1} parent=11 // pred_check_branch
          %527 = sbr.rel (%p525) target = $region52
        $region51: #{advanced_accelerator.1} parent=11 // pred_region
          %s529 = ssub.s32 16, 16
          %530 = vsyncadd [#allocation12], %s529
          %s532 = sshll.u32 [#allocation11], 4
          %s533 = int_to_ptr.vmem [resolvable:$true] %s532
          %535 = dma.hbm_to_vmem [thread:$0]  %s10, 16, %s533, [#allocation12]
        $region52: #{advanced_accelerator.1} parent=11 // pred_fallthru
          _
        // Predicated region
        $region53: #{advanced_accelerator.1} parent=11 // pred_check
          %p536 = pneg %p287
        $region54: #{advanced_accelerator.1} parent=11 // pred_check_branch
          %538 = sbr.rel (%p536) target = $region56
        $region55: #{advanced_accelerator.1} parent=11 // pred_region
          %s540 = ssub.s32 16, 16
          %541 = vsyncadd [#allocation12], %s540
          %s543 = sshll.u32 [#allocation13], 4
          %s544 = int_to_ptr.vmem [resolvable:$true] %s543
          %546 = dma.hbm_to_vmem [thread:$0]  %s11, 16, %s544, [#allocation12]
        $region56: #{advanced_accelerator.1} parent=11 // pred_fallthru
          _
        // Predicated region
        $region57: #{advanced_accelerator.1} parent=11 // pred_check
          %p547 = pneg %p308
        $region58: #{advanced_accelerator.1} parent=11 // pred_check_branch
          %549 = sbr.rel (%p547) target = $region60
        $region59: #{advanced_accelerator.1} parent=11 // pred_region
          _
        $region60: #{advanced_accelerator.1} parent=11 // pred_fallthru
          _
        // Predicated region
        $region61: #{advanced_accelerator.1} parent=11 // pred_check
          %p550 = pneg %p329
        $region62: #{advanced_accelerator.1} parent=11 // pred_check_branch
          %552 = sbr.rel (%p550) target = $region64
        $region63: #{advanced_accelerator.1} parent=11 // pred_region
          _
        $region64: #{advanced_accelerator.1} parent=11 // pred_fallthru
          _
        // Predicated region
        $region65: #{advanced_accelerator.1} parent=11 // pred_check
          %p553 = pneg %p350
        $region66: #{advanced_accelerator.1} parent=11 // pred_check_branch
          %555 = sbr.rel (%p553) target = $region68
        $region67: #{advanced_accelerator.1} parent=11 // pred_region
          %s557 = ssub.s32 256, 256
          %558 = vsyncadd [#allocation15], %s557
          %s559 = sshll.u32 [#allocation14], 4
          %s560 = int_to_ptr.vmem [resolvable:$true] %s559
          %565 = dma.hbm_to_vmem [thread:$0]  %s14, 256, %s560, [#allocation15], 64, 64, 4
        $region68: #{advanced_accelerator.1} parent=11 // pred_fallthru
          _
        // Predicated region
        $region69: #{advanced_accelerator.1} parent=11 // pred_check
          %p566 = pneg %p371
        $region70: #{advanced_accelerator.1} parent=11 // pred_check_branch
          %568 = sbr.rel (%p566) target = $region72
        $region71: #{advanced_accelerator.1} parent=11 // pred_region
          _
        $region72: #{advanced_accelerator.1} parent=11 // pred_fallthru
          _
        // Predicated region
        $region73: #{advanced_accelerator.1} parent=11 // pred_check
          %p569 = pneg %p392
        $region74: #{advanced_accelerator.1} parent=11 // pred_check_branch
          %571 = sbr.rel (%p569) target = $region76
        $region75: #{advanced_accelerator.1} parent=11 // pred_region
          _
        $region76: #{advanced_accelerator.1} parent=11 // pred_fallthru
          _
        // Predicated region
        $region77: #{advanced_accelerator.1} parent=11 // pred_check
          %p572 = pneg %p413
        $region78: #{advanced_accelerator.1} parent=11 // pred_check_branch
          %574 = sbr.rel (%p572) target = $region80
        $region79: #{advanced_accelerator.1} parent=11 // pred_region
          _
        $region80: #{advanced_accelerator.1} parent=11 // pred_fallthru
          _
      $region12: #{advanced_accelerator.1} parent=5 // pred_fallthru
        _
      %p575 = scmp.lt.s32.totalorder %s30, 2
      // Predicated region
      $region81: #{advanced_accelerator.1} parent=5 // pred_check
        %p576 = pneg %p575
      $region82: #{advanced_accelerator.1} parent=5 // pred_check_branch
        %578 = sbr.rel (%p576) target = $region84
      $region83: #{advanced_accelerator.1} parent=5 // pred_region
        // Predicated region
        $region85: #{advanced_accelerator.1} parent=83 // pred_check
          %p579 = pneg %p71
        $region86: #{advanced_accelerator.1} parent=83 // pred_check_branch
          %581 = sbr.rel (%p579) target = $region88
        $region87: #{advanced_accelerator.1} parent=83 // pred_region
          %p582 = scmp.lt.s32.totalorder %s30, 1
          %s583 = scalar_select %p582, %s30, 1
          %s584 = smul.addr %s583, 4
          %s585 = scalar_lea.vmem %s1, %s584
        $region88: #{advanced_accelerator.1} parent=83 // pred_fallthru
          _
      $region84: #{advanced_accelerator.1} parent=5 // pred_fallthru
        _
      %p586 = scmp.le.s32.totalorder 1, %s30
      %p587 = scmp.lt.s32.totalorder %s30, 3
      %p588 = pnand %p586, %p587
      %p589 = pneg %p588
      // Predicated region
      $region89: #{advanced_accelerator.1} parent=5 // pred_check
        _
      $region90: #{advanced_accelerator.1} parent=5 // pred_check_branch
        %591 = sbr.rel (%p588) target = $region92
      $region91: #{advanced_accelerator.1} parent=5 // pred_region
        %s592 = ssub.s32 %s30, 1
        // Predicated region
        $region93: #{advanced_accelerator.1} parent=91 // pred_check
          %p593 = pneg %p98
        $region94: #{advanced_accelerator.1} parent=91 // pred_check_branch
          %595 = sbr.rel (%p593) target = $region96
        $region95: #{advanced_accelerator.1} parent=91 // pred_region
          %596 = dma.done [#allocation4], 256
        $region96: #{advanced_accelerator.1} parent=91 // pred_fallthru
          _
        // Predicated region
        $region97: #{advanced_accelerator.1} parent=91 // pred_check
          %p597 = pneg %p140
        $region98: #{advanced_accelerator.1} parent=91 // pred_check_branch
          %599 = sbr.rel (%p597) target = $region100
        $region99: #{advanced_accelerator.1} parent=91 // pred_region
          %600 = dma.done [#allocation6], 256
        $region100: #{advanced_accelerator.1} parent=91 // pred_fallthru
          _
        // Predicated region
        $region101: #{advanced_accelerator.1} parent=91 // pred_check
          %p601 = pneg %p161
        $region102: #{advanced_accelerator.1} parent=91 // pred_check_branch
          %603 = sbr.rel (%p601) target = $region104
        $region103: #{advanced_accelerator.1} parent=91 // pred_region
          %604 = dma.done [#allocation6], 16
        $region104: #{advanced_accelerator.1} parent=91 // pred_fallthru
          _
        // Predicated region
        $region105: #{advanced_accelerator.1} parent=91 // pred_check
          %p605 = pneg %p203
        $region106: #{advanced_accelerator.1} parent=91 // pred_check_branch
          %607 = sbr.rel (%p605) target = $region108
        $region107: #{advanced_accelerator.1} parent=91 // pred_region
          %608 = dma.done [#allocation9], 32
        $region108: #{advanced_accelerator.1} parent=91 // pred_fallthru
          _
        // Predicated region
        $region109: #{advanced_accelerator.1} parent=91 // pred_check
          %p609 = pneg %p245
        $region110: #{advanced_accelerator.1} parent=91 // pred_check_branch
          %611 = sbr.rel (%p609) target = $region112
        $region111: #{advanced_accelerator.1} parent=91 // pred_region
          %612 = dma.done [#allocation9], 16
        $region112: #{advanced_accelerator.1} parent=91 // pred_fallthru
          _
        // Predicated region
        $region113: #{advanced_accelerator.1} parent=91 // pred_check
          %p613 = pneg %p266
        $region114: #{advanced_accelerator.1} parent=91 // pred_check_branch
          %615 = sbr.rel (%p613) target = $region116
        $region115: #{advanced_accelerator.1} parent=91 // pred_region
          %616 = dma.done [#allocation12], 16
        $region116: #{advanced_accelerator.1} parent=91 // pred_fallthru
          _
        // Predicated region
        $region117: #{advanced_accelerator.1} parent=91 // pred_check
          %p617 = pneg %p287
        $region118: #{advanced_accelerator.1} parent=91 // pred_check_branch
          %619 = sbr.rel (%p617) target = $region120
        $region119: #{advanced_accelerator.1} parent=91 // pred_region
          %620 = dma.done [#allocation12], 16
        $region120: #{advanced_accelerator.1} parent=91 // pred_fallthru
          _
        // Predicated region
        $region121: #{advanced_accelerator.1} parent=91 // pred_check
          %p621 = pneg %p350
        $region122: #{advanced_accelerator.1} parent=91 // pred_check_branch
          %623 = sbr.rel (%p621) target = $region124
        $region123: #{advanced_accelerator.1} parent=91 // pred_region
          %624 = dma.done [#allocation15], 256
        $region124: #{advanced_accelerator.1} parent=91 // pred_fallthru
          _
        %p625 = pneg %p51
        %p626 = pneg %p48
        %p627 = scmp.lt.s32.totalorder %s35, 1
        %s628 = scalar_select %p627, %s35, 1
        %s629 = smul.addr %s628, 4
        %s630 = scalar_lea.vmem %s1, %s629
        %p631 = pneg %p77
        %p632 = pneg %p74
        %p633 = pneg %p98
        %p634 = pneg %p95
        %p635 = pneg %p119
        %p636 = pneg %p116
        %p637 = pneg %p140
        %p638 = pneg %p137
        %p639 = pneg %p161
        %p640 = pneg %p158
        %p641 = pneg %p182
        %p642 = pneg %p179
        %p643 = pneg %p203
        %p644 = pneg %p200
        %p645 = pneg %p224
        %p646 = pneg %p221
        %p647 = pneg %p245
        %p648 = pneg %p242
        %p649 = pneg %p266
        %p650 = pneg %p263
        %p651 = pneg %p287
        %p652 = pneg %p284
        %p653 = pneg %p308
        %p654 = pneg %p305
        %p655 = pneg %p329
        %p656 = pneg %p326
        %p657 = pneg %p350
        %p658 = pneg %p347
        %p659 = pneg %p371
        %p660 = pneg %p368
        %p661 = pneg %p392
        %p662 = pneg %p389
        %p663 = pneg %p413
        %p664 = pneg %p410
        %p665 = pneg %p439
        %p666 = pneg %p436
        %p667 = scmp.lt.s32.totalorder %s35, 1
        %s668 = scalar_select %p667, %s35, 1
        %s669 = smul.addr %s668, 8
        %s670 = scalar_lea.vmem %s18, %s669
        %p671 = scmp.lt.s32.totalorder %s35, 1
        %s672 = scalar_select %p671, %s35, 1
        %s673 = smul.addr %s672, 4
        %s674 = scalar_lea.vmem %s1, %s673
        %p675 = scmp.lt.s32.totalorder %s35, 1
        %s676 = scalar_select %p675, %s35, 1
        %s677 = smul.addr %s676, 8
        %s678 = scalar_lea.vmem %s18, %s677
        %s680 = sld [smem:[#allocation2]]
        %v681 = vld [vmem:[%s674] sm:$0xf]
        %v682 = vld [vmem:[#allocation3] sm:$0xf]
        %v683 = vld [vmem:[#allocation3 + $0x4] sm:$0xf]
        %v684 = vld [vmem:[#allocation3 + $0x8] sm:$0xf]
        %v685 = vld [vmem:[#allocation3 + $0xc] sm:$0xf]
        %v686 = vld [vmem:[%s3] sm:$0x1]
        %v688 = vlaneseq
        %v689 = vshrl.u32 %v688, 7
        %v690 = vsub.s32 0, %v689
        %v691 = vrot.slane %v686, %v690
        %v697 = vunpack.c.l.b16 %v682
        %v698 = vunpack.c.l.b16 %v683
        %v699 = vunpack.c.l.b16 %v684
        %v700 = vunpack.c.l.b16 %v685
        %v701 = vpack.c.b16 %v698, %v697
        %v702 = vpack.c.b16 %v700, %v699
        %vm705 = vcmask 261120
        %v707 = vsel %vm705, %v681, 0
        %709 = vmatprep.subr.bf16.mxu0 0
        %710 = vmatpush1.bf16.msra.mxu0 %v701
        %711 = vmatprep.subr.bf16.mxu0 0
        %712 = vmatpush1.bf16.msra.mxu0 %v702
        %713 = vmatprep.subr.bf16.mxu0 0
        %714 = vmatpush1.bf16.msra.mxu0 0
        %715 = vmatprep.subr.bf16.mxu0 0
        %716 = vmatpush1.bf16.msra.mxu0 0
        %717 = vmatprep.subr.bf16.mxu0 0
        %718 = vmatpush1.bf16.msra.mxu0 0
        %719 = vmatprep.subr.bf16.mxu0 0
        %720 = vmatpush1.bf16.msra.mxu0 0
        %721 = vmatprep.subr.bf16.mxu0 0
        %722 = vmatpush1.bf16.msra.mxu0 0
        %723 = vmatprep.subr.bf16.mxu0 0
        %724 = vmatpush1.bf16.msra.mxu0 0
        %725 = vmatprep.subr.bf16.mxu0 0
        %726 = vmatpush1.bf16.msra.mxu0 0
        %727 = vmatprep.subr.bf16.mxu0 0
        %728 = vmatpush1.bf16.msra.mxu0 0
        %729 = vmatprep.subr.bf16.mxu0 0
        %730 = vmatpush1.bf16.msra.mxu0 0
        %731 = vmatprep.subr.bf16.mxu0 0
        %732 = vmatpush1.bf16.msra.mxu0 0
        %733 = vmatprep.subr.bf16.mxu0 0
        %734 = vmatpush1.bf16.msra.mxu0 0
        %735 = vmatprep.subr.bf16.mxu0 0
        %736 = vmatpush1.bf16.msra.mxu0 0
        %737 = vmatprep.subr.bf16.mxu0 0
        %738 = vmatpush1.bf16.msra.mxu0 0
        %739 = vmatprep.subr.bf16.mxu0 0
        %740 = vmatpush1.bf16.msra.mxu0 0
        %741 = vmatprep.mubr.bf16.mxu0 0
        %742 = vmatmul.mubr.bf16.gmra.mrb[0].mxu0 %v707
        %v743 = vpop.f32.mrb[0].mxu0
        %v744 = vadd.f32 %v691, %v743
        %v745 = vpop.f32.mrb[0].mxu0
        %v746 = vpop.f32.mrb[0].mxu0
        %v747 = vpop.f32.mrb[0].mxu0
        %748 = vdwg.mxu0
        %v749 = vmax.f32 %v744, 0.0
        %v750 = vpack.c.bf16 %v749, %v749
        %v751 = vld [vmem:[#allocation5] sm:$0xf]
        %v752 = vld [vmem:[#allocation5 + $0x4] sm:$0xf]
        %v753 = vld [vmem:[#allocation5 + $0x8] sm:$0xf]
        %v754 = vld [vmem:[#allocation5 + $0xc] sm:$0xf]
        %v755 = vld [vmem:[#allocation7] sm:$0x1]
        %v757 = vlaneseq
        %v758 = vshrl.u32 %v757, 7
        %v759 = vsub.s32 0, %v758
        %v760 = vrot.slane %v755, %v759
        %v766 = vunpack.c.l.b16 %v751
        %v767 = vunpack.c.l.b16 %v752
        %v768 = vunpack.c.l.b16 %v753
        %v769 = vunpack.c.l.b16 %v754
        %v770 = vpack.c.b16 %v767, %v766
        %v771 = vpack.c.b16 %v769, %v768
        %v775 = vsel %vm705, %v750, 0
        %777 = vmatprep.subr.bf16.mxu0 0
        %778 = vmatpush1.bf16.msra.mxu0 %v770
        %779 = vmatprep.subr.bf16.mxu0 0
        %780 = vmatpush1.bf16.msra.mxu0 %v771
        %781 = vmatprep.subr.bf16.mxu0 0
        %782 = vmatpush1.bf16.msra.mxu0 0
        %783 = vmatprep.subr.bf16.mxu0 0
        %784 = vmatpush1.bf16.msra.mxu0 0
        %785 = vmatprep.subr.bf16.mxu0 0
        %786 = vmatpush1.bf16.msra.mxu0 0
        %787 = vmatprep.subr.bf16.mxu0 0
        %788 = vmatpush1.bf16.msra.mxu0 0
        %789 = vmatprep.subr.bf16.mxu0 0
        %790 = vmatpush1.bf16.msra.mxu0 0
        %791 = vmatprep.subr.bf16.mxu0 0
        %792 = vmatpush1.bf16.msra.mxu0 0
        %793 = vmatprep.subr.bf16.mxu0 0
        %794 = vmatpush1.bf16.msra.mxu0 0
        %795 = vmatprep.subr.bf16.mxu0 0
        %796 = vmatpush1.bf16.msra.mxu0 0
        %797 = vmatprep.subr.bf16.mxu0 0
        %798 = vmatpush1.bf16.msra.mxu0 0
        %799 = vmatprep.subr.bf16.mxu0 0
        %800 = vmatpush1.bf16.msra.mxu0 0
        %801 = vmatprep.subr.bf16.mxu0 0
        %802 = vmatpush1.bf16.msra.mxu0 0
        %803 = vmatprep.subr.bf16.mxu0 0
        %804 = vmatpush1.bf16.msra.mxu0 0
        %805 = vmatprep.subr.bf16.mxu0 0
        %806 = vmatpush1.bf16.msra.mxu0 0
        %807 = vmatprep.subr.bf16.mxu0 0
        %808 = vmatpush1.bf16.msra.mxu0 0
        %809 = vmatprep.mubr.bf16.mxu0 0
        %810 = vmatmul.mubr.bf16.gmra.mrb[0].mxu0 %v775
        %v811 = vpop.f32.mrb[0].mxu0
        %v812 = vadd.f32 %v760, %v811
        %v813 = vpop.f32.mrb[0].mxu0
        %v814 = vpop.f32.mrb[0].mxu0
        %v815 = vpop.f32.mrb[0].mxu0
        %816 = vdwg.mxu0
        %v817 = vpack.c.bf16 %v812, %v812
        %v818 = vld [vmem:[%s6] sm:$0xff]
        %v819 = vld [vmem:[%s6 + $0x8] sm:$0xff]
        %v820 = vld [vmem:[%s6 + $0x10] sm:$0xff]
        %v821 = vld [vmem:[%s6 + $0x18] sm:$0xff]
        %v822 = vld [vmem:[%s6 + $0x20] sm:$0xff]
        %v823 = vld [vmem:[%s6 + $0x28] sm:$0xff]
        %v824 = vld [vmem:[%s6 + $0x30] sm:$0xff]
        %v825 = vld [vmem:[%s6 + $0x38] sm:$0xff]
        %v826 = vld [vmem:[#allocation8] sm:$0x3]
        %v828 = vlaneseq
        %v829 = vshrl.u32 %v828, 7
        %v830 = vsub.s32 0, %v829
        %v831 = vrot.slane %v826, %v830
        %v832 = vlaneseq
        %v833 = vshrl.u32 %v832, 7
        %v834 = vsub.s32 1, %v833
        %v835 = vrot.slane %v826, %v834
        %v846 = vunpack.c.l.b16 %v818
        %v847 = vunpack.c.h.b16 %v818
        %v848 = vunpack.c.l.b16 %v819
        %v849 = vunpack.c.h.b16 %v819
        %v850 = vunpack.c.l.b16 %v820
        %v851 = vunpack.c.h.b16 %v820
        %v852 = vunpack.c.l.b16 %v821
        %v853 = vunpack.c.h.b16 %v821
        %v854 = vunpack.c.l.b16 %v822
        %v855 = vunpack.c.h.b16 %v822
        %v856 = vunpack.c.l.b16 %v823
        %v857 = vunpack.c.h.b16 %v823
        %v858 = vunpack.c.l.b16 %v824
        %v859 = vunpack.c.h.b16 %v824
        %v860 = vunpack.c.l.b16 %v825
        %v861 = vunpack.c.h.b16 %v825
        %v862 = vpack.c.b16 %v848, %v846
        %v863 = vpack.c.b16 %v849, %v847
        %v864 = vpack.c.b16 %v852, %v850
        %v865 = vpack.c.b16 %v853, %v851
        %v866 = vpack.c.b16 %v856, %v854
        %v867 = vpack.c.b16 %v857, %v855
        %v868 = vpack.c.b16 %v860, %v858
        %v869 = vpack.c.b16 %v861, %v859
        %vm878 = vcmask 523264
        %v880 = vsel %vm878, %v817, 0
        %882 = vmatprep.subr.bf16.mxu0 %v863
        %883 = vmatpush1.bf16.msra.mxu0 %v862
        %884 = vmatprep.subr.bf16.mxu0 %v865
        %885 = vmatpush1.bf16.msra.mxu0 %v864
        %886 = vmatprep.subr.bf16.mxu0 %v867
        %887 = vmatpush1.bf16.msra.mxu0 %v866
        %888 = vmatprep.subr.bf16.mxu0 %v869
        %889 = vmatpush1.bf16.msra.mxu0 %v868
        %890 = vmatprep.subr.bf16.mxu0 0
        %891 = vmatpush1.bf16.msra.mxu0 0
        %892 = vmatprep.subr.bf16.mxu0 0
        %893 = vmatpush1.bf16.msra.mxu0 0
        %894 = vmatprep.subr.bf16.mxu0 0
        %895 = vmatpush1.bf16.msra.mxu0 0
        %896 = vmatprep.subr.bf16.mxu0 0
        %897 = vmatpush1.bf16.msra.mxu0 0
        %898 = vmatprep.subr.bf16.mxu0 0
        %899 = vmatpush1.bf16.msra.mxu0 0
        %900 = vmatprep.subr.bf16.mxu0 0
        %901 = vmatpush1.bf16.msra.mxu0 0
        %902 = vmatprep.subr.bf16.mxu0 0
        %903 = vmatpush1.bf16.msra.mxu0 0
        %904 = vmatprep.subr.bf16.mxu0 0
        %905 = vmatpush1.bf16.msra.mxu0 0
        %906 = vmatprep.subr.bf16.mxu0 0
        %907 = vmatpush1.bf16.msra.mxu0 0
        %908 = vmatprep.subr.bf16.mxu0 0
        %909 = vmatpush1.bf16.msra.mxu0 0
        %910 = vmatprep.subr.bf16.mxu0 0
        %911 = vmatpush1.bf16.msra.mxu0 0
        %912 = vmatprep.subr.bf16.mxu0 0
        %913 = vmatpush1.bf16.msra.mxu0 0
        %914 = vmatprep.mubr.bf16.mxu0 0
        %915 = vmatmul.mubr.bf16.gmra.mrb[0].mxu0 %v880
        %v916 = vpop.f32.mrb[0].mxu0
        %v917 = vadd.f32 %v831, %v916
        %v918 = vpop.f32.mrb[0].mxu0
        %v919 = vadd.f32 %v835, %v918
        %v920 = vpop.f32.mrb[0].mxu0
        %v921 = vpop.f32.mrb[0].mxu0
        %922 = vdwg.mxu0
        %924 = vrot.lane.b32.xlu0 %v917, 120
        %v925 = vpop.permute.xlu0 %924
        %927 = vrot.lane.b32.xlu0 %v917, 112
        %v928 = vpop.permute.xlu0 %927
        %930 = vrot.lane.b32.xlu0 %v917, 104
        %v931 = vpop.permute.xlu0 %930
        %933 = vrot.lane.b32.xlu0 %v917, 96
        %v934 = vpop.permute.xlu0 %933
        %936 = vrot.lane.b32.xlu0 %v917, 88
        %v937 = vpop.permute.xlu0 %936
        %939 = vrot.lane.b32.xlu0 %v917, 80
        %v940 = vpop.permute.xlu0 %939
        %942 = vrot.lane.b32.xlu0 %v917, 72
        %v943 = vpop.permute.xlu0 %942
        %v945 = vcombine.low %v917, %v928
        %v946 = vcombine.high %v917, %v928
        %v948 = vunpack.c.l.s4 1983009808
        %v949 = vunpack.c.0.s8 %v948
        %v950 = vlaneseq
        %v951 = vshrl.u32 %v950, 7
        %v952 = vsub.s32 %v949, %v951
        %v953 = vrot.slane %v945, %v952
        %v955 = vunpack.c.l.s4 1983009808
        %v956 = vunpack.c.0.s8 %v955
        %v957 = vlaneseq
        %v958 = vshrl.u32 %v957, 7
        %v959 = vsub.s32 %v956, %v958
        %v960 = vrot.slane %v946, %v959
        %v961 = vcombine.low %v925, %v931
        %v962 = vcombine.high %v925, %v931
        %v964 = vunpack.c.l.s4 1983009808
        %v965 = vunpack.c.0.s8 %v964
        %v966 = vlaneseq
        %v967 = vshrl.u32 %v966, 7
        %v968 = vsub.s32 %v965, %v967
        %v969 = vrot.slane %v961, %v968
        %v971 = vunpack.c.l.s4 1983009808
        %v972 = vunpack.c.0.s8 %v971
        %v973 = vlaneseq
        %v974 = vshrl.u32 %v973, 7
        %v975 = vsub.s32 %v972, %v974
        %v976 = vrot.slane %v962, %v975
        %v977 = vcombine.low %v934, %v940
        %v978 = vcombine.high %v934, %v940
        %v980 = vunpack.c.l.s4 1983009808
        %v981 = vunpack.c.0.s8 %v980
        %v982 = vlaneseq
        %v983 = vshrl.u32 %v982, 7
        %v984 = vsub.s32 %v981, %v983
        %v985 = vrot.slane %v977, %v984
        %v987 = vunpack.c.l.s4 1983009808
        %v988 = vunpack.c.0.s8 %v987
        %v989 = vlaneseq
        %v990 = vshrl.u32 %v989, 7
        %v991 = vsub.s32 %v988, %v990
        %v992 = vrot.slane %v978, %v991
        %v993 = vcombine.low %v937, %v943
        %v994 = vcombine.high %v937, %v943
        %v996 = vunpack.c.l.s4 1983009808
        %v997 = vunpack.c.0.s8 %v996
        %v998 = vlaneseq
        %v999 = vshrl.u32 %v998, 7
        %v1000 = vsub.s32 %v997, %v999
        %v1001 = vrot.slane %v993, %v1000
        %v1003 = vunpack.c.l.s4 1983009808
        %v1004 = vunpack.c.0.s8 %v1003
        %v1005 = vlaneseq
        %v1006 = vshrl.u32 %v1005, 7
        %v1007 = vsub.s32 %v1004, %v1006
        %v1008 = vrot.slane %v994, %v1007
        %v1009 = vcombine.low %v953, %v969
        %v1010 = vcombine.high %v953, %v969
        %v1012 = vunpack.c.l.s4 1934713408
        %v1013 = vunpack.c.0.s8 %v1012
        %v1014 = vlaneseq
        %v1015 = vshrl.u32 %v1014, 7
        %v1016 = vsub.s32 %v1013, %v1015
        %v1017 = vrot.slane %v1009, %v1016
        %v1019 = vunpack.c.l.s4 1934713408
        %v1020 = vunpack.c.0.s8 %v1019
        %v1021 = vlaneseq
        %v1022 = vshrl.u32 %v1021, 7
        %v1023 = vsub.s32 %v1020, %v1022
        %v1024 = vrot.slane %v1010, %v1023
        %v1025 = vcombine.low %v960, %v976
        %v1026 = vcombine.high %v960, %v976
        %v1028 = vunpack.c.l.s4 1934713408
        %v1029 = vunpack.c.0.s8 %v1028
        %v1030 = vlaneseq
        %v1031 = vshrl.u32 %v1030, 7
        %v1032 = vsub.s32 %v1029, %v1031
        %v1033 = vrot.slane %v1025, %v1032
        %v1035 = vunpack.c.l.s4 1934713408
        %v1036 = vunpack.c.0.s8 %v1035
        %v1037 = vlaneseq
        %v1038 = vshrl.u32 %v1037, 7
        %v1039 = vsub.s32 %v1036, %v1038
        %v1040 = vrot.slane %v1026, %v1039
        %v1041 = vcombine.low %v985, %v1001
        %v1042 = vcombine.high %v985, %v1001
        %v1044 = vunpack.c.l.s4 1934713408
        %v1045 = vunpack.c.0.s8 %v1044
        %v1046 = vlaneseq
        %v1047 = vshrl.u32 %v1046, 7
        %v1048 = vsub.s32 %v1045, %v1047
        %v1049 = vrot.slane %v1041, %v1048
        %v1051 = vunpack.c.l.s4 1934713408
        %v1052 = vunpack.c.0.s8 %v1051
        %v1053 = vlaneseq
        %v1054 = vshrl.u32 %v1053, 7
        %v1055 = vsub.s32 %v1052, %v1054
        %v1056 = vrot.slane %v1042, %v1055
        %v1057 = vcombine.low %v992, %v1008
        %v1058 = vcombine.high %v992, %v1008
        %v1060 = vunpack.c.l.s4 1934713408
        %v1061 = vunpack.c.0.s8 %v1060
        %v1062 = vlaneseq
        %v1063 = vshrl.u32 %v1062, 7
        %v1064 = vsub.s32 %v1061, %v1063
        %v1065 = vrot.slane %v1057, %v1064
        %v1067 = vunpack.c.l.s4 1934713408
        %v1068 = vunpack.c.0.s8 %v1067
        %v1069 = vlaneseq
        %v1070 = vshrl.u32 %v1069, 7
        %v1071 = vsub.s32 %v1068, %v1070
        %v1072 = vrot.slane %v1058, %v1071
        %v1073 = vcombine.low %v1017, %v1049
        %v1074 = vcombine.high %v1017, %v1049
        %v1075 = vcombine.low %v1024, %v1056
        %v1076 = vcombine.high %v1024, %v1056
        %v1077 = vcombine.low %v1033, %v1065
        %v1078 = vcombine.high %v1033, %v1065
        %v1079 = vcombine.low %v1040, %v1072
        %v1080 = vcombine.high %v1040, %v1072
        %v1081 = vcombine.low %v1073, %v1075
        %v1082 = vcombine.high %v1073, %v1075
        %v1084 = vunpack.c.l.s4 1983009808
        %v1085 = vunpack.c.0.s8 %v1084
        %v1086 = vlaneseq
        %v1087 = vshrl.u32 %v1086, 7
        %v1088 = vsub.s32 %v1085, %v1087
        %v1089 = vrot.slane %v1081, %v1088
        %v1091 = vunpack.c.l.s4 1983009808
        %v1092 = vunpack.c.0.s8 %v1091
        %v1093 = vlaneseq
        %v1094 = vshrl.u32 %v1093, 7
        %v1095 = vsub.s32 %v1092, %v1094
        %v1096 = vrot.slane %v1082, %v1095
        %v1097 = vcombine.low %v1074, %v1076
        %v1098 = vcombine.high %v1074, %v1076
        %v1100 = vunpack.c.l.s4 1983009808
        %v1101 = vunpack.c.0.s8 %v1100
        %v1102 = vlaneseq
        %v1103 = vshrl.u32 %v1102, 7
        %v1104 = vsub.s32 %v1101, %v1103
        %v1105 = vrot.slane %v1097, %v1104
        %v1107 = vunpack.c.l.s4 1983009808
        %v1108 = vunpack.c.0.s8 %v1107
        %v1109 = vlaneseq
        %v1110 = vshrl.u32 %v1109, 7
        %v1111 = vsub.s32 %v1108, %v1110
        %v1112 = vrot.slane %v1098, %v1111
        %v1113 = vcombine.low %v1077, %v1079
        %v1114 = vcombine.high %v1077, %v1079
        %v1116 = vunpack.c.l.s4 1983009808
        %v1117 = vunpack.c.0.s8 %v1116
        %v1118 = vlaneseq
        %v1119 = vshrl.u32 %v1118, 7
        %v1120 = vsub.s32 %v1117, %v1119
        %v1121 = vrot.slane %v1113, %v1120
        %v1123 = vunpack.c.l.s4 1983009808
        %v1124 = vunpack.c.0.s8 %v1123
        %v1125 = vlaneseq
        %v1126 = vshrl.u32 %v1125, 7
        %v1127 = vsub.s32 %v1124, %v1126
        %v1128 = vrot.slane %v1114, %v1127
        %v1129 = vcombine.low %v1078, %v1080
        %v1130 = vcombine.high %v1078, %v1080
        %v1132 = vunpack.c.l.s4 1983009808
        %v1133 = vunpack.c.0.s8 %v1132
        %v1134 = vlaneseq
        %v1135 = vshrl.u32 %v1134, 7
        %v1136 = vsub.s32 %v1133, %v1135
        %v1137 = vrot.slane %v1129, %v1136
        %v1139 = vunpack.c.l.s4 1983009808
        %v1140 = vunpack.c.0.s8 %v1139
        %v1141 = vlaneseq
        %v1142 = vshrl.u32 %v1141, 7
        %v1143 = vsub.s32 %v1140, %v1142
        %v1144 = vrot.slane %v1130, %v1143
        %v1145 = vcombine.low %v1089, %v1105
        %v1146 = vcombine.high %v1089, %v1105
        %v1148 = vunpack.c.l.s4 1934713408
        %v1149 = vunpack.c.0.s8 %v1148
        %v1150 = vlaneseq
        %v1151 = vshrl.u32 %v1150, 7
        %v1152 = vsub.s32 %v1149, %v1151
        %v1153 = vrot.slane %v1145, %v1152
        %v1155 = vunpack.c.l.s4 1934713408
        %v1156 = vunpack.c.0.s8 %v1155
        %v1157 = vlaneseq
        %v1158 = vshrl.u32 %v1157, 7
        %v1159 = vsub.s32 %v1156, %v1158
        %v1160 = vrot.slane %v1146, %v1159
        %v1161 = vcombine.low %v1096, %v1112
        %v1162 = vcombine.high %v1096, %v1112
        %v1164 = vunpack.c.l.s4 1934713408
        %v1165 = vunpack.c.0.s8 %v1164
        %v1166 = vlaneseq
        %v1167 = vshrl.u32 %v1166, 7
        %v1168 = vsub.s32 %v1165, %v1167
        %v1169 = vrot.slane %v1161, %v1168
        %v1171 = vunpack.c.l.s4 1934713408
        %v1172 = vunpack.c.0.s8 %v1171
        %v1173 = vlaneseq
        %v1174 = vshrl.u32 %v1173, 7
        %v1175 = vsub.s32 %v1172, %v1174
        %v1176 = vrot.slane %v1162, %v1175
        %v1177 = vcombine.low %v1121, %v1137
        %v1178 = vcombine.high %v1121, %v1137
        %v1180 = vunpack.c.l.s4 1934713408
        %v1181 = vunpack.c.0.s8 %v1180
        %v1182 = vlaneseq
        %v1183 = vshrl.u32 %v1182, 7
        %v1184 = vsub.s32 %v1181, %v1183
        %v1185 = vrot.slane %v1177, %v1184
        %v1187 = vunpack.c.l.s4 1934713408
        %v1188 = vunpack.c.0.s8 %v1187
        %v1189 = vlaneseq
        %v1190 = vshrl.u32 %v1189, 7
        %v1191 = vsub.s32 %v1188, %v1190
        %v1192 = vrot.slane %v1178, %v1191
        %v1193 = vcombine.low %v1128, %v1144
        %v1194 = vcombine.high %v1128, %v1144
        %v1196 = vunpack.c.l.s4 1934713408
        %v1197 = vunpack.c.0.s8 %v1196
        %v1198 = vlaneseq
        %v1199 = vshrl.u32 %v1198, 7
        %v1200 = vsub.s32 %v1197, %v1199
        %v1201 = vrot.slane %v1193, %v1200
        %v1203 = vunpack.c.l.s4 1934713408
        %v1204 = vunpack.c.0.s8 %v1203
        %v1205 = vlaneseq
        %v1206 = vshrl.u32 %v1205, 7
        %v1207 = vsub.s32 %v1204, %v1206
        %v1208 = vrot.slane %v1194, %v1207
        %v1209 = vcombine.low %v1153, %v1185
        %v1210 = vcombine.high %v1153, %v1185
        %v1211 = vcombine.low %v1160, %v1192
        %v1212 = vcombine.high %v1160, %v1192
        %v1213 = vcombine.low %v1169, %v1201
        %v1214 = vcombine.high %v1169, %v1201
        %v1215 = vcombine.low %v1176, %v1208
        %v1216 = vcombine.high %v1176, %v1208
        %v1217 = vpack.c.bf16 %v1209, %v1209
        %v1218 = vpack.c.bf16 %v1210, %v1210
        %v1219 = vpack.c.bf16 %v1211, %v1211
        %v1220 = vpack.c.bf16 %v1212, %v1212
        %v1221 = vpack.c.bf16 %v1213, %v1213
        %v1222 = vpack.c.bf16 %v1214, %v1214
        %v1223 = vpack.c.bf16 %v1215, %v1215
        %v1224 = vpack.c.bf16 %v1216, %v1216
        %1225 = vrot.lane.b32.xlu0 %v917, 64
        %v1226 = vpop.permute.xlu0 %1225
        %1227 = vrot.lane.b32.xlu0 %v925, 64
        %v1228 = vpop.permute.xlu0 %1227
        %1229 = vrot.lane.b32.xlu0 %v928, 64
        %v1230 = vpop.permute.xlu0 %1229
        %1231 = vrot.lane.b32.xlu0 %v931, 64
        %v1232 = vpop.permute.xlu0 %1231
        %1233 = vrot.lane.b32.xlu0 %v934, 64
        %v1234 = vpop.permute.xlu0 %1233
        %1235 = vrot.lane.b32.xlu0 %v937, 64
        %v1236 = vpop.permute.xlu0 %1235
        %1237 = vrot.lane.b32.xlu0 %v940, 64
        %v1238 = vpop.permute.xlu0 %1237
        %1239 = vrot.lane.b32.xlu0 %v943, 64
        %v1240 = vpop.permute.xlu0 %1239
        %v1249 = vcombine.low %v1226, %v1230
        %v1250 = vcombine.high %v1226, %v1230
        %v1252 = vunpack.c.l.s4 1983009808
        %v1253 = vunpack.c.0.s8 %v1252
        %v1254 = vlaneseq
        %v1255 = vshrl.u32 %v1254, 7
        %v1256 = vsub.s32 %v1253, %v1255
        %v1257 = vrot.slane %v1249, %v1256
        %v1259 = vunpack.c.l.s4 1983009808
        %v1260 = vunpack.c.0.s8 %v1259
        %v1261 = vlaneseq
        %v1262 = vshrl.u32 %v1261, 7
        %v1263 = vsub.s32 %v1260, %v1262
        %v1264 = vrot.slane %v1250, %v1263
        %v1265 = vcombine.low %v1228, %v1232
        %v1266 = vcombine.high %v1228, %v1232
        %v1268 = vunpack.c.l.s4 1983009808
        %v1269 = vunpack.c.0.s8 %v1268
        %v1270 = vlaneseq
        %v1271 = vshrl.u32 %v1270, 7
        %v1272 = vsub.s32 %v1269, %v1271
        %v1273 = vrot.slane %v1265, %v1272
        %v1275 = vunpack.c.l.s4 1983009808
        %v1276 = vunpack.c.0.s8 %v1275
        %v1277 = vlaneseq
        %v1278 = vshrl.u32 %v1277, 7
        %v1279 = vsub.s32 %v1276, %v1278
        %v1280 = vrot.slane %v1266, %v1279
        %v1281 = vcombine.low %v1234, %v1238
        %v1282 = vcombine.high %v1234, %v1238
        %v1284 = vunpack.c.l.s4 1983009808
        %v1285 = vunpack.c.0.s8 %v1284
        %v1286 = vlaneseq
        %v1287 = vshrl.u32 %v1286, 7
        %v1288 = vsub.s32 %v1285, %v1287
        %v1289 = vrot.slane %v1281, %v1288
        %v1291 = vunpack.c.l.s4 1983009808
        %v1292 = vunpack.c.0.s8 %v1291
        %v1293 = vlaneseq
        %v1294 = vshrl.u32 %v1293, 7
        %v1295 = vsub.s32 %v1292, %v1294
        %v1296 = vrot.slane %v1282, %v1295
        %v1297 = vcombine.low %v1236, %v1240
        %v1298 = vcombine.high %v1236, %v1240
        %v1300 = vunpack.c.l.s4 1983009808
        %v1301 = vunpack.c.0.s8 %v1300
        %v1302 = vlaneseq
        %v1303 = vshrl.u32 %v1302, 7
        %v1304 = vsub.s32 %v1301, %v1303
        %v1305 = vrot.slane %v1297, %v1304
        %v1307 = vunpack.c.l.s4 1983009808
        %v1308 = vunpack.c.0.s8 %v1307
        %v1309 = vlaneseq
        %v1310 = vshrl.u32 %v1309, 7
        %v1311 = vsub.s32 %v1308, %v1310
        %v1312 = vrot.slane %v1298, %v1311
        %v1313 = vcombine.low %v1257, %v1273
        %v1314 = vcombine.high %v1257, %v1273
        %v1316 = vunpack.c.l.s4 1934713408
        %v1317 = vunpack.c.0.s8 %v1316
        %v1318 = vlaneseq
        %v1319 = vshrl.u32 %v1318, 7
        %v1320 = vsub.s32 %v1317, %v1319
        %v1321 = vrot.slane %v1313, %v1320
        %v1323 = vunpack.c.l.s4 1934713408
        %v1324 = vunpack.c.0.s8 %v1323
        %v1325 = vlaneseq
        %v1326 = vshrl.u32 %v1325, 7
        %v1327 = vsub.s32 %v1324, %v1326
        %v1328 = vrot.slane %v1314, %v1327
        %v1329 = vcombine.low %v1264, %v1280
        %v1330 = vcombine.high %v1264, %v1280
        %v1332 = vunpack.c.l.s4 1934713408
        %v1333 = vunpack.c.0.s8 %v1332
        %v1334 = vlaneseq
        %v1335 = vshrl.u32 %v1334, 7
        %v1336 = vsub.s32 %v1333, %v1335
        %v1337 = vrot.slane %v1329, %v1336
        %v1339 = vunpack.c.l.s4 1934713408
        %v1340 = vunpack.c.0.s8 %v1339
        %v1341 = vlaneseq
        %v1342 = vshrl.u32 %v1341, 7
        %v1343 = vsub.s32 %v1340, %v1342
        %v1344 = vrot.slane %v1330, %v1343
        %v1345 = vcombine.low %v1289, %v1305
        %v1346 = vcombine.high %v1289, %v1305
        %v1348 = vunpack.c.l.s4 1934713408
        %v1349 = vunpack.c.0.s8 %v1348
        %v1350 = vlaneseq
        %v1351 = vshrl.u32 %v1350, 7
        %v1352 = vsub.s32 %v1349, %v1351
        %v1353 = vrot.slane %v1345, %v1352
        %v1355 = vunpack.c.l.s4 1934713408
        %v1356 = vunpack.c.0.s8 %v1355
        %v1357 = vlaneseq
        %v1358 = vshrl.u32 %v1357, 7
        %v1359 = vsub.s32 %v1356, %v1358
        %v1360 = vrot.slane %v1346, %v1359
        %v1361 = vcombine.low %v1296, %v1312
        %v1362 = vcombine.high %v1296, %v1312
        %v1364 = vunpack.c.l.s4 1934713408
        %v1365 = vunpack.c.0.s8 %v1364
        %v1366 = vlaneseq
        %v1367 = vshrl.u32 %v1366, 7
        %v1368 = vsub.s32 %v1365, %v1367
        %v1369 = vrot.slane %v1361, %v1368
        %v1371 = vunpack.c.l.s4 1934713408
        %v1372 = vunpack.c.0.s8 %v1371
        %v1373 = vlaneseq
        %v1374 = vshrl.u32 %v1373, 7
        %v1375 = vsub.s32 %v1372, %v1374
        %v1376 = vrot.slane %v1362, %v1375
        %v1377 = vcombine.low %v1321, %v1353
        %v1378 = vcombine.high %v1321, %v1353
        %v1379 = vcombine.low %v1328, %v1360
        %v1380 = vcombine.high %v1328, %v1360
        %v1381 = vcombine.low %v1337, %v1369
        %v1382 = vcombine.high %v1337, %v1369
        %v1383 = vcombine.low %v1344, %v1376
        %v1384 = vcombine.high %v1344, %v1376
        %v1385 = vcombine.low %v1377, %v1379
        %v1386 = vcombine.high %v1377, %v1379
        %v1388 = vunpack.c.l.s4 1983009808
        %v1389 = vunpack.c.0.s8 %v1388
        %v1390 = vlaneseq
        %v1391 = vshrl.u32 %v1390, 7
        %v1392 = vsub.s32 %v1389, %v1391
        %v1393 = vrot.slane %v1385, %v1392
        %v1395 = vunpack.c.l.s4 1983009808
        %v1396 = vunpack.c.0.s8 %v1395
        %v1397 = vlaneseq
        %v1398 = vshrl.u32 %v1397, 7
        %v1399 = vsub.s32 %v1396, %v1398
        %v1400 = vrot.slane %v1386, %v1399
        %v1401 = vcombine.low %v1378, %v1380
        %v1402 = vcombine.high %v1378, %v1380
        %v1404 = vunpack.c.l.s4 1983009808
        %v1405 = vunpack.c.0.s8 %v1404
        %v1406 = vlaneseq
        %v1407 = vshrl.u32 %v1406, 7
        %v1408 = vsub.s32 %v1405, %v1407
        %v1409 = vrot.slane %v1401, %v1408
        %v1411 = vunpack.c.l.s4 1983009808
        %v1412 = vunpack.c.0.s8 %v1411
        %v1413 = vlaneseq
        %v1414 = vshrl.u32 %v1413, 7
        %v1415 = vsub.s32 %v1412, %v1414
        %v1416 = vrot.slane %v1402, %v1415
        %v1417 = vcombine.low %v1381, %v1383
        %v1418 = vcombine.high %v1381, %v1383
        %v1420 = vunpack.c.l.s4 1983009808
        %v1421 = vunpack.c.0.s8 %v1420
        %v1422 = vlaneseq
        %v1423 = vshrl.u32 %v1422, 7
        %v1424 = vsub.s32 %v1421, %v1423
        %v1425 = vrot.slane %v1417, %v1424
        %v1427 = vunpack.c.l.s4 1983009808
        %v1428 = vunpack.c.0.s8 %v1427
        %v1429 = vlaneseq
        %v1430 = vshrl.u32 %v1429, 7
        %v1431 = vsub.s32 %v1428, %v1430
        %v1432 = vrot.slane %v1418, %v1431
        %v1433 = vcombine.low %v1382, %v1384
        %v1434 = vcombine.high %v1382, %v1384
        %v1436 = vunpack.c.l.s4 1983009808
        %v1437 = vunpack.c.0.s8 %v1436
        %v1438 = vlaneseq
        %v1439 = vshrl.u32 %v1438, 7
        %v1440 = vsub.s32 %v1437, %v1439
        %v1441 = vrot.slane %v1433, %v1440
        %v1443 = vunpack.c.l.s4 1983009808
        %v1444 = vunpack.c.0.s8 %v1443
        %v1445 = vlaneseq
        %v1446 = vshrl.u32 %v1445, 7
        %v1447 = vsub.s32 %v1444, %v1446
        %v1448 = vrot.slane %v1434, %v1447
        %v1449 = vcombine.low %v1393, %v1409
        %v1450 = vcombine.high %v1393, %v1409
        %v1452 = vunpack.c.l.s4 1934713408
        %v1453 = vunpack.c.0.s8 %v1452
        %v1454 = vlaneseq
        %v1455 = vshrl.u32 %v1454, 7
        %v1456 = vsub.s32 %v1453, %v1455
        %v1457 = vrot.slane %v1449, %v1456
        %v1459 = vunpack.c.l.s4 1934713408
        %v1460 = vunpack.c.0.s8 %v1459
        %v1461 = vlaneseq
        %v1462 = vshrl.u32 %v1461, 7
        %v1463 = vsub.s32 %v1460, %v1462
        %v1464 = vrot.slane %v1450, %v1463
        %v1465 = vcombine.low %v1400, %v1416
        %v1466 = vcombine.high %v1400, %v1416
        %v1468 = vunpack.c.l.s4 1934713408
        %v1469 = vunpack.c.0.s8 %v1468
        %v1470 = vlaneseq
        %v1471 = vshrl.u32 %v1470, 7
        %v1472 = vsub.s32 %v1469, %v1471
        %v1473 = vrot.slane %v1465, %v1472
        %v1475 = vunpack.c.l.s4 1934713408
        %v1476 = vunpack.c.0.s8 %v1475
        %v1477 = vlaneseq
        %v1478 = vshrl.u32 %v1477, 7
        %v1479 = vsub.s32 %v1476, %v1478
        %v1480 = vrot.slane %v1466, %v1479
        %v1481 = vcombine.low %v1425, %v1441
        %v1482 = vcombine.high %v1425, %v1441
        %v1484 = vunpack.c.l.s4 1934713408
        %v1485 = vunpack.c.0.s8 %v1484
        %v1486 = vlaneseq
        %v1487 = vshrl.u32 %v1486, 7
        %v1488 = vsub.s32 %v1485, %v1487
        %v1489 = vrot.slane %v1481, %v1488
        %v1491 = vunpack.c.l.s4 1934713408
        %v1492 = vunpack.c.0.s8 %v1491
        %v1493 = vlaneseq
        %v1494 = vshrl.u32 %v1493, 7
        %v1495 = vsub.s32 %v1492, %v1494
        %v1496 = vrot.slane %v1482, %v1495
        %v1497 = vcombine.low %v1432, %v1448
        %v1498 = vcombine.high %v1432, %v1448
        %v1500 = vunpack.c.l.s4 1934713408
        %v1501 = vunpack.c.0.s8 %v1500
        %v1502 = vlaneseq
        %v1503 = vshrl.u32 %v1502, 7
        %v1504 = vsub.s32 %v1501, %v1503
        %v1505 = vrot.slane %v1497, %v1504
        %v1507 = vunpack.c.l.s4 1934713408
        %v1508 = vunpack.c.0.s8 %v1507
        %v1509 = vlaneseq
        %v1510 = vshrl.u32 %v1509, 7
        %v1511 = vsub.s32 %v1508, %v1510
        %v1512 = vrot.slane %v1498, %v1511
        %v1513 = vcombine.low %v1457, %v1489
        %v1514 = vcombine.high %v1457, %v1489
        %v1515 = vcombine.low %v1464, %v1496
        %v1516 = vcombine.high %v1464, %v1496
        %v1517 = vcombine.low %v1473, %v1505
        %v1518 = vcombine.high %v1473, %v1505
        %v1519 = vcombine.low %v1480, %v1512
        %v1520 = vcombine.high %v1480, %v1512
        %v1521 = vpack.c.bf16 %v1513, %v1513
        %v1522 = vpack.c.bf16 %v1514, %v1514
        %v1523 = vpack.c.bf16 %v1515, %v1515
        %v1524 = vpack.c.bf16 %v1516, %v1516
        %v1525 = vpack.c.bf16 %v1517, %v1517
        %v1526 = vpack.c.bf16 %v1518, %v1518
        %v1527 = vpack.c.bf16 %v1519, %v1519
        %v1528 = vpack.c.bf16 %v1520, %v1520
        %1530 = vrot.lane.b32.xlu0 %v919, 120
        %v1531 = vpop.permute.xlu0 %1530
        %1533 = vrot.lane.b32.xlu0 %v919, 112
        %v1534 = vpop.permute.xlu0 %1533
        %1536 = vrot.lane.b32.xlu0 %v919, 104
        %v1537 = vpop.permute.xlu0 %1536
        %1539 = vrot.lane.b32.xlu0 %v919, 96
        %v1540 = vpop.permute.xlu0 %1539
        %1542 = vrot.lane.b32.xlu0 %v919, 88
        %v1543 = vpop.permute.xlu0 %1542
        %1545 = vrot.lane.b32.xlu0 %v919, 80
        %v1546 = vpop.permute.xlu0 %1545
        %1548 = vrot.lane.b32.xlu0 %v919, 72
        %v1549 = vpop.permute.xlu0 %1548
        %v1551 = vcombine.low %v919, %v1534
        %v1552 = vcombine.high %v919, %v1534
        %v1554 = vunpack.c.l.s4 1983009808
        %v1555 = vunpack.c.0.s8 %v1554
        %v1556 = vlaneseq
        %v1557 = vshrl.u32 %v1556, 7
        %v1558 = vsub.s32 %v1555, %v1557
        %v1559 = vrot.slane %v1551, %v1558
        %v1561 = vunpack.c.l.s4 1983009808
        %v1562 = vunpack.c.0.s8 %v1561
        %v1563 = vlaneseq
        %v1564 = vshrl.u32 %v1563, 7
        %v1565 = vsub.s32 %v1562, %v1564
        %v1566 = vrot.slane %v1552, %v1565
        %v1567 = vcombine.low %v1531, %v1537
        %v1568 = vcombine.high %v1531, %v1537
        %v1570 = vunpack.c.l.s4 1983009808
        %v1571 = vunpack.c.0.s8 %v1570
        %v1572 = vlaneseq
        %v1573 = vshrl.u32 %v1572, 7
        %v1574 = vsub.s32 %v1571, %v1573
        %v1575 = vrot.slane %v1567, %v1574
        %v1577 = vunpack.c.l.s4 1983009808
        %v1578 = vunpack.c.0.s8 %v1577
        %v1579 = vlaneseq
        %v1580 = vshrl.u32 %v1579, 7
        %v1581 = vsub.s32 %v1578, %v1580
        %v1582 = vrot.slane %v1568, %v1581
        %v1583 = vcombine.low %v1540, %v1546
        %v1584 = vcombine.high %v1540, %v1546
        %v1586 = vunpack.c.l.s4 1983009808
        %v1587 = vunpack.c.0.s8 %v1586
        %v1588 = vlaneseq
        %v1589 = vshrl.u32 %v1588, 7
        %v1590 = vsub.s32 %v1587, %v1589
        %v1591 = vrot.slane %v1583, %v1590
        %v1593 = vunpack.c.l.s4 1983009808
        %v1594 = vunpack.c.0.s8 %v1593
        %v1595 = vlaneseq
        %v1596 = vshrl.u32 %v1595, 7
        %v1597 = vsub.s32 %v1594, %v1596
        %v1598 = vrot.slane %v1584, %v1597
        %v1599 = vcombine.low %v1543, %v1549
        %v1600 = vcombine.high %v1543, %v1549
        %v1602 = vunpack.c.l.s4 1983009808
        %v1603 = vunpack.c.0.s8 %v1602
        %v1604 = vlaneseq
        %v1605 = vshrl.u32 %v1604, 7
        %v1606 = vsub.s32 %v1603, %v1605
        %v1607 = vrot.slane %v1599, %v1606
        %v1609 = vunpack.c.l.s4 1983009808
        %v1610 = vunpack.c.0.s8 %v1609
        %v1611 = vlaneseq
        %v1612 = vshrl.u32 %v1611, 7
        %v1613 = vsub.s32 %v1610, %v1612
        %v1614 = vrot.slane %v1600, %v1613
        %v1615 = vcombine.low %v1559, %v1575
        %v1616 = vcombine.high %v1559, %v1575
        %v1618 = vunpack.c.l.s4 1934713408
        %v1619 = vunpack.c.0.s8 %v1618
        %v1620 = vlaneseq
        %v1621 = vshrl.u32 %v1620, 7
        %v1622 = vsub.s32 %v1619, %v1621
        %v1623 = vrot.slane %v1615, %v1622
        %v1625 = vunpack.c.l.s4 1934713408
        %v1626 = vunpack.c.0.s8 %v1625
        %v1627 = vlaneseq
        %v1628 = vshrl.u32 %v1627, 7
        %v1629 = vsub.s32 %v1626, %v1628
        %v1630 = vrot.slane %v1616, %v1629
        %v1631 = vcombine.low %v1566, %v1582
        %v1632 = vcombine.high %v1566, %v1582
        %v1634 = vunpack.c.l.s4 1934713408
        %v1635 = vunpack.c.0.s8 %v1634
        %v1636 = vlaneseq
        %v1637 = vshrl.u32 %v1636, 7
        %v1638 = vsub.s32 %v1635, %v1637
        %v1639 = vrot.slane %v1631, %v1638
        %v1641 = vunpack.c.l.s4 1934713408
        %v1642 = vunpack.c.0.s8 %v1641
        %v1643 = vlaneseq
        %v1644 = vshrl.u32 %v1643, 7
        %v1645 = vsub.s32 %v1642, %v1644
        %v1646 = vrot.slane %v1632, %v1645
        %v1647 = vcombine.low %v1591, %v1607
        %v1648 = vcombine.high %v1591, %v1607
        %v1650 = vunpack.c.l.s4 1934713408
        %v1651 = vunpack.c.0.s8 %v1650
        %v1652 = vlaneseq
        %v1653 = vshrl.u32 %v1652, 7
        %v1654 = vsub.s32 %v1651, %v1653
        %v1655 = vrot.slane %v1647, %v1654
        %v1657 = vunpack.c.l.s4 1934713408
        %v1658 = vunpack.c.0.s8 %v1657
        %v1659 = vlaneseq
        %v1660 = vshrl.u32 %v1659, 7
        %v1661 = vsub.s32 %v1658, %v1660
        %v1662 = vrot.slane %v1648, %v1661
        %v1663 = vcombine.low %v1598, %v1614
        %v1664 = vcombine.high %v1598, %v1614
        %v1666 = vunpack.c.l.s4 1934713408
        %v1667 = vunpack.c.0.s8 %v1666
        %v1668 = vlaneseq
        %v1669 = vshrl.u32 %v1668, 7
        %v1670 = vsub.s32 %v1667, %v1669
        %v1671 = vrot.slane %v1663, %v1670
        %v1673 = vunpack.c.l.s4 1934713408
        %v1674 = vunpack.c.0.s8 %v1673
        %v1675 = vlaneseq
        %v1676 = vshrl.u32 %v1675, 7
        %v1677 = vsub.s32 %v1674, %v1676
        %v1678 = vrot.slane %v1664, %v1677
        %v1679 = vcombine.low %v1623, %v1655
        %v1680 = vcombine.high %v1623, %v1655
        %v1681 = vcombine.low %v1630, %v1662
        %v1682 = vcombine.high %v1630, %v1662
        %v1683 = vcombine.low %v1639, %v1671
        %v1684 = vcombine.high %v1639, %v1671
        %v1685 = vcombine.low %v1646, %v1678
        %v1686 = vcombine.high %v1646, %v1678
        %v1687 = vcombine.low %v1679, %v1681
        %v1688 = vcombine.high %v1679, %v1681
        %v1690 = vunpack.c.l.s4 1983009808
        %v1691 = vunpack.c.0.s8 %v1690
        %v1692 = vlaneseq
        %v1693 = vshrl.u32 %v1692, 7
        %v1694 = vsub.s32 %v1691, %v1693
        %v1695 = vrot.slane %v1687, %v1694
        %v1697 = vunpack.c.l.s4 1983009808
        %v1698 = vunpack.c.0.s8 %v1697
        %v1699 = vlaneseq
        %v1700 = vshrl.u32 %v1699, 7
        %v1701 = vsub.s32 %v1698, %v1700
        %v1702 = vrot.slane %v1688, %v1701
        %v1703 = vcombine.low %v1680, %v1682
        %v1704 = vcombine.high %v1680, %v1682
        %v1706 = vunpack.c.l.s4 1983009808
        %v1707 = vunpack.c.0.s8 %v1706
        %v1708 = vlaneseq
        %v1709 = vshrl.u32 %v1708, 7
        %v1710 = vsub.s32 %v1707, %v1709
        %v1711 = vrot.slane %v1703, %v1710
        %v1713 = vunpack.c.l.s4 1983009808
        %v1714 = vunpack.c.0.s8 %v1713
        %v1715 = vlaneseq
        %v1716 = vshrl.u32 %v1715, 7
        %v1717 = vsub.s32 %v1714, %v1716
        %v1718 = vrot.slane %v1704, %v1717
        %v1719 = vcombine.low %v1683, %v1685
        %v1720 = vcombine.high %v1683, %v1685
        %v1722 = vunpack.c.l.s4 1983009808
        %v1723 = vunpack.c.0.s8 %v1722
        %v1724 = vlaneseq
        %v1725 = vshrl.u32 %v1724, 7
        %v1726 = vsub.s32 %v1723, %v1725
        %v1727 = vrot.slane %v1719, %v1726
        %v1729 = vunpack.c.l.s4 1983009808
        %v1730 = vunpack.c.0.s8 %v1729
        %v1731 = vlaneseq
        %v1732 = vshrl.u32 %v1731, 7
        %v1733 = vsub.s32 %v1730, %v1732
        %v1734 = vrot.slane %v1720, %v1733
        %v1735 = vcombine.low %v1684, %v1686
        %v1736 = vcombine.high %v1684, %v1686
        %v1738 = vunpack.c.l.s4 1983009808
        %v1739 = vunpack.c.0.s8 %v1738
        %v1740 = vlaneseq
        %v1741 = vshrl.u32 %v1740, 7
        %v1742 = vsub.s32 %v1739, %v1741
        %v1743 = vrot.slane %v1735, %v1742
        %v1745 = vunpack.c.l.s4 1983009808
        %v1746 = vunpack.c.0.s8 %v1745
        %v1747 = vlaneseq
        %v1748 = vshrl.u32 %v1747, 7
        %v1749 = vsub.s32 %v1746, %v1748
        %v1750 = vrot.slane %v1736, %v1749
        %v1751 = vcombine.low %v1695, %v1711
        %v1752 = vcombine.high %v1695, %v1711
        %v1754 = vunpack.c.l.s4 1934713408
        %v1755 = vunpack.c.0.s8 %v1754
        %v1756 = vlaneseq
        %v1757 = vshrl.u32 %v1756, 7
        %v1758 = vsub.s32 %v1755, %v1757
        %v1759 = vrot.slane %v1751, %v1758
        %v1761 = vunpack.c.l.s4 1934713408
        %v1762 = vunpack.c.0.s8 %v1761
        %v1763 = vlaneseq
        %v1764 = vshrl.u32 %v1763, 7
        %v1765 = vsub.s32 %v1762, %v1764
        %v1766 = vrot.slane %v1752, %v1765
        %v1767 = vcombine.low %v1702, %v1718
        %v1768 = vcombine.high %v1702, %v1718
        %v1770 = vunpack.c.l.s4 1934713408
        %v1771 = vunpack.c.0.s8 %v1770
        %v1772 = vlaneseq
        %v1773 = vshrl.u32 %v1772, 7
        %v1774 = vsub.s32 %v1771, %v1773
        %v1775 = vrot.slane %v1767, %v1774
        %v1777 = vunpack.c.l.s4 1934713408
        %v1778 = vunpack.c.0.s8 %v1777
        %v1779 = vlaneseq
        %v1780 = vshrl.u32 %v1779, 7
        %v1781 = vsub.s32 %v1778, %v1780
        %v1782 = vrot.slane %v1768, %v1781
        %v1783 = vcombine.low %v1727, %v1743
        %v1784 = vcombine.high %v1727, %v1743
        %v1786 = vunpack.c.l.s4 1934713408
        %v1787 = vunpack.c.0.s8 %v1786
        %v1788 = vlaneseq
        %v1789 = vshrl.u32 %v1788, 7
        %v1790 = vsub.s32 %v1787, %v1789
        %v1791 = vrot.slane %v1783, %v1790
        %v1793 = vunpack.c.l.s4 1934713408
        %v1794 = vunpack.c.0.s8 %v1793
        %v1795 = vlaneseq
        %v1796 = vshrl.u32 %v1795, 7
        %v1797 = vsub.s32 %v1794, %v1796
        %v1798 = vrot.slane %v1784, %v1797
        %v1799 = vcombine.low %v1734, %v1750
        %v1800 = vcombine.high %v1734, %v1750
        %v1802 = vunpack.c.l.s4 1934713408
        %v1803 = vunpack.c.0.s8 %v1802
        %v1804 = vlaneseq
        %v1805 = vshrl.u32 %v1804, 7
        %v1806 = vsub.s32 %v1803, %v1805
        %v1807 = vrot.slane %v1799, %v1806
        %v1809 = vunpack.c.l.s4 1934713408
        %v1810 = vunpack.c.0.s8 %v1809
        %v1811 = vlaneseq
        %v1812 = vshrl.u32 %v1811, 7
        %v1813 = vsub.s32 %v1810, %v1812
        %v1814 = vrot.slane %v1800, %v1813
        %v1815 = vcombine.low %v1759, %v1791
        %v1816 = vcombine.high %v1759, %v1791
        %v1817 = vcombine.low %v1766, %v1798
        %v1818 = vcombine.high %v1766, %v1798
        %v1819 = vcombine.low %v1775, %v1807
        %v1820 = vcombine.high %v1775, %v1807
        %v1821 = vcombine.low %v1782, %v1814
        %v1822 = vcombine.high %v1782, %v1814
        %v1823 = vpack.c.bf16 %v1815, %v1815
        %v1824 = vpack.c.bf16 %v1816, %v1816
        %v1825 = vpack.c.bf16 %v1817, %v1817
        %v1826 = vpack.c.bf16 %v1818, %v1818
        %v1827 = vpack.c.bf16 %v1819, %v1819
        %v1828 = vpack.c.bf16 %v1820, %v1820
        %v1829 = vpack.c.bf16 %v1821, %v1821
        %v1830 = vpack.c.bf16 %v1822, %v1822
        %vm1831 = vcmask 64512
        %v1833 = vsel %vm1831, %v1217, 0
        %v1836 = vsel %vm1831, %v1521, 0
        %1838 = vmatprep.subr.bf16.mxu0 0
        %1839 = vmatpush1.bf16.xpose.msra.mxu0 %v1836
        %1840 = vmatprep.subr.bf16.mxu0 0
        %1841 = vmatpush1.bf16.xpose.msra.mxu0 0
        %1842 = vmatprep.subr.bf16.mxu0 0
        %1843 = vmatpush1.bf16.xpose.msra.mxu0 0
        %1844 = vmatprep.subr.bf16.mxu0 0
        %1845 = vmatpush1.bf16.xpose.msra.mxu0 0
        %1846 = vmatprep.subr.bf16.mxu0 0
        %1847 = vmatpush1.bf16.xpose.msra.mxu0 0
        %1848 = vmatprep.subr.bf16.mxu0 0
        %1849 = vmatpush1.bf16.xpose.msra.mxu0 0
        %1850 = vmatprep.subr.bf16.mxu0 0
        %1851 = vmatpush1.bf16.xpose.msra.mxu0 0
        %1852 = vmatprep.subr.bf16.mxu0 0
        %1853 = vmatpush1.bf16.xpose.msra.mxu0 0
        %1854 = vmatprep.subr.bf16.mxu0 0
        %1855 = vmatpush1.bf16.xpose.msra.mxu0 0
        %1856 = vmatprep.subr.bf16.mxu0 0
        %1857 = vmatpush1.bf16.xpose.msra.mxu0 0
        %1858 = vmatprep.subr.bf16.mxu0 0
        %1859 = vmatpush1.bf16.xpose.msra.mxu0 0
        %1860 = vmatprep.subr.bf16.mxu0 0
        %1861 = vmatpush1.bf16.xpose.msra.mxu0 0
        %1862 = vmatprep.subr.bf16.mxu0 0
        %1863 = vmatpush1.bf16.xpose.msra.mxu0 0
        %1864 = vmatprep.subr.bf16.mxu0 0
        %1865 = vmatpush1.bf16.xpose.msra.mxu0 0
        %1866 = vmatprep.subr.bf16.mxu0 0
        %1867 = vmatpush1.bf16.xpose.msra.mxu0 0
        %1868 = vmatprep.subr.bf16.mxu0 0
        %1869 = vmatpush1.bf16.xpose.msra.mxu0 0
        %1870 = vmatprep.mubr.bf16.mxu0 0
        %1871 = vmatmul.mubr.bf16.gmra.mrb[0].mxu0 %v1833
        %v1872 = vpop.f32.mrb[0].mxu0
        %v1873 = vadd.f32 0.0, %v1872
        %v1874 = vpop.f32.mrb[0].mxu0
        %v1875 = vpop.f32.mrb[0].mxu0
        %v1876 = vpop.f32.mrb[0].mxu0
        %1877 = vdwg.mxu0
        %v1879 = vsel %vm1831, %v1218, 0
        %v1882 = vsel %vm1831, %v1522, 0
        %1884 = vmatprep.subr.bf16.mxu0 0
        %1885 = vmatpush1.bf16.xpose.msra.mxu0 %v1882
        %1886 = vmatprep.subr.bf16.mxu0 0
        %1887 = vmatpush1.bf16.xpose.msra.mxu0 0
        %1888 = vmatprep.subr.bf16.mxu0 0
        %1889 = vmatpush1.bf16.xpose.msra.mxu0 0
        %1890 = vmatprep.subr.bf16.mxu0 0
        %1891 = vmatpush1.bf16.xpose.msra.mxu0 0
        %1892 = vmatprep.subr.bf16.mxu0 0
        %1893 = vmatpush1.bf16.xpose.msra.mxu0 0
        %1894 = vmatprep.subr.bf16.mxu0 0
        %1895 = vmatpush1.bf16.xpose.msra.mxu0 0
        %1896 = vmatprep.subr.bf16.mxu0 0
        %1897 = vmatpush1.bf16.xpose.msra.mxu0 0
        %1898 = vmatprep.subr.bf16.mxu0 0
        %1899 = vmatpush1.bf16.xpose.msra.mxu0 0
        %1900 = vmatprep.subr.bf16.mxu0 0
        %1901 = vmatpush1.bf16.xpose.msra.mxu0 0
        %1902 = vmatprep.subr.bf16.mxu0 0
        %1903 = vmatpush1.bf16.xpose.msra.mxu0 0
        %1904 = vmatprep.subr.bf16.mxu0 0
        %1905 = vmatpush1.bf16.xpose.msra.mxu0 0
        %1906 = vmatprep.subr.bf16.mxu0 0
        %1907 = vmatpush1.bf16.xpose.msra.mxu0 0
        %1908 = vmatprep.subr.bf16.mxu0 0
        %1909 = vmatpush1.bf16.xpose.msra.mxu0 0
        %1910 = vmatprep.subr.bf16.mxu0 0
        %1911 = vmatpush1.bf16.xpose.msra.mxu0 0
        %1912 = vmatprep.subr.bf16.mxu0 0
        %1913 = vmatpush1.bf16.xpose.msra.mxu0 0
        %1914 = vmatprep.subr.bf16.mxu0 0
        %1915 = vmatpush1.bf16.xpose.msra.mxu0 0
        %1916 = vmatprep.mubr.bf16.mxu0 0
        %1917 = vmatmul.mubr.bf16.gmra.mrb[0].mxu0 %v1879
        %v1918 = vpop.f32.mrb[0].mxu0
        %v1919 = vadd.f32 0.0, %v1918
        %v1920 = vpop.f32.mrb[0].mxu0
        %v1921 = vpop.f32.mrb[0].mxu0
        %v1922 = vpop.f32.mrb[0].mxu0
        %1923 = vdwg.mxu0
        %v1925 = vsel %vm1831, %v1219, 0
        %v1928 = vsel %vm1831, %v1523, 0
        %1930 = vmatprep.subr.bf16.mxu0 0
        %1931 = vmatpush1.bf16.xpose.msra.mxu0 %v1928
        %1932 = vmatprep.subr.bf16.mxu0 0
        %1933 = vmatpush1.bf16.xpose.msra.mxu0 0
        %1934 = vmatprep.subr.bf16.mxu0 0
        %1935 = vmatpush1.bf16.xpose.msra.mxu0 0
        %1936 = vmatprep.subr.bf16.mxu0 0
        %1937 = vmatpush1.bf16.xpose.msra.mxu0 0
        %1938 = vmatprep.subr.bf16.mxu0 0
        %1939 = vmatpush1.bf16.xpose.msra.mxu0 0
        %1940 = vmatprep.subr.bf16.mxu0 0
        %1941 = vmatpush1.bf16.xpose.msra.mxu0 0
        %1942 = vmatprep.subr.bf16.mxu0 0
        %1943 = vmatpush1.bf16.xpose.msra.mxu0 0
        %1944 = vmatprep.subr.bf16.mxu0 0
        %1945 = vmatpush1.bf16.xpose.msra.mxu0 0
        %1946 = vmatprep.subr.bf16.mxu0 0
        %1947 = vmatpush1.bf16.xpose.msra.mxu0 0
        %1948 = vmatprep.subr.bf16.mxu0 0
        %1949 = vmatpush1.bf16.xpose.msra.mxu0 0
        %1950 = vmatprep.subr.bf16.mxu0 0
        %1951 = vmatpush1.bf16.xpose.msra.mxu0 0
        %1952 = vmatprep.subr.bf16.mxu0 0
        %1953 = vmatpush1.bf16.xpose.msra.mxu0 0
        %1954 = vmatprep.subr.bf16.mxu0 0
        %1955 = vmatpush1.bf16.xpose.msra.mxu0 0
        %1956 = vmatprep.subr.bf16.mxu0 0
        %1957 = vmatpush1.bf16.xpose.msra.mxu0 0
        %1958 = vmatprep.subr.bf16.mxu0 0
        %1959 = vmatpush1.bf16.xpose.msra.mxu0 0
        %1960 = vmatprep.subr.bf16.mxu0 0
        %1961 = vmatpush1.bf16.xpose.msra.mxu0 0
        %1962 = vmatprep.mubr.bf16.mxu0 0
        %1963 = vmatmul.mubr.bf16.gmra.mrb[0].mxu0 %v1925
        %v1964 = vpop.f32.mrb[0].mxu0
        %v1965 = vadd.f32 0.0, %v1964
        %v1966 = vpop.f32.mrb[0].mxu0
        %v1967 = vpop.f32.mrb[0].mxu0
        %v1968 = vpop.f32.mrb[0].mxu0
        %1969 = vdwg.mxu0
        %v1971 = vsel %vm1831, %v1220, 0
        %v1974 = vsel %vm1831, %v1524, 0
        %1976 = vmatprep.subr.bf16.mxu0 0
        %1977 = vmatpush1.bf16.xpose.msra.mxu0 %v1974
        %1978 = vmatprep.subr.bf16.mxu0 0
        %1979 = vmatpush1.bf16.xpose.msra.mxu0 0
        %1980 = vmatprep.subr.bf16.mxu0 0
        %1981 = vmatpush1.bf16.xpose.msra.mxu0 0
        %1982 = vmatprep.subr.bf16.mxu0 0
        %1983 = vmatpush1.bf16.xpose.msra.mxu0 0
        %1984 = vmatprep.subr.bf16.mxu0 0
        %1985 = vmatpush1.bf16.xpose.msra.mxu0 0
        %1986 = vmatprep.subr.bf16.mxu0 0
        %1987 = vmatpush1.bf16.xpose.msra.mxu0 0
        %1988 = vmatprep.subr.bf16.mxu0 0
        %1989 = vmatpush1.bf16.xpose.msra.mxu0 0
        %1990 = vmatprep.subr.bf16.mxu0 0
        %1991 = vmatpush1.bf16.xpose.msra.mxu0 0
        %1992 = vmatprep.subr.bf16.mxu0 0
        %1993 = vmatpush1.bf16.xpose.msra.mxu0 0
        %1994 = vmatprep.subr.bf16.mxu0 0
        %1995 = vmatpush1.bf16.xpose.msra.mxu0 0
        %1996 = vmatprep.subr.bf16.mxu0 0
        %1997 = vmatpush1.bf16.xpose.msra.mxu0 0
        %1998 = vmatprep.subr.bf16.mxu0 0
        %1999 = vmatpush1.bf16.xpose.msra.mxu0 0
        %2000 = vmatprep.subr.bf16.mxu0 0
        %2001 = vmatpush1.bf16.xpose.msra.mxu0 0
        %2002 = vmatprep.subr.bf16.mxu0 0
        %2003 = vmatpush1.bf16.xpose.msra.mxu0 0
        %2004 = vmatprep.subr.bf16.mxu0 0
        %2005 = vmatpush1.bf16.xpose.msra.mxu0 0
        %2006 = vmatprep.subr.bf16.mxu0 0
        %2007 = vmatpush1.bf16.xpose.msra.mxu0 0
        %2008 = vmatprep.mubr.bf16.mxu0 0
        %2009 = vmatmul.mubr.bf16.gmra.mrb[0].mxu0 %v1971
        %v2010 = vpop.f32.mrb[0].mxu0
        %v2011 = vadd.f32 0.0, %v2010
        %v2012 = vpop.f32.mrb[0].mxu0
        %v2013 = vpop.f32.mrb[0].mxu0
        %v2014 = vpop.f32.mrb[0].mxu0
        %2015 = vdwg.mxu0
        %v2017 = vsel %vm1831, %v1221, 0
        %v2020 = vsel %vm1831, %v1525, 0
        %2022 = vmatprep.subr.bf16.mxu0 0
        %2023 = vmatpush1.bf16.xpose.msra.mxu0 %v2020
        %2024 = vmatprep.subr.bf16.mxu0 0
        %2025 = vmatpush1.bf16.xpose.msra.mxu0 0
        %2026 = vmatprep.subr.bf16.mxu0 0
        %2027 = vmatpush1.bf16.xpose.msra.mxu0 0
        %2028 = vmatprep.subr.bf16.mxu0 0
        %2029 = vmatpush1.bf16.xpose.msra.mxu0 0
        %2030 = vmatprep.subr.bf16.mxu0 0
        %2031 = vmatpush1.bf16.xpose.msra.mxu0 0
        %2032 = vmatprep.subr.bf16.mxu0 0
        %2033 = vmatpush1.bf16.xpose.msra.mxu0 0
        %2034 = vmatprep.subr.bf16.mxu0 0
        %2035 = vmatpush1.bf16.xpose.msra.mxu0 0
        %2036 = vmatprep.subr.bf16.mxu0 0
        %2037 = vmatpush1.bf16.xpose.msra.mxu0 0
        %2038 = vmatprep.subr.bf16.mxu0 0
        %2039 = vmatpush1.bf16.xpose.msra.mxu0 0
        %2040 = vmatprep.subr.bf16.mxu0 0
        %2041 = vmatpush1.bf16.xpose.msra.mxu0 0
        %2042 = vmatprep.subr.bf16.mxu0 0
        %2043 = vmatpush1.bf16.xpose.msra.mxu0 0
        %2044 = vmatprep.subr.bf16.mxu0 0
        %2045 = vmatpush1.bf16.xpose.msra.mxu0 0
        %2046 = vmatprep.subr.bf16.mxu0 0
        %2047 = vmatpush1.bf16.xpose.msra.mxu0 0
        %2048 = vmatprep.subr.bf16.mxu0 0
        %2049 = vmatpush1.bf16.xpose.msra.mxu0 0
        %2050 = vmatprep.subr.bf16.mxu0 0
        %2051 = vmatpush1.bf16.xpose.msra.mxu0 0
        %2052 = vmatprep.subr.bf16.mxu0 0
        %2053 = vmatpush1.bf16.xpose.msra.mxu0 0
        %2054 = vmatprep.mubr.bf16.mxu0 0
        %2055 = vmatmul.mubr.bf16.gmra.mrb[0].mxu0 %v2017
        %v2056 = vpop.f32.mrb[0].mxu0
        %v2057 = vadd.f32 0.0, %v2056
        %v2058 = vpop.f32.mrb[0].mxu0
        %v2059 = vpop.f32.mrb[0].mxu0
        %v2060 = vpop.f32.mrb[0].mxu0
        %2061 = vdwg.mxu0
        %v2063 = vsel %vm1831, %v1222, 0
        %v2066 = vsel %vm1831, %v1526, 0
        %2068 = vmatprep.subr.bf16.mxu0 0
        %2069 = vmatpush1.bf16.xpose.msra.mxu0 %v2066
        %2070 = vmatprep.subr.bf16.mxu0 0
        %2071 = vmatpush1.bf16.xpose.msra.mxu0 0
        %2072 = vmatprep.subr.bf16.mxu0 0
        %2073 = vmatpush1.bf16.xpose.msra.mxu0 0
        %2074 = vmatprep.subr.bf16.mxu0 0
        %2075 = vmatpush1.bf16.xpose.msra.mxu0 0
        %2076 = vmatprep.subr.bf16.mxu0 0
        %2077 = vmatpush1.bf16.xpose.msra.mxu0 0
        %2078 = vmatprep.subr.bf16.mxu0 0
        %2079 = vmatpush1.bf16.xpose.msra.mxu0 0
        %2080 = vmatprep.subr.bf16.mxu0 0
        %2081 = vmatpush1.bf16.xpose.msra.mxu0 0
        %2082 = vmatprep.subr.bf16.mxu0 0
        %2083 = vmatpush1.bf16.xpose.msra.mxu0 0
        %2084 = vmatprep.subr.bf16.mxu0 0
        %2085 = vmatpush1.bf16.xpose.msra.mxu0 0
        %2086 = vmatprep.subr.bf16.mxu0 0
        %2087 = vmatpush1.bf16.xpose.msra.mxu0 0
        %2088 = vmatprep.subr.bf16.mxu0 0
        %2089 = vmatpush1.bf16.xpose.msra.mxu0 0
        %2090 = vmatprep.subr.bf16.mxu0 0
        %2091 = vmatpush1.bf16.xpose.msra.mxu0 0
        %2092 = vmatprep.subr.bf16.mxu0 0
        %2093 = vmatpush1.bf16.xpose.msra.mxu0 0
        %2094 = vmatprep.subr.bf16.mxu0 0
        %2095 = vmatpush1.bf16.xpose.msra.mxu0 0
        %2096 = vmatprep.subr.bf16.mxu0 0
        %2097 = vmatpush1.bf16.xpose.msra.mxu0 0
        %2098 = vmatprep.subr.bf16.mxu0 0
        %2099 = vmatpush1.bf16.xpose.msra.mxu0 0
        %2100 = vmatprep.mubr.bf16.mxu0 0
        %2101 = vmatmul.mubr.bf16.gmra.mrb[0].mxu0 %v2063
        %v2102 = vpop.f32.mrb[0].mxu0
        %v2103 = vadd.f32 0.0, %v2102
        %v2104 = vpop.f32.mrb[0].mxu0
        %v2105 = vpop.f32.mrb[0].mxu0
        %v2106 = vpop.f32.mrb[0].mxu0
        %2107 = vdwg.mxu0
        %v2109 = vsel %vm1831, %v1223, 0
        %v2112 = vsel %vm1831, %v1527, 0
        %2114 = vmatprep.subr.bf16.mxu0 0
        %2115 = vmatpush1.bf16.xpose.msra.mxu0 %v2112
        %2116 = vmatprep.subr.bf16.mxu0 0
        %2117 = vmatpush1.bf16.xpose.msra.mxu0 0
        %2118 = vmatprep.subr.bf16.mxu0 0
        %2119 = vmatpush1.bf16.xpose.msra.mxu0 0
        %2120 = vmatprep.subr.bf16.mxu0 0
        %2121 = vmatpush1.bf16.xpose.msra.mxu0 0
        %2122 = vmatprep.subr.bf16.mxu0 0
        %2123 = vmatpush1.bf16.xpose.msra.mxu0 0
        %2124 = vmatprep.subr.bf16.mxu0 0
        %2125 = vmatpush1.bf16.xpose.msra.mxu0 0
        %2126 = vmatprep.subr.bf16.mxu0 0
        %2127 = vmatpush1.bf16.xpose.msra.mxu0 0
        %2128 = vmatprep.subr.bf16.mxu0 0
        %2129 = vmatpush1.bf16.xpose.msra.mxu0 0
        %2130 = vmatprep.subr.bf16.mxu0 0
        %2131 = vmatpush1.bf16.xpose.msra.mxu0 0
        %2132 = vmatprep.subr.bf16.mxu0 0
        %2133 = vmatpush1.bf16.xpose.msra.mxu0 0
        %2134 = vmatprep.subr.bf16.mxu0 0
        %2135 = vmatpush1.bf16.xpose.msra.mxu0 0
        %2136 = vmatprep.subr.bf16.mxu0 0
        %2137 = vmatpush1.bf16.xpose.msra.mxu0 0
        %2138 = vmatprep.subr.bf16.mxu0 0
        %2139 = vmatpush1.bf16.xpose.msra.mxu0 0
        %2140 = vmatprep.subr.bf16.mxu0 0
        %2141 = vmatpush1.bf16.xpose.msra.mxu0 0
        %2142 = vmatprep.subr.bf16.mxu0 0
        %2143 = vmatpush1.bf16.xpose.msra.mxu0 0
        %2144 = vmatprep.subr.bf16.mxu0 0
        %2145 = vmatpush1.bf16.xpose.msra.mxu0 0
        %2146 = vmatprep.mubr.bf16.mxu0 0
        %2147 = vmatmul.mubr.bf16.gmra.mrb[0].mxu0 %v2109
        %v2148 = vpop.f32.mrb[0].mxu0
        %v2149 = vadd.f32 0.0, %v2148
        %v2150 = vpop.f32.mrb[0].mxu0
        %v2151 = vpop.f32.mrb[0].mxu0
        %v2152 = vpop.f32.mrb[0].mxu0
        %2153 = vdwg.mxu0
        %v2155 = vsel %vm1831, %v1224, 0
        %v2158 = vsel %vm1831, %v1528, 0
        %2160 = vmatprep.subr.bf16.mxu0 0
        %2161 = vmatpush1.bf16.xpose.msra.mxu0 %v2158
        %2162 = vmatprep.subr.bf16.mxu0 0
        %2163 = vmatpush1.bf16.xpose.msra.mxu0 0
        %2164 = vmatprep.subr.bf16.mxu0 0
        %2165 = vmatpush1.bf16.xpose.msra.mxu0 0
        %2166 = vmatprep.subr.bf16.mxu0 0
        %2167 = vmatpush1.bf16.xpose.msra.mxu0 0
        %2168 = vmatprep.subr.bf16.mxu0 0
        %2169 = vmatpush1.bf16.xpose.msra.mxu0 0
        %2170 = vmatprep.subr.bf16.mxu0 0
        %2171 = vmatpush1.bf16.xpose.msra.mxu0 0
        %2172 = vmatprep.subr.bf16.mxu0 0
        %2173 = vmatpush1.bf16.xpose.msra.mxu0 0
        %2174 = vmatprep.subr.bf16.mxu0 0
        %2175 = vmatpush1.bf16.xpose.msra.mxu0 0
        %2176 = vmatprep.subr.bf16.mxu0 0
        %2177 = vmatpush1.bf16.xpose.msra.mxu0 0
        %2178 = vmatprep.subr.bf16.mxu0 0
        %2179 = vmatpush1.bf16.xpose.msra.mxu0 0
        %2180 = vmatprep.subr.bf16.mxu0 0
        %2181 = vmatpush1.bf16.xpose.msra.mxu0 0
        %2182 = vmatprep.subr.bf16.mxu0 0
        %2183 = vmatpush1.bf16.xpose.msra.mxu0 0
        %2184 = vmatprep.subr.bf16.mxu0 0
        %2185 = vmatpush1.bf16.xpose.msra.mxu0 0
        %2186 = vmatprep.subr.bf16.mxu0 0
        %2187 = vmatpush1.bf16.xpose.msra.mxu0 0
        %2188 = vmatprep.subr.bf16.mxu0 0
        %2189 = vmatpush1.bf16.xpose.msra.mxu0 0
        %2190 = vmatprep.subr.bf16.mxu0 0
        %2191 = vmatpush1.bf16.xpose.msra.mxu0 0
        %2192 = vmatprep.mubr.bf16.mxu0 0
        %2193 = vmatmul.mubr.bf16.gmra.mrb[0].mxu0 %v2155
        %v2194 = vpop.f32.mrb[0].mxu0
        %v2195 = vadd.f32 0.0, %v2194
        %v2196 = vpop.f32.mrb[0].mxu0
        %v2197 = vpop.f32.mrb[0].mxu0
        %v2198 = vpop.f32.mrb[0].mxu0
        %2199 = vdwg.mxu0
        %v2200 = vsel %vm1831, %v1873, -inf
        %2201 = vmax.xlane.f32.xlu0 %v2200
        %v2202 = vpop.xlane.xlu0 %2201
        %v2203 = vsel %vm1831, %v1919, -inf
        %2204 = vmax.xlane.f32.xlu0 %v2203
        %v2205 = vpop.xlane.xlu0 %2204
        %v2206 = vsel %vm1831, %v1965, -inf
        %2207 = vmax.xlane.f32.xlu0 %v2206
        %v2208 = vpop.xlane.xlu0 %2207
        %v2209 = vsel %vm1831, %v2011, -inf
        %2210 = vmax.xlane.f32.xlu0 %v2209
        %v2211 = vpop.xlane.xlu0 %2210
        %v2212 = vsel %vm1831, %v2057, -inf
        %2213 = vmax.xlane.f32.xlu0 %v2212
        %v2214 = vpop.xlane.xlu0 %2213
        %v2215 = vsel %vm1831, %v2103, -inf
        %2216 = vmax.xlane.f32.xlu0 %v2215
        %v2217 = vpop.xlane.xlu0 %2216
        %v2218 = vsel %vm1831, %v2149, -inf
        %2219 = vmax.xlane.f32.xlu0 %v2218
        %v2220 = vpop.xlane.xlu0 %2219
        %v2221 = vsel %vm1831, %v2195, -inf
        %2222 = vmax.xlane.f32.xlu0 %v2221
        %v2223 = vpop.xlane.xlu0 %2222
        %v2224 = vsub.f32 %v1873, %v2202
        %v2225 = vsub.f32 %v1919, %v2205
        %v2226 = vsub.f32 %v1965, %v2208
        %v2227 = vsub.f32 %v2011, %v2211
        %v2228 = vsub.f32 %v2057, %v2214
        %v2229 = vsub.f32 %v2103, %v2217
        %v2230 = vsub.f32 %v2149, %v2220
        %v2231 = vsub.f32 %v2195, %v2223
        %v2232 = vmul.f32 %v2224, 1.442695
        %v2233 = vpow.pop %v2232
        %v2234 = vmul.f32 %v2225, 1.442695
        %v2235 = vpow.pop %v2234
        %v2236 = vmul.f32 %v2226, 1.442695
        %v2237 = vpow.pop %v2236
        %v2238 = vmul.f32 %v2227, 1.442695
        %v2239 = vpow.pop %v2238
        %v2240 = vmul.f32 %v2228, 1.442695
        %v2241 = vpow.pop %v2240
        %v2242 = vmul.f32 %v2229, 1.442695
        %v2243 = vpow.pop %v2242
        %v2244 = vmul.f32 %v2230, 1.442695
        %v2245 = vpow.pop %v2244
        %v2246 = vmul.f32 %v2231, 1.442695
        %v2247 = vpow.pop %v2246
        %v2248 = vsel %vm1831, %v2233, 0.0
        %2249 = vadd.xlane.f32.xlu0 %v2248
        %v2250 = vpop.xlane.xlu0 %2249
        %v2251 = vsel %vm1831, %v2235, 0.0
        %2252 = vadd.xlane.f32.xlu0 %v2251
        %v2253 = vpop.xlane.xlu0 %2252
        %v2254 = vsel %vm1831, %v2237, 0.0
        %2255 = vadd.xlane.f32.xlu0 %v2254
        %v2256 = vpop.xlane.xlu0 %2255
        %v2257 = vsel %vm1831, %v2239, 0.0
        %2258 = vadd.xlane.f32.xlu0 %v2257
        %v2259 = vpop.xlane.xlu0 %2258
        %v2260 = vsel %vm1831, %v2241, 0.0
        %2261 = vadd.xlane.f32.xlu0 %v2260
        %v2262 = vpop.xlane.xlu0 %2261
        %v2263 = vsel %vm1831, %v2243, 0.0
        %2264 = vadd.xlane.f32.xlu0 %v2263
        %v2265 = vpop.xlane.xlu0 %2264
        %v2266 = vsel %vm1831, %v2245, 0.0
        %2267 = vadd.xlane.f32.xlu0 %v2266
        %v2268 = vpop.xlane.xlu0 %2267
        %v2269 = vsel %vm1831, %v2247, 0.0
        %2270 = vadd.xlane.f32.xlu0 %v2269
        %v2271 = vpop.xlane.xlu0 %2270
        %v2272 = vrcp.pop %v2250
        %v2273 = vmul.f32 %v2233, %v2272
        %v2274 = vrcp.pop %v2253
        %v2275 = vmul.f32 %v2235, %v2274
        %v2276 = vrcp.pop %v2256
        %v2277 = vmul.f32 %v2237, %v2276
        %v2278 = vrcp.pop %v2259
        %v2279 = vmul.f32 %v2239, %v2278
        %v2280 = vrcp.pop %v2262
        %v2281 = vmul.f32 %v2241, %v2280
        %v2282 = vrcp.pop %v2265
        %v2283 = vmul.f32 %v2243, %v2282
        %v2284 = vrcp.pop %v2268
        %v2285 = vmul.f32 %v2245, %v2284
        %v2286 = vrcp.pop %v2271
        %v2287 = vmul.f32 %v2247, %v2286
        %v2288 = vpack.c.bf16 %v2273, %v2273
        %v2289 = vpack.c.bf16 %v2275, %v2275
        %v2290 = vpack.c.bf16 %v2277, %v2277
        %v2291 = vpack.c.bf16 %v2279, %v2279
        %v2292 = vpack.c.bf16 %v2281, %v2281
        %v2293 = vpack.c.bf16 %v2283, %v2283
        %v2294 = vpack.c.bf16 %v2285, %v2285
        %v2295 = vpack.c.bf16 %v2287, %v2287
        %v2297 = vsel %vm1831, %v2288, 0
        %vm2299 = vcmask 1043456
        %v2301 = vsel %vm2299, %v1823, 0
        %2303 = vmatprep.subr.bf16.mxu0 0
        %2304 = vmatpush1.bf16.msra.mxu0 %v2301
        %2305 = vmatprep.subr.bf16.mxu0 0
        %2306 = vmatpush1.bf16.msra.mxu0 0
        %2307 = vmatprep.subr.bf16.mxu0 0
        %2308 = vmatpush1.bf16.msra.mxu0 0
        %2309 = vmatprep.subr.bf16.mxu0 0
        %2310 = vmatpush1.bf16.msra.mxu0 0
        %2311 = vmatprep.subr.bf16.mxu0 0
        %2312 = vmatpush1.bf16.msra.mxu0 0
        %2313 = vmatprep.subr.bf16.mxu0 0
        %2314 = vmatpush1.bf16.msra.mxu0 0
        %2315 = vmatprep.subr.bf16.mxu0 0
        %2316 = vmatpush1.bf16.msra.mxu0 0
        %2317 = vmatprep.subr.bf16.mxu0 0
        %2318 = vmatpush1.bf16.msra.mxu0 0
        %2319 = vmatprep.subr.bf16.mxu0 0
        %2320 = vmatpush1.bf16.msra.mxu0 0
        %2321 = vmatprep.subr.bf16.mxu0 0
        %2322 = vmatpush1.bf16.msra.mxu0 0
        %2323 = vmatprep.subr.bf16.mxu0 0
        %2324 = vmatpush1.bf16.msra.mxu0 0
        %2325 = vmatprep.subr.bf16.mxu0 0
        %2326 = vmatpush1.bf16.msra.mxu0 0
        %2327 = vmatprep.subr.bf16.mxu0 0
        %2328 = vmatpush1.bf16.msra.mxu0 0
        %2329 = vmatprep.subr.bf16.mxu0 0
        %2330 = vmatpush1.bf16.msra.mxu0 0
        %2331 = vmatprep.subr.bf16.mxu0 0
        %2332 = vmatpush1.bf16.msra.mxu0 0
        %2333 = vmatprep.subr.bf16.mxu0 0
        %2334 = vmatpush1.bf16.msra.mxu0 0
        %2335 = vmatprep.mubr.bf16.mxu0 0
        %2336 = vmatmul.mubr.bf16.gmra.mrb[0].mxu0 %v2297
        %v2337 = vpop.f32.mrb[0].mxu0
        %v2338 = vadd.f32 0.0, %v2337
        %v2339 = vpop.f32.mrb[0].mxu0
        %v2340 = vpop.f32.mrb[0].mxu0
        %v2341 = vpop.f32.mrb[0].mxu0
        %2342 = vdwg.mxu0
        %v2344 = vsel %vm1831, %v2289, 0
        %v2347 = vsel %vm2299, %v1824, 0
        %2349 = vmatprep.subr.bf16.mxu0 0
        %2350 = vmatpush1.bf16.msra.mxu0 %v2347
        %2351 = vmatprep.subr.bf16.mxu0 0
        %2352 = vmatpush1.bf16.msra.mxu0 0
        %2353 = vmatprep.subr.bf16.mxu0 0
        %2354 = vmatpush1.bf16.msra.mxu0 0
        %2355 = vmatprep.subr.bf16.mxu0 0
        %2356 = vmatpush1.bf16.msra.mxu0 0
        %2357 = vmatprep.subr.bf16.mxu0 0
        %2358 = vmatpush1.bf16.msra.mxu0 0
        %2359 = vmatprep.subr.bf16.mxu0 0
        %2360 = vmatpush1.bf16.msra.mxu0 0
        %2361 = vmatprep.subr.bf16.mxu0 0
        %2362 = vmatpush1.bf16.msra.mxu0 0
        %2363 = vmatprep.subr.bf16.mxu0 0
        %2364 = vmatpush1.bf16.msra.mxu0 0
        %2365 = vmatprep.subr.bf16.mxu0 0
        %2366 = vmatpush1.bf16.msra.mxu0 0
        %2367 = vmatprep.subr.bf16.mxu0 0
        %2368 = vmatpush1.bf16.msra.mxu0 0
        %2369 = vmatprep.subr.bf16.mxu0 0
        %2370 = vmatpush1.bf16.msra.mxu0 0
        %2371 = vmatprep.subr.bf16.mxu0 0
        %2372 = vmatpush1.bf16.msra.mxu0 0
        %2373 = vmatprep.subr.bf16.mxu0 0
        %2374 = vmatpush1.bf16.msra.mxu0 0
        %2375 = vmatprep.subr.bf16.mxu0 0
        %2376 = vmatpush1.bf16.msra.mxu0 0
        %2377 = vmatprep.subr.bf16.mxu0 0
        %2378 = vmatpush1.bf16.msra.mxu0 0
        %2379 = vmatprep.subr.bf16.mxu0 0
        %2380 = vmatpush1.bf16.msra.mxu0 0
        %2381 = vmatprep.mubr.bf16.mxu0 0
        %2382 = vmatmul.mubr.bf16.gmra.mrb[0].mxu0 %v2344
        %v2383 = vpop.f32.mrb[0].mxu0
        %v2384 = vadd.f32 0.0, %v2383
        %v2385 = vpop.f32.mrb[0].mxu0
        %v2386 = vpop.f32.mrb[0].mxu0
        %v2387 = vpop.f32.mrb[0].mxu0
        %2388 = vdwg.mxu0
        %v2390 = vsel %vm1831, %v2290, 0
        %v2393 = vsel %vm2299, %v1825, 0
        %2395 = vmatprep.subr.bf16.mxu0 0
        %2396 = vmatpush1.bf16.msra.mxu0 %v2393
        %2397 = vmatprep.subr.bf16.mxu0 0
        %2398 = vmatpush1.bf16.msra.mxu0 0
        %2399 = vmatprep.subr.bf16.mxu0 0
        %2400 = vmatpush1.bf16.msra.mxu0 0
        %2401 = vmatprep.subr.bf16.mxu0 0
        %2402 = vmatpush1.bf16.msra.mxu0 0
        %2403 = vmatprep.subr.bf16.mxu0 0
        %2404 = vmatpush1.bf16.msra.mxu0 0
        %2405 = vmatprep.subr.bf16.mxu0 0
        %2406 = vmatpush1.bf16.msra.mxu0 0
        %2407 = vmatprep.subr.bf16.mxu0 0
        %2408 = vmatpush1.bf16.msra.mxu0 0
        %2409 = vmatprep.subr.bf16.mxu0 0
        %2410 = vmatpush1.bf16.msra.mxu0 0
        %2411 = vmatprep.subr.bf16.mxu0 0
        %2412 = vmatpush1.bf16.msra.mxu0 0
        %2413 = vmatprep.subr.bf16.mxu0 0
        %2414 = vmatpush1.bf16.msra.mxu0 0
        %2415 = vmatprep.subr.bf16.mxu0 0
        %2416 = vmatpush1.bf16.msra.mxu0 0
        %2417 = vmatprep.subr.bf16.mxu0 0
        %2418 = vmatpush1.bf16.msra.mxu0 0
        %2419 = vmatprep.subr.bf16.mxu0 0
        %2420 = vmatpush1.bf16.msra.mxu0 0
        %2421 = vmatprep.subr.bf16.mxu0 0
        %2422 = vmatpush1.bf16.msra.mxu0 0
        %2423 = vmatprep.subr.bf16.mxu0 0
        %2424 = vmatpush1.bf16.msra.mxu0 0
        %2425 = vmatprep.subr.bf16.mxu0 0
        %2426 = vmatpush1.bf16.msra.mxu0 0
        %2427 = vmatprep.mubr.bf16.mxu0 0
        %2428 = vmatmul.mubr.bf16.gmra.mrb[0].mxu0 %v2390
        %v2429 = vpop.f32.mrb[0].mxu0
        %v2430 = vadd.f32 0.0, %v2429
        %v2431 = vpop.f32.mrb[0].mxu0
        %v2432 = vpop.f32.mrb[0].mxu0
        %v2433 = vpop.f32.mrb[0].mxu0
        %2434 = vdwg.mxu0
        %v2436 = vsel %vm1831, %v2291, 0
        %v2439 = vsel %vm2299, %v1826, 0
        %2441 = vmatprep.subr.bf16.mxu0 0
        %2442 = vmatpush1.bf16.msra.mxu0 %v2439
        %2443 = vmatprep.subr.bf16.mxu0 0
        %2444 = vmatpush1.bf16.msra.mxu0 0
        %2445 = vmatprep.subr.bf16.mxu0 0
        %2446 = vmatpush1.bf16.msra.mxu0 0
        %2447 = vmatprep.subr.bf16.mxu0 0
        %2448 = vmatpush1.bf16.msra.mxu0 0
        %2449 = vmatprep.subr.bf16.mxu0 0
        %2450 = vmatpush1.bf16.msra.mxu0 0
        %2451 = vmatprep.subr.bf16.mxu0 0
        %2452 = vmatpush1.bf16.msra.mxu0 0
        %2453 = vmatprep.subr.bf16.mxu0 0
        %2454 = vmatpush1.bf16.msra.mxu0 0
        %2455 = vmatprep.subr.bf16.mxu0 0
        %2456 = vmatpush1.bf16.msra.mxu0 0
        %2457 = vmatprep.subr.bf16.mxu0 0
        %2458 = vmatpush1.bf16.msra.mxu0 0
        %2459 = vmatprep.subr.bf16.mxu0 0
        %2460 = vmatpush1.bf16.msra.mxu0 0
        %2461 = vmatprep.subr.bf16.mxu0 0
        %2462 = vmatpush1.bf16.msra.mxu0 0
        %2463 = vmatprep.subr.bf16.mxu0 0
        %2464 = vmatpush1.bf16.msra.mxu0 0
        %2465 = vmatprep.subr.bf16.mxu0 0
        %2466 = vmatpush1.bf16.msra.mxu0 0
        %2467 = vmatprep.subr.bf16.mxu0 0
        %2468 = vmatpush1.bf16.msra.mxu0 0
        %2469 = vmatprep.subr.bf16.mxu0 0
        %2470 = vmatpush1.bf16.msra.mxu0 0
        %2471 = vmatprep.subr.bf16.mxu0 0
        %2472 = vmatpush1.bf16.msra.mxu0 0
        %2473 = vmatprep.mubr.bf16.mxu0 0
        %2474 = vmatmul.mubr.bf16.gmra.mrb[0].mxu0 %v2436
        %v2475 = vpop.f32.mrb[0].mxu0
        %v2476 = vadd.f32 0.0, %v2475
        %v2477 = vpop.f32.mrb[0].mxu0
        %v2478 = vpop.f32.mrb[0].mxu0
        %v2479 = vpop.f32.mrb[0].mxu0
        %2480 = vdwg.mxu0
        %v2482 = vsel %vm1831, %v2292, 0
        %v2485 = vsel %vm2299, %v1827, 0
        %2487 = vmatprep.subr.bf16.mxu0 0
        %2488 = vmatpush1.bf16.msra.mxu0 %v2485
        %2489 = vmatprep.subr.bf16.mxu0 0
        %2490 = vmatpush1.bf16.msra.mxu0 0
        %2491 = vmatprep.subr.bf16.mxu0 0
        %2492 = vmatpush1.bf16.msra.mxu0 0
        %2493 = vmatprep.subr.bf16.mxu0 0
        %2494 = vmatpush1.bf16.msra.mxu0 0
        %2495 = vmatprep.subr.bf16.mxu0 0
        %2496 = vmatpush1.bf16.msra.mxu0 0
        %2497 = vmatprep.subr.bf16.mxu0 0
        %2498 = vmatpush1.bf16.msra.mxu0 0
        %2499 = vmatprep.subr.bf16.mxu0 0
        %2500 = vmatpush1.bf16.msra.mxu0 0
        %2501 = vmatprep.subr.bf16.mxu0 0
        %2502 = vmatpush1.bf16.msra.mxu0 0
        %2503 = vmatprep.subr.bf16.mxu0 0
        %2504 = vmatpush1.bf16.msra.mxu0 0
        %2505 = vmatprep.subr.bf16.mxu0 0
        %2506 = vmatpush1.bf16.msra.mxu0 0
        %2507 = vmatprep.subr.bf16.mxu0 0
        %2508 = vmatpush1.bf16.msra.mxu0 0
        %2509 = vmatprep.subr.bf16.mxu0 0
        %2510 = vmatpush1.bf16.msra.mxu0 0
        %2511 = vmatprep.subr.bf16.mxu0 0
        %2512 = vmatpush1.bf16.msra.mxu0 0
        %2513 = vmatprep.subr.bf16.mxu0 0
        %2514 = vmatpush1.bf16.msra.mxu0 0
        %2515 = vmatprep.subr.bf16.mxu0 0
        %2516 = vmatpush1.bf16.msra.mxu0 0
        %2517 = vmatprep.subr.bf16.mxu0 0
        %2518 = vmatpush1.bf16.msra.mxu0 0
        %2519 = vmatprep.mubr.bf16.mxu0 0
        %2520 = vmatmul.mubr.bf16.gmra.mrb[0].mxu0 %v2482
        %v2521 = vpop.f32.mrb[0].mxu0
        %v2522 = vadd.f32 0.0, %v2521
        %v2523 = vpop.f32.mrb[0].mxu0
        %v2524 = vpop.f32.mrb[0].mxu0
        %v2525 = vpop.f32.mrb[0].mxu0
        %2526 = vdwg.mxu0
        %v2528 = vsel %vm1831, %v2293, 0
        %v2531 = vsel %vm2299, %v1828, 0
        %2533 = vmatprep.subr.bf16.mxu0 0
        %2534 = vmatpush1.bf16.msra.mxu0 %v2531
        %2535 = vmatprep.subr.bf16.mxu0 0
        %2536 = vmatpush1.bf16.msra.mxu0 0
        %2537 = vmatprep.subr.bf16.mxu0 0
        %2538 = vmatpush1.bf16.msra.mxu0 0
        %2539 = vmatprep.subr.bf16.mxu0 0
        %2540 = vmatpush1.bf16.msra.mxu0 0
        %2541 = vmatprep.subr.bf16.mxu0 0
        %2542 = vmatpush1.bf16.msra.mxu0 0
        %2543 = vmatprep.subr.bf16.mxu0 0
        %2544 = vmatpush1.bf16.msra.mxu0 0
        %2545 = vmatprep.subr.bf16.mxu0 0
        %2546 = vmatpush1.bf16.msra.mxu0 0
        %2547 = vmatprep.subr.bf16.mxu0 0
        %2548 = vmatpush1.bf16.msra.mxu0 0
        %2549 = vmatprep.subr.bf16.mxu0 0
        %2550 = vmatpush1.bf16.msra.mxu0 0
        %2551 = vmatprep.subr.bf16.mxu0 0
        %2552 = vmatpush1.bf16.msra.mxu0 0
        %2553 = vmatprep.subr.bf16.mxu0 0
        %2554 = vmatpush1.bf16.msra.mxu0 0
        %2555 = vmatprep.subr.bf16.mxu0 0
        %2556 = vmatpush1.bf16.msra.mxu0 0
        %2557 = vmatprep.subr.bf16.mxu0 0
        %2558 = vmatpush1.bf16.msra.mxu0 0
        %2559 = vmatprep.subr.bf16.mxu0 0
        %2560 = vmatpush1.bf16.msra.mxu0 0
        %2561 = vmatprep.subr.bf16.mxu0 0
        %2562 = vmatpush1.bf16.msra.mxu0 0
        %2563 = vmatprep.subr.bf16.mxu0 0
        %2564 = vmatpush1.bf16.msra.mxu0 0
        %2565 = vmatprep.mubr.bf16.mxu0 0
        %2566 = vmatmul.mubr.bf16.gmra.mrb[0].mxu0 %v2528
        %v2567 = vpop.f32.mrb[0].mxu0
        %v2568 = vadd.f32 0.0, %v2567
        %v2569 = vpop.f32.mrb[0].mxu0
        %v2570 = vpop.f32.mrb[0].mxu0
        %v2571 = vpop.f32.mrb[0].mxu0
        %2572 = vdwg.mxu0
        %v2574 = vsel %vm1831, %v2294, 0
        %v2577 = vsel %vm2299, %v1829, 0
        %2579 = vmatprep.subr.bf16.mxu0 0
        %2580 = vmatpush1.bf16.msra.mxu0 %v2577
        %2581 = vmatprep.subr.bf16.mxu0 0
        %2582 = vmatpush1.bf16.msra.mxu0 0
        %2583 = vmatprep.subr.bf16.mxu0 0
        %2584 = vmatpush1.bf16.msra.mxu0 0
        %2585 = vmatprep.subr.bf16.mxu0 0
        %2586 = vmatpush1.bf16.msra.mxu0 0
        %2587 = vmatprep.subr.bf16.mxu0 0
        %2588 = vmatpush1.bf16.msra.mxu0 0
        %2589 = vmatprep.subr.bf16.mxu0 0
        %2590 = vmatpush1.bf16.msra.mxu0 0
        %2591 = vmatprep.subr.bf16.mxu0 0
        %2592 = vmatpush1.bf16.msra.mxu0 0
        %2593 = vmatprep.subr.bf16.mxu0 0
        %2594 = vmatpush1.bf16.msra.mxu0 0
        %2595 = vmatprep.subr.bf16.mxu0 0
        %2596 = vmatpush1.bf16.msra.mxu0 0
        %2597 = vmatprep.subr.bf16.mxu0 0
        %2598 = vmatpush1.bf16.msra.mxu0 0
        %2599 = vmatprep.subr.bf16.mxu0 0
        %2600 = vmatpush1.bf16.msra.mxu0 0
        %2601 = vmatprep.subr.bf16.mxu0 0
        %2602 = vmatpush1.bf16.msra.mxu0 0
        %2603 = vmatprep.subr.bf16.mxu0 0
        %2604 = vmatpush1.bf16.msra.mxu0 0
        %2605 = vmatprep.subr.bf16.mxu0 0
        %2606 = vmatpush1.bf16.msra.mxu0 0
        %2607 = vmatprep.subr.bf16.mxu0 0
        %2608 = vmatpush1.bf16.msra.mxu0 0
        %2609 = vmatprep.subr.bf16.mxu0 0
        %2610 = vmatpush1.bf16.msra.mxu0 0
        %2611 = vmatprep.mubr.bf16.mxu0 0
        %2612 = vmatmul.mubr.bf16.gmra.mrb[0].mxu0 %v2574
        %v2613 = vpop.f32.mrb[0].mxu0
        %v2614 = vadd.f32 0.0, %v2613
        %v2615 = vpop.f32.mrb[0].mxu0
        %v2616 = vpop.f32.mrb[0].mxu0
        %v2617 = vpop.f32.mrb[0].mxu0
        %2618 = vdwg.mxu0
        %v2620 = vsel %vm1831, %v2295, 0
        %v2623 = vsel %vm2299, %v1830, 0
        %2625 = vmatprep.subr.bf16.mxu0 0
        %2626 = vmatpush1.bf16.msra.mxu0 %v2623
        %2627 = vmatprep.subr.bf16.mxu0 0
        %2628 = vmatpush1.bf16.msra.mxu0 0
        %2629 = vmatprep.subr.bf16.mxu0 0
        %2630 = vmatpush1.bf16.msra.mxu0 0
        %2631 = vmatprep.subr.bf16.mxu0 0
        %2632 = vmatpush1.bf16.msra.mxu0 0
        %2633 = vmatprep.subr.bf16.mxu0 0
        %2634 = vmatpush1.bf16.msra.mxu0 0
        %2635 = vmatprep.subr.bf16.mxu0 0
        %2636 = vmatpush1.bf16.msra.mxu0 0
        %2637 = vmatprep.subr.bf16.mxu0 0
        %2638 = vmatpush1.bf16.msra.mxu0 0
        %2639 = vmatprep.subr.bf16.mxu0 0
        %2640 = vmatpush1.bf16.msra.mxu0 0
        %2641 = vmatprep.subr.bf16.mxu0 0
        %2642 = vmatpush1.bf16.msra.mxu0 0
        %2643 = vmatprep.subr.bf16.mxu0 0
        %2644 = vmatpush1.bf16.msra.mxu0 0
        %2645 = vmatprep.subr.bf16.mxu0 0
        %2646 = vmatpush1.bf16.msra.mxu0 0
        %2647 = vmatprep.subr.bf16.mxu0 0
        %2648 = vmatpush1.bf16.msra.mxu0 0
        %2649 = vmatprep.subr.bf16.mxu0 0
        %2650 = vmatpush1.bf16.msra.mxu0 0
        %2651 = vmatprep.subr.bf16.mxu0 0
        %2652 = vmatpush1.bf16.msra.mxu0 0
        %2653 = vmatprep.subr.bf16.mxu0 0
        %2654 = vmatpush1.bf16.msra.mxu0 0
        %2655 = vmatprep.subr.bf16.mxu0 0
        %2656 = vmatpush1.bf16.msra.mxu0 0
        %2657 = vmatprep.mubr.bf16.mxu0 0
        %2658 = vmatmul.mubr.bf16.gmra.mrb[0].mxu0 %v2620
        %v2659 = vpop.f32.mrb[0].mxu0
        %v2660 = vadd.f32 0.0, %v2659
        %v2661 = vpop.f32.mrb[0].mxu0
        %v2662 = vpop.f32.mrb[0].mxu0
        %v2663 = vpop.f32.mrb[0].mxu0
        %2664 = vdwg.mxu0
        %v2665 = vpack.c.bf16 %v2338, %v2338
        %v2666 = vpack.c.bf16 %v2384, %v2384
        %v2667 = vpack.c.bf16 %v2430, %v2430
        %v2668 = vpack.c.bf16 %v2476, %v2476
        %v2669 = vpack.c.bf16 %v2522, %v2522
        %v2670 = vpack.c.bf16 %v2568, %v2568
        %v2671 = vpack.c.bf16 %v2614, %v2614
        %v2672 = vpack.c.bf16 %v2660, %v2660
        %v2673 = vld [vmem:[%s8] sm:$0xf]
        %v2674 = vld [vmem:[%s8 + $0x4] sm:$0xf]
        %v2675 = vld [vmem:[%s8 + $0x8] sm:$0xf]
        %v2676 = vld [vmem:[%s8 + $0xc] sm:$0xf]
        %v2677 = vld [vmem:[%s8 + $0x10] sm:$0xf]
        %v2678 = vld [vmem:[%s8 + $0x14] sm:$0xf]
        %v2679 = vld [vmem:[%s8 + $0x18] sm:$0xf]
        %v2680 = vld [vmem:[%s8 + $0x1c] sm:$0xf]
        %v2682 = vsel %vm1831, %v2665, 0
        %v2685 = vsel %vm2299, %v2673, 0
        %2687 = vmatprep.subr.bf16.mxu0 0
        %2688 = vmatpush1.bf16.msra.mxu0 %v2685
        %2689 = vmatprep.subr.bf16.mxu0 0
        %2690 = vmatpush1.bf16.msra.mxu0 0
        %2691 = vmatprep.subr.bf16.mxu0 0
        %2692 = vmatpush1.bf16.msra.mxu0 0
        %2693 = vmatprep.subr.bf16.mxu0 0
        %2694 = vmatpush1.bf16.msra.mxu0 0
        %2695 = vmatprep.subr.bf16.mxu0 0
        %2696 = vmatpush1.bf16.msra.mxu0 0
        %2697 = vmatprep.subr.bf16.mxu0 0
        %2698 = vmatpush1.bf16.msra.mxu0 0
        %2699 = vmatprep.subr.bf16.mxu0 0
        %2700 = vmatpush1.bf16.msra.mxu0 0
        %2701 = vmatprep.subr.bf16.mxu0 0
        %2702 = vmatpush1.bf16.msra.mxu0 0
        %2703 = vmatprep.subr.bf16.mxu0 0
        %2704 = vmatpush1.bf16.msra.mxu0 0
        %2705 = vmatprep.subr.bf16.mxu0 0
        %2706 = vmatpush1.bf16.msra.mxu0 0
        %2707 = vmatprep.subr.bf16.mxu0 0
        %2708 = vmatpush1.bf16.msra.mxu0 0
        %2709 = vmatprep.subr.bf16.mxu0 0
        %2710 = vmatpush1.bf16.msra.mxu0 0
        %2711 = vmatprep.subr.bf16.mxu0 0
        %2712 = vmatpush1.bf16.msra.mxu0 0
        %2713 = vmatprep.subr.bf16.mxu0 0
        %2714 = vmatpush1.bf16.msra.mxu0 0
        %2715 = vmatprep.subr.bf16.mxu0 0
        %2716 = vmatpush1.bf16.msra.mxu0 0
        %2717 = vmatprep.subr.bf16.mxu0 0
        %2718 = vmatpush1.bf16.msra.mxu0 0
        %2719 = vmatprep.mubr.bf16.mxu0 0
        %2720 = vmatmul.mubr.bf16.gmra.mrb[0].mxu0 %v2682
        %v2721 = vpop.f32.mrb[0].mxu0
        %v2722 = vadd.f32 0.0, %v2721
        %v2723 = vpop.f32.mrb[0].mxu0
        %v2724 = vpop.f32.mrb[0].mxu0
        %v2725 = vpop.f32.mrb[0].mxu0
        %2726 = vdwg.mxu0
        %v2728 = vsel %vm1831, %v2666, 0
        %v2731 = vsel %vm2299, %v2674, 0
        %2733 = vmatprep.subr.bf16.mxu0 0
        %2734 = vmatpush1.bf16.msra.mxu0 %v2731
        %2735 = vmatprep.subr.bf16.mxu0 0
        %2736 = vmatpush1.bf16.msra.mxu0 0
        %2737 = vmatprep.subr.bf16.mxu0 0
        %2738 = vmatpush1.bf16.msra.mxu0 0
        %2739 = vmatprep.subr.bf16.mxu0 0
        %2740 = vmatpush1.bf16.msra.mxu0 0
        %2741 = vmatprep.subr.bf16.mxu0 0
        %2742 = vmatpush1.bf16.msra.mxu0 0
        %2743 = vmatprep.subr.bf16.mxu0 0
        %2744 = vmatpush1.bf16.msra.mxu0 0
        %2745 = vmatprep.subr.bf16.mxu0 0
        %2746 = vmatpush1.bf16.msra.mxu0 0
        %2747 = vmatprep.subr.bf16.mxu0 0
        %2748 = vmatpush1.bf16.msra.mxu0 0
        %2749 = vmatprep.subr.bf16.mxu0 0
        %2750 = vmatpush1.bf16.msra.mxu0 0
        %2751 = vmatprep.subr.bf16.mxu0 0
        %2752 = vmatpush1.bf16.msra.mxu0 0
        %2753 = vmatprep.subr.bf16.mxu0 0
        %2754 = vmatpush1.bf16.msra.mxu0 0
        %2755 = vmatprep.subr.bf16.mxu0 0
        %2756 = vmatpush1.bf16.msra.mxu0 0
        %2757 = vmatprep.subr.bf16.mxu0 0
        %2758 = vmatpush1.bf16.msra.mxu0 0
        %2759 = vmatprep.subr.bf16.mxu0 0
        %2760 = vmatpush1.bf16.msra.mxu0 0
        %2761 = vmatprep.subr.bf16.mxu0 0
        %2762 = vmatpush1.bf16.msra.mxu0 0
        %2763 = vmatprep.subr.bf16.mxu0 0
        %2764 = vmatpush1.bf16.msra.mxu0 0
        %2765 = vmatprep.mubr.bf16.mxu0 0
        %2766 = vmatmul.mubr.bf16.gmra.mrb[0].mxu0 %v2728
        %v2767 = vpop.f32.mrb[0].mxu0
        %v2768 = vadd.f32 0.0, %v2767
        %v2769 = vpop.f32.mrb[0].mxu0
        %v2770 = vpop.f32.mrb[0].mxu0
        %v2771 = vpop.f32.mrb[0].mxu0
        %2772 = vdwg.mxu0
        %v2774 = vsel %vm1831, %v2667, 0
        %v2777 = vsel %vm2299, %v2675, 0
        %2779 = vmatprep.subr.bf16.mxu0 0
        %2780 = vmatpush1.bf16.msra.mxu0 %v2777
        %2781 = vmatprep.subr.bf16.mxu0 0
        %2782 = vmatpush1.bf16.msra.mxu0 0
        %2783 = vmatprep.subr.bf16.mxu0 0
        %2784 = vmatpush1.bf16.msra.mxu0 0
        %2785 = vmatprep.subr.bf16.mxu0 0
        %2786 = vmatpush1.bf16.msra.mxu0 0
        %2787 = vmatprep.subr.bf16.mxu0 0
        %2788 = vmatpush1.bf16.msra.mxu0 0
        %2789 = vmatprep.subr.bf16.mxu0 0
        %2790 = vmatpush1.bf16.msra.mxu0 0
        %2791 = vmatprep.subr.bf16.mxu0 0
        %2792 = vmatpush1.bf16.msra.mxu0 0
        %2793 = vmatprep.subr.bf16.mxu0 0
        %2794 = vmatpush1.bf16.msra.mxu0 0
        %2795 = vmatprep.subr.bf16.mxu0 0
        %2796 = vmatpush1.bf16.msra.mxu0 0
        %2797 = vmatprep.subr.bf16.mxu0 0
        %2798 = vmatpush1.bf16.msra.mxu0 0
        %2799 = vmatprep.subr.bf16.mxu0 0
        %2800 = vmatpush1.bf16.msra.mxu0 0
        %2801 = vmatprep.subr.bf16.mxu0 0
        %2802 = vmatpush1.bf16.msra.mxu0 0
        %2803 = vmatprep.subr.bf16.mxu0 0
        %2804 = vmatpush1.bf16.msra.mxu0 0
        %2805 = vmatprep.subr.bf16.mxu0 0
        %2806 = vmatpush1.bf16.msra.mxu0 0
        %2807 = vmatprep.subr.bf16.mxu0 0
        %2808 = vmatpush1.bf16.msra.mxu0 0
        %2809 = vmatprep.subr.bf16.mxu0 0
        %2810 = vmatpush1.bf16.msra.mxu0 0
        %2811 = vmatprep.mubr.bf16.mxu0 0
        %2812 = vmatmul.mubr.bf16.gmra.mrb[0].mxu0 %v2774
        %v2813 = vpop.f32.mrb[0].mxu0
        %v2814 = vadd.f32 0.0, %v2813
        %v2815 = vpop.f32.mrb[0].mxu0
        %v2816 = vpop.f32.mrb[0].mxu0
        %v2817 = vpop.f32.mrb[0].mxu0
        %2818 = vdwg.mxu0
        %v2820 = vsel %vm1831, %v2668, 0
        %v2823 = vsel %vm2299, %v2676, 0
        %2825 = vmatprep.subr.bf16.mxu0 0
        %2826 = vmatpush1.bf16.msra.mxu0 %v2823
        %2827 = vmatprep.subr.bf16.mxu0 0
        %2828 = vmatpush1.bf16.msra.mxu0 0
        %2829 = vmatprep.subr.bf16.mxu0 0
        %2830 = vmatpush1.bf16.msra.mxu0 0
        %2831 = vmatprep.subr.bf16.mxu0 0
        %2832 = vmatpush1.bf16.msra.mxu0 0
        %2833 = vmatprep.subr.bf16.mxu0 0
        %2834 = vmatpush1.bf16.msra.mxu0 0
        %2835 = vmatprep.subr.bf16.mxu0 0
        %2836 = vmatpush1.bf16.msra.mxu0 0
        %2837 = vmatprep.subr.bf16.mxu0 0
        %2838 = vmatpush1.bf16.msra.mxu0 0
        %2839 = vmatprep.subr.bf16.mxu0 0
        %2840 = vmatpush1.bf16.msra.mxu0 0
        %2841 = vmatprep.subr.bf16.mxu0 0
        %2842 = vmatpush1.bf16.msra.mxu0 0
        %2843 = vmatprep.subr.bf16.mxu0 0
        %2844 = vmatpush1.bf16.msra.mxu0 0
        %2845 = vmatprep.subr.bf16.mxu0 0
        %2846 = vmatpush1.bf16.msra.mxu0 0
        %2847 = vmatprep.subr.bf16.mxu0 0
        %2848 = vmatpush1.bf16.msra.mxu0 0
        %2849 = vmatprep.subr.bf16.mxu0 0
        %2850 = vmatpush1.bf16.msra.mxu0 0
        %2851 = vmatprep.subr.bf16.mxu0 0
        %2852 = vmatpush1.bf16.msra.mxu0 0
        %2853 = vmatprep.subr.bf16.mxu0 0
        %2854 = vmatpush1.bf16.msra.mxu0 0
        %2855 = vmatprep.subr.bf16.mxu0 0
        %2856 = vmatpush1.bf16.msra.mxu0 0
        %2857 = vmatprep.mubr.bf16.mxu0 0
        %2858 = vmatmul.mubr.bf16.gmra.mrb[0].mxu0 %v2820
        %v2859 = vpop.f32.mrb[0].mxu0
        %v2860 = vadd.f32 0.0, %v2859
        %v2861 = vpop.f32.mrb[0].mxu0
        %v2862 = vpop.f32.mrb[0].mxu0
        %v2863 = vpop.f32.mrb[0].mxu0
        %2864 = vdwg.mxu0
        %v2866 = vsel %vm1831, %v2669, 0
        %v2869 = vsel %vm2299, %v2677, 0
        %2871 = vmatprep.subr.bf16.mxu0 0
        %2872 = vmatpush1.bf16.msra.mxu0 %v2869
        %2873 = vmatprep.subr.bf16.mxu0 0
        %2874 = vmatpush1.bf16.msra.mxu0 0
        %2875 = vmatprep.subr.bf16.mxu0 0
        %2876 = vmatpush1.bf16.msra.mxu0 0
        %2877 = vmatprep.subr.bf16.mxu0 0
        %2878 = vmatpush1.bf16.msra.mxu0 0
        %2879 = vmatprep.subr.bf16.mxu0 0
        %2880 = vmatpush1.bf16.msra.mxu0 0
        %2881 = vmatprep.subr.bf16.mxu0 0
        %2882 = vmatpush1.bf16.msra.mxu0 0
        %2883 = vmatprep.subr.bf16.mxu0 0
        %2884 = vmatpush1.bf16.msra.mxu0 0
        %2885 = vmatprep.subr.bf16.mxu0 0
        %2886 = vmatpush1.bf16.msra.mxu0 0
        %2887 = vmatprep.subr.bf16.mxu0 0
        %2888 = vmatpush1.bf16.msra.mxu0 0
        %2889 = vmatprep.subr.bf16.mxu0 0
        %2890 = vmatpush1.bf16.msra.mxu0 0
        %2891 = vmatprep.subr.bf16.mxu0 0
        %2892 = vmatpush1.bf16.msra.mxu0 0
        %2893 = vmatprep.subr.bf16.mxu0 0
        %2894 = vmatpush1.bf16.msra.mxu0 0
        %2895 = vmatprep.subr.bf16.mxu0 0
        %2896 = vmatpush1.bf16.msra.mxu0 0
        %2897 = vmatprep.subr.bf16.mxu0 0
        %2898 = vmatpush1.bf16.msra.mxu0 0
        %2899 = vmatprep.subr.bf16.mxu0 0
        %2900 = vmatpush1.bf16.msra.mxu0 0
        %2901 = vmatprep.subr.bf16.mxu0 0
        %2902 = vmatpush1.bf16.msra.mxu0 0
        %2903 = vmatprep.mubr.bf16.mxu0 0
        %2904 = vmatmul.mubr.bf16.gmra.mrb[0].mxu0 %v2866
        %v2905 = vpop.f32.mrb[0].mxu0
        %v2906 = vadd.f32 0.0, %v2905
        %v2907 = vpop.f32.mrb[0].mxu0
        %v2908 = vpop.f32.mrb[0].mxu0
        %v2909 = vpop.f32.mrb[0].mxu0
        %2910 = vdwg.mxu0
        %v2912 = vsel %vm1831, %v2670, 0
        %v2915 = vsel %vm2299, %v2678, 0
        %2917 = vmatprep.subr.bf16.mxu0 0
        %2918 = vmatpush1.bf16.msra.mxu0 %v2915
        %2919 = vmatprep.subr.bf16.mxu0 0
        %2920 = vmatpush1.bf16.msra.mxu0 0
        %2921 = vmatprep.subr.bf16.mxu0 0
        %2922 = vmatpush1.bf16.msra.mxu0 0
        %2923 = vmatprep.subr.bf16.mxu0 0
        %2924 = vmatpush1.bf16.msra.mxu0 0
        %2925 = vmatprep.subr.bf16.mxu0 0
        %2926 = vmatpush1.bf16.msra.mxu0 0
        %2927 = vmatprep.subr.bf16.mxu0 0
        %2928 = vmatpush1.bf16.msra.mxu0 0
        %2929 = vmatprep.subr.bf16.mxu0 0
        %2930 = vmatpush1.bf16.msra.mxu0 0
        %2931 = vmatprep.subr.bf16.mxu0 0
        %2932 = vmatpush1.bf16.msra.mxu0 0
        %2933 = vmatprep.subr.bf16.mxu0 0
        %2934 = vmatpush1.bf16.msra.mxu0 0
        %2935 = vmatprep.subr.bf16.mxu0 0
        %2936 = vmatpush1.bf16.msra.mxu0 0
        %2937 = vmatprep.subr.bf16.mxu0 0
        %2938 = vmatpush1.bf16.msra.mxu0 0
        %2939 = vmatprep.subr.bf16.mxu0 0
        %2940 = vmatpush1.bf16.msra.mxu0 0
        %2941 = vmatprep.subr.bf16.mxu0 0
        %2942 = vmatpush1.bf16.msra.mxu0 0
        %2943 = vmatprep.subr.bf16.mxu0 0
        %2944 = vmatpush1.bf16.msra.mxu0 0
        %2945 = vmatprep.subr.bf16.mxu0 0
        %2946 = vmatpush1.bf16.msra.mxu0 0
        %2947 = vmatprep.subr.bf16.mxu0 0
        %2948 = vmatpush1.bf16.msra.mxu0 0
        %2949 = vmatprep.mubr.bf16.mxu0 0
        %2950 = vmatmul.mubr.bf16.gmra.mrb[0].mxu0 %v2912
        %v2951 = vpop.f32.mrb[0].mxu0
        %v2952 = vadd.f32 0.0, %v2951
        %v2953 = vpop.f32.mrb[0].mxu0
        %v2954 = vpop.f32.mrb[0].mxu0
        %v2955 = vpop.f32.mrb[0].mxu0
        %2956 = vdwg.mxu0
        %v2958 = vsel %vm1831, %v2671, 0
        %v2961 = vsel %vm2299, %v2679, 0
        %2963 = vmatprep.subr.bf16.mxu0 0
        %2964 = vmatpush1.bf16.msra.mxu0 %v2961
        %2965 = vmatprep.subr.bf16.mxu0 0
        %2966 = vmatpush1.bf16.msra.mxu0 0
        %2967 = vmatprep.subr.bf16.mxu0 0
        %2968 = vmatpush1.bf16.msra.mxu0 0
        %2969 = vmatprep.subr.bf16.mxu0 0
        %2970 = vmatpush1.bf16.msra.mxu0 0
        %2971 = vmatprep.subr.bf16.mxu0 0
        %2972 = vmatpush1.bf16.msra.mxu0 0
        %2973 = vmatprep.subr.bf16.mxu0 0
        %2974 = vmatpush1.bf16.msra.mxu0 0
        %2975 = vmatprep.subr.bf16.mxu0 0
        %2976 = vmatpush1.bf16.msra.mxu0 0
        %2977 = vmatprep.subr.bf16.mxu0 0
        %2978 = vmatpush1.bf16.msra.mxu0 0
        %2979 = vmatprep.subr.bf16.mxu0 0
        %2980 = vmatpush1.bf16.msra.mxu0 0
        %2981 = vmatprep.subr.bf16.mxu0 0
        %2982 = vmatpush1.bf16.msra.mxu0 0
        %2983 = vmatprep.subr.bf16.mxu0 0
        %2984 = vmatpush1.bf16.msra.mxu0 0
        %2985 = vmatprep.subr.bf16.mxu0 0
        %2986 = vmatpush1.bf16.msra.mxu0 0
        %2987 = vmatprep.subr.bf16.mxu0 0
        %2988 = vmatpush1.bf16.msra.mxu0 0
        %2989 = vmatprep.subr.bf16.mxu0 0
        %2990 = vmatpush1.bf16.msra.mxu0 0
        %2991 = vmatprep.subr.bf16.mxu0 0
        %2992 = vmatpush1.bf16.msra.mxu0 0
        %2993 = vmatprep.subr.bf16.mxu0 0
        %2994 = vmatpush1.bf16.msra.mxu0 0
        %2995 = vmatprep.mubr.bf16.mxu0 0
        %2996 = vmatmul.mubr.bf16.gmra.mrb[0].mxu0 %v2958
        %v2997 = vpop.f32.mrb[0].mxu0
        %v2998 = vadd.f32 0.0, %v2997
        %v2999 = vpop.f32.mrb[0].mxu0
        %v3000 = vpop.f32.mrb[0].mxu0
        %v3001 = vpop.f32.mrb[0].mxu0
        %3002 = vdwg.mxu0
        %v3004 = vsel %vm1831, %v2672, 0
        %v3007 = vsel %vm2299, %v2680, 0
        %3009 = vmatprep.subr.bf16.mxu0 0
        %3010 = vmatpush1.bf16.msra.mxu0 %v3007
        %3011 = vmatprep.subr.bf16.mxu0 0
        %3012 = vmatpush1.bf16.msra.mxu0 0
        %3013 = vmatprep.subr.bf16.mxu0 0
        %3014 = vmatpush1.bf16.msra.mxu0 0
        %3015 = vmatprep.subr.bf16.mxu0 0
        %3016 = vmatpush1.bf16.msra.mxu0 0
        %3017 = vmatprep.subr.bf16.mxu0 0
        %3018 = vmatpush1.bf16.msra.mxu0 0
        %3019 = vmatprep.subr.bf16.mxu0 0
        %3020 = vmatpush1.bf16.msra.mxu0 0
        %3021 = vmatprep.subr.bf16.mxu0 0
        %3022 = vmatpush1.bf16.msra.mxu0 0
        %3023 = vmatprep.subr.bf16.mxu0 0
        %3024 = vmatpush1.bf16.msra.mxu0 0
        %3025 = vmatprep.subr.bf16.mxu0 0
        %3026 = vmatpush1.bf16.msra.mxu0 0
        %3027 = vmatprep.subr.bf16.mxu0 0
        %3028 = vmatpush1.bf16.msra.mxu0 0
        %3029 = vmatprep.subr.bf16.mxu0 0
        %3030 = vmatpush1.bf16.msra.mxu0 0
        %3031 = vmatprep.subr.bf16.mxu0 0
        %3032 = vmatpush1.bf16.msra.mxu0 0
        %3033 = vmatprep.subr.bf16.mxu0 0
        %3034 = vmatpush1.bf16.msra.mxu0 0
        %3035 = vmatprep.subr.bf16.mxu0 0
        %3036 = vmatpush1.bf16.msra.mxu0 0
        %3037 = vmatprep.subr.bf16.mxu0 0
        %3038 = vmatpush1.bf16.msra.mxu0 0
        %3039 = vmatprep.subr.bf16.mxu0 0
        %3040 = vmatpush1.bf16.msra.mxu0 0
        %3041 = vmatprep.mubr.bf16.mxu0 0
        %3042 = vmatmul.mubr.bf16.gmra.mrb[0].mxu0 %v3004
        %v3043 = vpop.f32.mrb[0].mxu0
        %v3044 = vadd.f32 0.0, %v3043
        %v3045 = vpop.f32.mrb[0].mxu0
        %v3046 = vpop.f32.mrb[0].mxu0
        %v3047 = vpop.f32.mrb[0].mxu0
        %3048 = vdwg.mxu0
        %v3049 = vsel %vm878, %v2722, 0.0
        %v3050 = vsel %vm878, %v2768, 0.0
        %v3051 = vadd.f32 %v3049, %v3050
        %v3052 = vsel %vm878, %v2814, 0.0
        %v3053 = vadd.f32 %v3051, %v3052
        %v3054 = vsel %vm878, %v2860, 0.0
        %v3055 = vadd.f32 %v3053, %v3054
        %v3056 = vsel %vm878, %v2906, 0.0
        %v3057 = vadd.f32 %v3055, %v3056
        %v3058 = vsel %vm878, %v2952, 0.0
        %v3059 = vadd.f32 %v3057, %v3058
        %v3060 = vsel %vm878, %v2998, 0.0
        %v3061 = vadd.f32 %v3059, %v3060
        %v3062 = vsel %vm878, %v3044, 0.0
        %v3063 = vadd.f32 %v3061, %v3062
        %v3064 = vld [vmem:[#allocation10] sm:$0x1]
        %v3066 = vlaneseq
        %v3067 = vshrl.u32 %v3066, 7
        %v3068 = vsub.s32 0, %v3067
        %v3069 = vrot.slane %v3064, %v3068
        %v3071 = vadd.f32 %v3063, %v3069
        %v3072 = vstv %s680
        %v3073 = vmul.f32 %v3072, %v3071
        %v3074 = vadd.f32 %v812, %v3073
        %v3075 = vld [vmem:[#allocation11] sm:$0x1]
        %v3076 = vld [vmem:[#allocation13] sm:$0x1]
        %v3077 = vsel %vm878, %v3074, 0.0
        %3078 = vadd.xlane.f32.xlu0 %v3077
        %v3079 = vpop.xlane.xlu0 %3078
        %v3080 = vrcp.pop 64.0
        %v3081 = vmul.f32 %v3079, %v3080
        %v3082 = vsub.f32 %v3074, %v3081
        %v3083 = vmul.f32 %v3082, %v3082
        %v3084 = vsel %vm878, %v3083, 0.0
        %3085 = vadd.xlane.f32.xlu0 %v3084
        %v3086 = vpop.xlane.xlu0 %3085
        %v3087 = vmul.f32 %v3086, %v3080
        %v3088 = vadd.f32 %v3087, 1e-05
        %v3089 = vrsqrt.pop %v3088
        %v3090 = vmul.f32 %v3082, %v3089
        %v3092 = vlaneseq
        %v3093 = vshrl.u32 %v3092, 7
        %v3094 = vsub.s32 0, %v3093
        %v3095 = vrot.slane %v3075, %v3094
        %v3097 = vmul.f32 %v3090, %v3095
        %v3099 = vlaneseq
        %v3100 = vshrl.u32 %v3099, 7
        %v3101 = vsub.s32 0, %v3100
        %v3102 = vrot.slane %v3076, %v3101
        %v3104 = vadd.f32 %v3097, %v3102
        %v3105 = vpack.c.bf16 %v3104, %v3104
        %v3106 = vld [vmem:[%s12] sm:$0xf]
        %v3107 = vld [vmem:[%s12 + $0x4] sm:$0xf]
        %v3108 = vld [vmem:[%s12 + $0x8] sm:$0xf]
        %v3109 = vld [vmem:[%s12 + $0xc] sm:$0xf]
        %v3110 = vld [vmem:[%s12 + $0x10] sm:$0xf]
        %v3111 = vld [vmem:[%s12 + $0x14] sm:$0xf]
        %v3112 = vld [vmem:[%s12 + $0x18] sm:$0xf]
        %v3113 = vld [vmem:[%s12 + $0x1c] sm:$0xf]
        %v3114 = vld [vmem:[%s13] sm:$0x1]
        %v3116 = vlaneseq
        %v3117 = vshrl.u32 %v3116, 7
        %v3118 = vsub.s32 0, %v3117
        %v3119 = vrot.slane %v3114, %v3118
        %v3129 = vunpack.c.l.b16 %v3106
        %v3130 = vunpack.c.l.b16 %v3107
        %v3131 = vunpack.c.l.b16 %v3108
        %v3132 = vunpack.c.l.b16 %v3109
        %v3133 = vunpack.c.l.b16 %v3110
        %v3134 = vunpack.c.l.b16 %v3111
        %v3135 = vunpack.c.l.b16 %v3112
        %v3136 = vunpack.c.l.b16 %v3113
        %v3137 = vpack.c.b16 %v3130, %v3129
        %v3138 = vpack.c.b16 %v3132, %v3131
        %v3139 = vpack.c.b16 %v3134, %v3133
        %v3140 = vpack.c.b16 %v3136, %v3135
        %v3146 = vsel %vm878, %v3105, 0
        %3148 = vmatprep.subr.bf16.mxu0 0
        %3149 = vmatpush1.bf16.msra.mxu0 %v3137
        %3150 = vmatprep.subr.bf16.mxu0 0
        %3151 = vmatpush1.bf16.msra.mxu0 %v3138
        %3152 = vmatprep.subr.bf16.mxu0 0
        %3153 = vmatpush1.bf16.msra.mxu0 %v3139
        %3154 = vmatprep.subr.bf16.mxu0 0
        %3155 = vmatpush1.bf16.msra.mxu0 %v3140
        %3156 = vmatprep.subr.bf16.mxu0 0
        %3157 = vmatpush1.bf16.msra.mxu0 0
        %3158 = vmatprep.subr.bf16.mxu0 0
        %3159 = vmatpush1.bf16.msra.mxu0 0
        %3160 = vmatprep.subr.bf16.mxu0 0
        %3161 = vmatpush1.bf16.msra.mxu0 0
        %3162 = vmatprep.subr.bf16.mxu0 0
        %3163 = vmatpush1.bf16.msra.mxu0 0
        %3164 = vmatprep.subr.bf16.mxu0 0
        %3165 = vmatpush1.bf16.msra.mxu0 0
        %3166 = vmatprep.subr.bf16.mxu0 0
        %3167 = vmatpush1.bf16.msra.mxu0 0
        %3168 = vmatprep.subr.bf16.mxu0 0
        %3169 = vmatpush1.bf16.msra.mxu0 0
        %3170 = vmatprep.subr.bf16.mxu0 0
        %3171 = vmatpush1.bf16.msra.mxu0 0
        %3172 = vmatprep.subr.bf16.mxu0 0
        %3173 = vmatpush1.bf16.msra.mxu0 0
        %3174 = vmatprep.subr.bf16.mxu0 0
        %3175 = vmatpush1.bf16.msra.mxu0 0
        %3176 = vmatprep.subr.bf16.mxu0 0
        %3177 = vmatpush1.bf16.msra.mxu0 0
        %3178 = vmatprep.subr.bf16.mxu0 0
        %3179 = vmatpush1.bf16.msra.mxu0 0
        %3180 = vmatprep.mubr.bf16.mxu0 0
        %3181 = vmatmul.mubr.bf16.gmra.mrb[0].mxu0 %v3146
        %v3182 = vpop.f32.mrb[0].mxu0
        %v3183 = vadd.f32 %v3119, %v3182
        %v3184 = vpop.f32.mrb[0].mxu0
        %v3185 = vpop.f32.mrb[0].mxu0
        %v3186 = vpop.f32.mrb[0].mxu0
        %3187 = vdwg.mxu0
        %v3188 = vmax.f32 %v3183, 0.0
        %v3189 = vpack.c.bf16 %v3188, %v3188
        %v3190 = vld [vmem:[#allocation14] sm:$0xf]
        %v3191 = vld [vmem:[#allocation14 + $0x4] sm:$0xf]
        %v3192 = vld [vmem:[#allocation14 + $0x8] sm:$0xf]
        %v3193 = vld [vmem:[#allocation14 + $0xc] sm:$0xf]
        %v3194 = vld [vmem:[%s15] sm:$0x1]
        %v3196 = vlaneseq
        %v3197 = vshrl.u32 %v3196, 7
        %v3198 = vsub.s32 0, %v3197
        %v3199 = vrot.slane %v3194, %v3198
        %v3205 = vunpack.c.l.b16 %v3190
        %v3206 = vunpack.c.l.b16 %v3191
        %v3207 = vunpack.c.l.b16 %v3192
        %v3208 = vunpack.c.l.b16 %v3193
        %v3209 = vpack.c.b16 %v3206, %v3205
        %v3210 = vpack.c.b16 %v3208, %v3207
        %v3214 = vsel %vm705, %v3189, 0
        %3216 = vmatprep.subr.bf16.mxu0 0
        %3217 = vmatpush1.bf16.msra.mxu0 %v3209
        %3218 = vmatprep.subr.bf16.mxu0 0
        %3219 = vmatpush1.bf16.msra.mxu0 %v3210
        %3220 = vmatprep.subr.bf16.mxu0 0
        %3221 = vmatpush1.bf16.msra.mxu0 0
        %3222 = vmatprep.subr.bf16.mxu0 0
        %3223 = vmatpush1.bf16.msra.mxu0 0
        %3224 = vmatprep.subr.bf16.mxu0 0
        %3225 = vmatpush1.bf16.msra.mxu0 0
        %3226 = vmatprep.subr.bf16.mxu0 0
        %3227 = vmatpush1.bf16.msra.mxu0 0
        %3228 = vmatprep.subr.bf16.mxu0 0
        %3229 = vmatpush1.bf16.msra.mxu0 0
        %3230 = vmatprep.subr.bf16.mxu0 0
        %3231 = vmatpush1.bf16.msra.mxu0 0
        %3232 = vmatprep.subr.bf16.mxu0 0
        %3233 = vmatpush1.bf16.msra.mxu0 0
        %3234 = vmatprep.subr.bf16.mxu0 0
        %3235 = vmatpush1.bf16.msra.mxu0 0
        %3236 = vmatprep.subr.bf16.mxu0 0
        %3237 = vmatpush1.bf16.msra.mxu0 0
        %3238 = vmatprep.subr.bf16.mxu0 0
        %3239 = vmatpush1.bf16.msra.mxu0 0
        %3240 = vmatprep.subr.bf16.mxu0 0
        %3241 = vmatpush1.bf16.msra.mxu0 0
        %3242 = vmatprep.subr.bf16.mxu0 0
        %3243 = vmatpush1.bf16.msra.mxu0 0
        %3244 = vmatprep.subr.bf16.mxu0 0
        %3245 = vmatpush1.bf16.msra.mxu0 0
        %3246 = vmatprep.subr.bf16.mxu0 0
        %3247 = vmatpush1.bf16.msra.mxu0 0
        %3248 = vmatprep.mubr.bf16.mxu0 0
        %3249 = vmatmul.mubr.bf16.gmra.mrb[0].mxu0 %v3214
        %v3250 = vpop.f32.mrb[0].mxu0
        %v3251 = vadd.f32 %v3199, %v3250
        %v3252 = vpop.f32.mrb[0].mxu0
        %v3253 = vpop.f32.mrb[0].mxu0
        %v3254 = vpop.f32.mrb[0].mxu0
        %3255 = vdwg.mxu0
        %v3256 = vmul.f32 %v3072, %v3251
        %v3257 = vadd.f32 %v3104, %v3256
        %v3258 = vld [vmem:[%s16] sm:$0x1]
        %v3259 = vld [vmem:[%s17] sm:$0x1]
        %v3260 = vsel %vm878, %v3257, 0.0
        %3261 = vadd.xlane.f32.xlu0 %v3260
        %v3262 = vpop.xlane.xlu0 %3261
        %v3263 = vmul.f32 %v3262, %v3080
        %v3264 = vsub.f32 %v3257, %v3263
        %v3265 = vmul.f32 %v3264, %v3264
        %v3266 = vsel %vm878, %v3265, 0.0
        %3267 = vadd.xlane.f32.xlu0 %v3266
        %v3268 = vpop.xlane.xlu0 %3267
        %v3269 = vmul.f32 %v3268, %v3080
        %v3270 = vadd.f32 %v3269, 1e-05
        %v3271 = vrsqrt.pop %v3270
        %v3272 = vmul.f32 %v3264, %v3271
        %v3274 = vlaneseq
        %v3275 = vshrl.u32 %v3274, 7
        %v3276 = vsub.s32 0, %v3275
        %v3277 = vrot.slane %v3258, %v3276
        %v3279 = vmul.f32 %v3272, %v3277
        %v3281 = vlaneseq
        %v3282 = vshrl.u32 %v3281, 7
        %v3283 = vsub.s32 0, %v3282
        %v3284 = vrot.slane %v3259, %v3283
        %v3286 = vadd.f32 %v3279, %v3284
        %3287 = vst.msk [vmem:[%s678] sm:$0xff] %vm878, %v3286
        %p3288 = scmp.lt.s32.totalorder %s35, 1
        %s3289 = scalar_select %p3288, %s35, 1
        %s3290 = smul.addr %s3289, 8
        %s3291 = scalar_lea.vmem %s18, %s3290
        // Predicated region
        $region125: #{advanced_accelerator.1} parent=91 // pred_check
          %p3292 = pneg %p436
        $region126: #{advanced_accelerator.1} parent=91 // pred_check_branch
          %3294 = sbr.rel (%p3292) target = $region128
        $region127: #{advanced_accelerator.1} parent=91 // pred_region
          _
        $region128: #{advanced_accelerator.1} parent=91 // pred_fallthru
          _
      $region92: #{advanced_accelerator.1} parent=5 // pred_fallthru
        _
      %p3295 = scmp.le.s32.totalorder 2, %s30
      // Predicated region
      $region129: #{advanced_accelerator.1} parent=5 // pred_check
        %p3296 = pneg %p3295
      $region130: #{advanced_accelerator.1} parent=5 // pred_check_branch
        %3298 = sbr.rel (%p3296) target = $region132
      $region131: #{advanced_accelerator.1} parent=5 // pred_region
        %s3299 = ssub.s32 %s30, 2
        // Predicated region
        $region133: #{advanced_accelerator.1} parent=131 // pred_check
          %p3300 = pneg %p442
        $region134: #{advanced_accelerator.1} parent=131 // pred_check_branch
          %3302 = sbr.rel (%p3300) target = $region136
        $region135: #{advanced_accelerator.1} parent=131 // pred_region
          %p3303 = scmp.lt.s32.totalorder %s36, 1
          %s3304 = scalar_select %p3303, %s36, 1
          %s3305 = smul.addr %s3304, 8
          %s3306 = scalar_lea.vmem %s18, %s3305
        $region136: #{advanced_accelerator.1} parent=131 // pred_fallthru
          _
      $region132: #{advanced_accelerator.1} parent=5 // pred_fallthru
        _
    $region6: #{advanced_accelerator.1} parent=1 // loop_footer
      %s34 = sadd.s32 1, %s30
    $region7: #{advanced_accelerator.1} parent=1 // loop_footer_branch
      %29 = sbr.rel target = $region3
    $region8: #{advanced_accelerator.1} parent=1 // loop_exit
      _
    %3307 = vsyncpa [#allocation4], 1
    %s3308 = scalar_lea.sflag [#allocation4], 1
    %3309 = vsyncpa %s3308, 1
    %3310 = vsyncpa [#allocation6], 1
    %3311 = vsyncpa [#allocation9], 1
    %3312 = vsyncpa [#allocation12], 1
    %3313 = vsyncpa [#allocation15], 1

</llo_original>
